<compile_context>
chip_gen: v5e
topology: v5e:2x2
jax: 0.10.0
libtpu: 0.0.40
codegen_flags: <defaults>
</compile_context>

<pallas_src>
import functools

import jax
import jax.numpy as jnp
from jax import lax
from jax.experimental import pallas as pl
from jax.experimental.pallas import tpu as pltpu


_LPAD = 128   # aligned left margin of the flat padded scratch (needs >= W + 1)
_RPAD = 128   # aligned right margin of the flat padded scratch (needs >= W + 1)


def _coupling_kernel(x_ref, w1_ref, b1_ref, w2_ref, b2_ref, w3_ref, b3_ref,
                     y_ref, dldj_ref, pad1_ref, pad2_ref, *, width, images):
    """Coupling forward for `images` images, activations in (channels, H*W)."""
    Cc = x_ref.shape[2]
    HW = x_ref.shape[3]
    M = w2_ref.shape[0]
    C2 = w3_ref.shape[1]            # = 2 * Cc (shift rows first, scale rows after)

    # Zero ONLY the two aligned 128-lane margins of each padded scratch.  The
    # centre [_LPAD, _LPAD+HW) is fully overwritten inside conv3x3, so it is
    # never zero-filled.  Margins are re-zeroed every grid step (NOT gated on
    # program_id == 0): under megacore batch sharding each core owns its own
    # scratch and only one core executes step 0.
    pad1_ref[:, :_LPAD] = jnp.zeros((Cc, _LPAD), jnp.float32)
    pad1_ref[:, _LPAD + HW:] = jnp.zeros((Cc, _RPAD), jnp.float32)
    pad2_ref[:, :_LPAD] = jnp.zeros((M, _LPAD), jnp.float32)
    pad2_ref[:, _LPAD + HW:] = jnp.zeros((M, _RPAD), jnp.float32)

    # Column masks that kill the horizontal wrap-around of the flat layout
    # (dw=-1 invalid at w==0, dw=+1 invalid at w==width-1).  Built and
    # pre-broadcast once per grid step (hoisted out of all loops).
    col = lax.broadcasted_iota(jnp.int32, (1, HW), 1) % width
    m_left = jnp.where(col >= 1, 1.0, 0.0).astype(jnp.float32)        # (1, HW)
    m_right = jnp.where(col <= width - 2, 1.0, 0.0).astype(jnp.float32)
    m_left_in = jnp.broadcast_to(m_left, (Cc, HW))    # per-tap masks (in_conv)
    m_right_in = jnp.broadcast_to(m_right, (Cc, HW))
    m_left_out = jnp.broadcast_to(m_left, (C2, HW))   # per-group masks (out_conv)
    m_right_out = jnp.broadcast_to(m_right, (C2, HW))

    def conv3x3(pad_ref, src, w_ref, cout, mask_taps):
        # Write `src` once into the padded flat scratch (aligned centre); the
        # 9 taps are static lane-offset slices.  The centre tap (dh=dw=0)
        # reuses the in-register `src` directly (no scratch re-read).
        pad_ref[:, _LPAD:_LPAD + HW] = src

        if mask_taps:
            # Cin < Cout: masking the (Cin, HW) tap is cheaper than masking
            # the (Cout, HW) accumulator.
            acc = jnp.zeros((cout, HW), jnp.float32)
            for kh in range(3):
                for kw in range(3):
                    dh, dw = kh - 1, kw - 1
                    if dh == 0 and dw == 0:
                        tap = src
                    else:
                        start = _LPAD + dh * width + dw
                        tap = pad_ref[:, start:start + HW]
                    if dw == -1:
                        tap = tap * m_left_in
                    elif dw == 1:
                        tap = tap * m_right_in
                    acc = acc + jnp.dot(w_ref[kh * 3 + kw], tap,
                                        preferred_element_type=jnp.float32)
            return acc

        # Cout < Cin: accumulate the dw=-1 / dw=+1 tap groups un-masked and
        # mask each small (Cout, HW) partial sum ONCE (the per-column mask
        # factors out of the matmul).
        acc_c = jnp.zeros((cout, HW), jnp.float32)
        acc_l = jnp.zeros((cout, HW), jnp.float32)
        acc_r = jnp.zeros((cout, HW), jnp.float32)
        for kh in range(3):
            for kw in range(3):
                dh, dw = kh - 1, kw - 1
                if dh == 0 and dw == 0:
                    tap = src
                else:
                    start = _LPAD + dh * width + dw
                    tap = pad_ref[:, start:start + HW]
                d = jnp.dot(w_ref[kh * 3 + kw], tap,
                            preferred_element_type=jnp.float32)
                if dw == -1:
                    acc_l = acc_l + d
                elif dw == 1:
                    acc_r = acc_r + d
                else:
                    acc_c = acc_c + d
        return acc_c + acc_l * m_left_out + acc_r * m_right_out

    for b in range(images):                     # static unroll over the block
        x_change = x_ref[b, 0]                  # (Cc, HW)
        x_id = x_ref[b, 1]                      # (Cc, HW)

        # in_conv (3x3, ActNorm folded) -> ReLU
        h = conv3x3(pad1_ref, x_id, w1_ref, M, mask_taps=True)
        h = jnp.maximum(h + b1_ref[...], 0.0)

        # mid_conv (1x1, ActNorm folded) -> ReLU
        h = jnp.dot(w2_ref[...], h, preferred_element_type=jnp.float32)
        h = jnp.maximum(h + b2_ref[...], 0.0)

        # out_conv (Conv2dZeros 3x3, exp(3*logs)/bias folded, shift rows first)
        st = conv3x3(pad2_ref, h, w3_ref, C2, mask_taps=False) + b3_ref[...]

        shift = st[:Cc, :]
        logit = st[Cc:, :]
        e = jnp.exp(-logit)
        denom = 1.0 + e
        # scale = sigmoid(logit).  Exact divide keeps fp32 parity with the
        # reference; pl.reciprocal(denom, approx=True) is available if a
        # looser tolerance is acceptable.
        scale = 1.0 / denom

        # Only the changed half is written; the identity half stays untouched
        # in the x-aliased HBM buffer.
        y_ref[b, 0] = ((x_change + shift) * scale).astype(y_ref.dtype)

        # log(sigmoid(logit)) = -log(1 + exp(-logit))  (no log-of-divide).
        neg_log = jnp.log(denom)                        # (Cc, HW)
        tot = jnp.sum(neg_log, axis=1, keepdims=True)   # (Cc, 1)
        tot = jnp.sum(tot, axis=0, keepdims=True)       # (1, 1)
        dldj_ref[b] = jnp.broadcast_to(-tot, dldj_ref.shape[1:])


def _images_per_step(n):
    """Images folded into one grid step.  Multi-TensorCore chips (v7x / v4 /
    v5p megacore) keep batch-parallel grid steps; single-TC chips (v5e / v6e)
    fold the small batch into one step to avoid per-step pipeline overhead."""
    kind = ""
    try:
        kind = jax.devices()[0].device_kind.lower()
    except Exception:
        pass
    multi_tc = any(t in kind for t in ("v7", "v4", "v5p"))
    if multi_tc and n >= 2:
        return 1
    b = max(1, min(n, 8))
    while n % b:
        b -= 1
    return b


@functools.partial(jax.jit, donate_argnums=(0,))
def coupling_forward(x, ldj, w1, an1_b, an1_logs, w2, an2_b, an2_logs,
                     w3, cz_b, cz_logs):
    """Coupling.forward(x, ldj, reverse=False).  x: (N, 2*Cc, H, W) NCHW.

    `x` is donated: the identity half of the output aliases it in place."""
    N, C, H, W = x.shape
    Cc = C // 2
    M = w1.shape[0]
    HW = H * W
    if W + 1 > _LPAD:
        raise ValueError("image width too large for the flat-padding scheme")

    f32 = jnp.float32
    # ---- fold ActNorm / Conv2dZeros affines into the conv weights (exact) --
    s1 = jnp.exp(an1_logs).astype(f32)                       # (M,)
    w1e = w1.astype(f32) * s1[:, None, None, None]
    b1 = (an1_b * s1)[:, None].astype(f32)                   # (M, 1)
    s2 = jnp.exp(an2_logs).astype(f32)
    w2e = w2[:, :, 0, 0].astype(f32) * s2[:, None]           # (M, M)
    b2 = (an2_b * s2)[:, None].astype(f32)
    s3 = jnp.exp(3.0 * cz_logs).astype(f32)                  # logscale_factor=3
    perm = jnp.concatenate([jnp.arange(0, C, 2), jnp.arange(1, C, 2)])
    w3e = (w3.astype(f32) * s3[:, None, None, None])[perm]   # shift rows first
    b3 = ((cz_b * s3)[perm])[:, None].astype(f32)            # (C, 1)

    # Tap-major weight layout (KH*KW, Cout, Cin), done once outside the kernel.
    w1r = jnp.transpose(w1e, (2, 3, 0, 1)).reshape(9, M, Cc)
    w3r = jnp.transpose(w3e, (2, 3, 0, 1)).reshape(9, C, M)

    # (N, 2, Cc, H*W): change / id halves split on a non-minor dim so the
    # last two block dims stay full-extent lane-dense slabs.  Free reshape
    # (NCHW channels are contiguous).
    x_r = x.reshape(N, 2, Cc, HW)

    B = _images_per_step(N)
    padw = _LPAD + HW + _RPAD

    grid_spec = pltpu.PrefetchScalarGridSpec(
        num_scalar_prefetch=0,
        grid=(N // B,),
        in_specs=[
            pl.BlockSpec((B, 2, Cc, HW), lambda n: (n, 0, 0, 0)),  # x
            pl.BlockSpec((9, M, Cc), lambda n: (0, 0, 0)),         # w1 (resident)
            pl.BlockSpec((M, 1), lambda n: (0, 0)),                # b1
            pl.BlockSpec((M, M), lambda n: (0, 0)),                # w2
            pl.BlockSpec((M, 1), lambda n: (0, 0)),                # b2
            pl.BlockSpec((9, C, M), lambda n: (0, 0, 0)),          # w3
            pl.BlockSpec((C, 1), lambda n: (0, 0)),                # b3
        ],
        out_specs=(
            # Only the changed half is written back; the identity half lives
            # in the x-aliased buffer already.
            pl.BlockSpec((B, 1, Cc, HW), lambda n: (n, 0, 0, 0)),  # y (changed)
            pl.BlockSpec((B, 1, 128), lambda n: (n, 0, 0)),        # per-image ldj
        ),
        scratch_shapes=[
            pltpu.VMEM((Cc, padw), jnp.float32),   # flat-padded x_id
            pltpu.VMEM((M, padw), jnp.float32),    # flat-padded hidden act
        ],
    )

    y_r, dldj = pl.pallas_call(
        functools.partial(_coupling_kernel, width=W, images=B),
        out_shape=(
            jax.ShapeDtypeStruct((N, 2, Cc, HW), x.dtype),
            jax.ShapeDtypeStruct((N, 1, 128), jnp.float32),
        ),
        grid_spec=grid_spec,
        input_output_aliases={0: 0},       # x_r -> y (identity half untouched)
        compiler_params=pltpu.CompilerParams(
            dimension_semantics=("parallel",),
        ),
    )(x_r, w1r, b1, w2e, b2, w3r, b3)

    return y_r.reshape(N, C, H, W), ldj + dldj[:, 0, 0]


def coupling_reference(x, ldj, w1, an1_b, an1_logs, w2, an2_b, an2_logs,
                       w3, cz_b, cz_logs):
    """Pure-JAX reference matching the PyTorch module (reverse=False)."""
    Cc = x.shape[1] // 2
    x_change, x_id = x[:, :Cc], x[:, Cc:]

    def conv(z, w, pad):
        return lax.conv_general_dilated(
            z, w, window_strides=(1, 1), padding=((pad, pad), (pad, pad)),
            dimension_numbers=("NCHW", "OIHW", "NCHW"),
            precision=lax.Precision.HIGHEST)

    def actnorm(z, b, logs):
        return (z + b[None, :, None, None]) * jnp.exp(logs)[None, :, None, None]

    h = jax.nn.relu(actnorm(conv(x_id, w1, 1), an1_b, an1_logs))
    h = jax.nn.relu(actnorm(conv(h, w2, 0), an2_b, an2_logs))
    st = conv(h, w3, 1)
    st = (st + cz_b[None, :, None, None]) * jnp.exp(3.0 * cz_logs)[None, :, None, None]
    shift, scale = st[:, 0::2], st[:, 1::2]
    scale = jax.nn.sigmoid(scale)
    x_change = (x_change + shift) * scale
    ldj = ldj + jnp.log(scale).reshape(x.shape[0], -1).sum(-1)
    return jnp.concatenate([x_change, x_id], axis=1), ldj


if __name__ == "__main__":
    key = jax.random.PRNGKey(0)
    ks = jax.random.split(key, 11)

    # Coupling(in_channels=2, mid_channels=32) applied to a 4-channel input.
    N, C, H, W = 2, 4, 16, 16
    Cc, M = C // 2, 32

    x = jax.random.normal(ks[0], (N, C, H, W), dtype=jnp.float32)
    ldj = jax.random.normal(ks[1], (N,), dtype=jnp.float32)

    # Conv weights: N(0, 0.05) as in Conv2dActNorm.__init__.  ActNorm /
    # Conv2dZeros params are zero right after __init__; small random values
    # are used here so the whole forward path is exercised numerically.
    w1 = 0.05 * jax.random.normal(ks[2], (M, Cc, 3, 3), dtype=jnp.float32)
    w2 = 0.05 * jax.random.normal(ks[3], (M, M, 1, 1), dtype=jnp.float32)
    w3 = 0.05 * jax.random.normal(ks[4], (C, M, 3, 3), dtype=jnp.float32)
    an1_b = 0.1 * jax.random.normal(ks[5], (M,), dtype=jnp.float32)
    an1_logs = 0.1 * jax.random.normal(ks[6], (M,), dtype=jnp.float32)
    an2_b = 0.1 * jax.random.normal(ks[7], (M,), dtype=jnp.float32)
    an2_logs = 0.1 * jax.random.normal(ks[8], (M,), dtype=jnp.float32)
    cz_b = 0.1 * jax.random.normal(ks[9], (C,), dtype=jnp.float32)
    cz_logs = 0.1 * jax.random.normal(ks[10], (C,), dtype=jnp.float32)

    args = (x, ldj, w1, an1_b, an1_logs, w2, an2_b, an2_logs, w3, cz_b, cz_logs)

    # Reference first: `x` is donated to the Pallas wrapper below.
    y_ref, ldj_ref = coupling_reference(*args)
    y_ref, ldj_ref = jax.block_until_ready((y_ref, ldj_ref))

    y, ldj_out = coupling_forward(*args)
    y, ldj_out = jax.block_until_ready((y, ldj_out))

    assert y.shape == (N, C, H, W) and ldj_out.shape == (N,)
    assert jnp.allclose(y, y_ref, atol=5e-4, rtol=5e-4), \
        float(jnp.max(jnp.abs(y - y_ref)))
    assert jnp.allclose(ldj_out, ldj_ref, atol=1e-2, rtol=1e-3), \
        float(jnp.max(jnp.abs(ldj_out - ldj_ref)))
    print("KERNEL_OK")
</pallas_src>

<mosaic_0001>
module attributes {stable_mosaic.version = 11 : i64} {
  func.func @_coupling_kernel(%arg0: i32, %arg1: memref<2x2x2x256xf32, #tpu.memory_space<vmem>>, %arg2: memref<9x32x2xf32, #tpu.memory_space<vmem>>, %arg3: memref<32x1xf32, #tpu.memory_space<vmem>>, %arg4: memref<32x32xf32, #tpu.memory_space<vmem>>, %arg5: memref<32x1xf32, #tpu.memory_space<vmem>>, %arg6: memref<9x4x32xf32, #tpu.memory_space<vmem>>, %arg7: memref<4x1xf32, #tpu.memory_space<vmem>>, %arg8: memref<2x1x2x256xf32, #tpu.memory_space<vmem>>, %arg9: memref<2x1x128xf32, #tpu.memory_space<vmem>>, %arg10: memref<2x512xf32, #tpu.memory_space<vmem>>, %arg11: memref<32x512xf32, #tpu.memory_space<vmem>>) attributes {dimension_semantics = [#tpu.dimension_semantics<parallel>], iteration_bounds = array<i64: 1>, scalar_prefetch = 0 : i64, scratch_operands = 2 : i64, tpu.core_type = #tpu.core_type<tc>, window_params = [{transform_indices = @transform_0, window_bounds = array<i64: 2, 2, 2, 256>}, {pipeline_mode = #tpu.pipeline_mode<synchronous>, transform_indices = @transform_1, window_bounds = array<i64: 9, 32, 2>}, {pipeline_mode = #tpu.pipeline_mode<synchronous>, transform_indices = @transform_2, window_bounds = array<i64: 32, 1>}, {pipeline_mode = #tpu.pipeline_mode<synchronous>, transform_indices = @transform_3, window_bounds = array<i64: 32, 32>}, {pipeline_mode = #tpu.pipeline_mode<synchronous>, transform_indices = @transform_4, window_bounds = array<i64: 32, 1>}, {pipeline_mode = #tpu.pipeline_mode<synchronous>, transform_indices = @transform_5, window_bounds = array<i64: 9, 4, 32>}, {pipeline_mode = #tpu.pipeline_mode<synchronous>, transform_indices = @transform_6, window_bounds = array<i64: 4, 1>}, {transform_indices = @transform_7, window_bounds = array<i64: 2, 1, 2, 256>}, {transform_indices = @transform_8, window_bounds = array<i64: 2, 1, 128>}]} {
    %cst = arith.constant 0.000000e+00 : f32
    %0 = vector.broadcast %cst : f32 to vector<2x128xf32>
    %c0 = arith.constant 0 : index
    %c0_0 = arith.constant 0 : index
    %1 = vector.load %arg10[%c0, %c0_0] : memref<2x512xf32, #tpu.memory_space<vmem>>, vector<2x128xf32>
    tpu.vector_store %arg10[%c0, %c0_0], %0 {strides = array<i32>} : memref<2x512xf32, #tpu.memory_space<vmem>>, vector<2x128xf32>,
    %cst_1 = arith.constant 0.000000e+00 : f32
    %2 = vector.broadcast %cst_1 : f32 to vector<2x128xf32>
    %c0_2 = arith.constant 0 : index
    %c384 = arith.constant 384 : index
    %3 = vector.load %arg10[%c0_2, %c384] : memref<2x512xf32, #tpu.memory_space<vmem>>, vector<2x128xf32>
    tpu.vector_store %arg10[%c0_2, %c384], %2 {strides = array<i32>} : memref<2x512xf32, #tpu.memory_space<vmem>>, vector<2x128xf32>,
    %cst_3 = arith.constant 0.000000e+00 : f32
    %4 = vector.broadcast %cst_3 : f32 to vector<32x128xf32>
    %c0_4 = arith.constant 0 : index
    %c0_5 = arith.constant 0 : index
    %5 = vector.load %arg11[%c0_4, %c0_5] : memref<32x512xf32, #tpu.memory_space<vmem>>, vector<32x128xf32>
    tpu.vector_store %arg11[%c0_4, %c0_5], %4 {strides = array<i32>} : memref<32x512xf32, #tpu.memory_space<vmem>>, vector<32x128xf32>,
    %cst_6 = arith.constant 0.000000e+00 : f32
    %6 = vector.broadcast %cst_6 : f32 to vector<32x128xf32>
    %c0_7 = arith.constant 0 : index
    %c384_8 = arith.constant 384 : index
    %7 = vector.load %arg11[%c0_7, %c384_8] : memref<32x512xf32, #tpu.memory_space<vmem>>, vector<32x128xf32>
    tpu.vector_store %arg11[%c0_7, %c384_8], %6 {strides = array<i32>} : memref<32x512xf32, #tpu.memory_space<vmem>>, vector<32x128xf32>,
    %8 = tpu.iota {dimensions = array<i32: 1>} : vector<1x256xi32>
    %c16_i32 = arith.constant 16 : i32
    %c0_i32 = arith.constant 0 : i32
    %9 = arith.cmpi eq, %c16_i32, %c0_i32 : i32
    %c1_i32 = arith.constant 1 : i32
    %10 = arith.select %9, %c1_i32, %c16_i32 : i32
    %11 = vector.broadcast %10 : i32 to vector<1x256xi32>
    %12 = arith.remsi %8, %11 : vector<1x256xi32>
    %c0_i32_9 = arith.constant 0 : i32
    %13 = vector.broadcast %c0_i32_9 : i32 to vector<1x256xi32>
    %14 = arith.cmpi ne, %12, %13 : vector<1x256xi32>
    %c0_i32_10 = arith.constant 0 : i32
    %15 = vector.broadcast %c0_i32_10 : i32 to vector<1x256xi32>
    %16 = arith.cmpi slt, %12, %15 : vector<1x256xi32>
    %c0_i32_11 = arith.constant 0 : i32
    %17 = arith.cmpi slt, %10, %c0_i32_11 : i32
    %18 = vector.broadcast %17 : i1 to vector<1x256xi1>
    %19 = vector.broadcast %18 : vector<1x256xi1> to vector<1x256xi1>
    %20 = arith.xori %16, %19 : vector<1x256xi1>
    %21 = arith.andi %20, %14 : vector<1x256xi1>
    %22 = vector.broadcast %10 : i32 to vector<1x256xi32>
    %23 = arith.addi %12, %22 : vector<1x256xi32>
    %24 = arith.select %21, %23, %12 : vector<1x256xi1>, vector<1x256xi32>
    %c1_i32_12 = arith.constant 1 : i32
    %25 = vector.broadcast %c1_i32_12 : i32 to vector<1x256xi32>
    %26 = arith.cmpi sge, %24, %25 : vector<1x256xi32>
    %cst_13 = arith.constant 1.000000e+00 : f32
    %cst_14 = arith.constant 0.000000e+00 : f32
    %27 = vector.broadcast %cst_13 : f32 to vector<1x256xf32>
    %28 = vector.broadcast %cst_14 : f32 to vector<1x256xf32>
    %29 = arith.select %26, %27, %28 : vector<1x256xi1>, vector<1x256xf32>
    %c14_i32 = arith.constant 14 : i32
    %30 = vector.broadcast %c14_i32 : i32 to vector<1x256xi32>
    %31 = arith.cmpi sle, %24, %30 : vector<1x256xi32>
    %cst_15 = arith.constant 1.000000e+00 : f32
    %cst_16 = arith.constant 0.000000e+00 : f32
    %32 = vector.broadcast %cst_15 : f32 to vector<1x256xf32>
    %33 = vector.broadcast %cst_16 : f32 to vector<1x256xf32>
    %34 = arith.select %31, %32, %33 : vector<1x256xi1>, vector<1x256xf32>
    %35 = vector.shape_cast %29 : vector<1x256xf32> to vector<1x256xf32>
    %36 = vector.broadcast %35 : vector<1x256xf32> to vector<2x256xf32>
    %37 = vector.shape_cast %34 : vector<1x256xf32> to vector<1x256xf32>
    %38 = vector.broadcast %37 : vector<1x256xf32> to vector<2x256xf32>
    %39 = vector.shape_cast %29 : vector<1x256xf32> to vector<1x256xf32>
    %40 = vector.broadcast %39 : vector<1x256xf32> to vector<4x256xf32>
    %41 = vector.shape_cast %34 : vector<1x256xf32> to vector<1x256xf32>
    %42 = vector.broadcast %41 : vector<1x256xf32> to vector<4x256xf32>
    %c0_17 = arith.constant 0 : index
    %c0_18 = arith.constant 0 : index
    %c0_19 = arith.constant 0 : index
    %c0_20 = arith.constant 0 : index
    %43 = vector.load %arg1[%c0_17, %c0_18, %c0_19, %c0_20] : memref<2x2x2x256xf32, #tpu.memory_space<vmem>>, vector<1x1x2x256xf32>
    %44 = vector.shape_cast %43 : vector<1x1x2x256xf32> to vector<2x256xf32>
    %c0_21 = arith.constant 0 : index
    %c1 = arith.constant 1 : index
    %c0_22 = arith.constant 0 : index
    %c0_23 = arith.constant 0 : index
    %45 = vector.load %arg1[%c0_21, %c1, %c0_22, %c0_23] : memref<2x2x2x256xf32, #tpu.memory_space<vmem>>, vector<1x1x2x256xf32>
    %46 = vector.shape_cast %45 : vector<1x1x2x256xf32> to vector<2x256xf32>
    %c0_24 = arith.constant 0 : index
    %c128 = arith.constant 128 : index
    %47 = vector.load %arg10[%c0_24, %c128] : memref<2x512xf32, #tpu.memory_space<vmem>>, vector<2x256xf32>
    tpu.vector_store %arg10[%c0_24, %c128], %46 {strides = array<i32>} : memref<2x512xf32, #tpu.memory_space<vmem>>, vector<2x256xf32>,
    %cst_25 = arith.constant 0.000000e+00 : f32
    %48 = vector.broadcast %cst_25 : f32 to vector<32x256xf32>
    %c0_26 = arith.constant 0 : index
    %c111 = arith.constant 111 : index
    %49 = vector.load %arg10[%c0_26, %c111] : memref<2x512xf32, #tpu.memory_space<vmem>>, vector<2x256xf32>
    %50 = arith.mulf %49, %36 : vector<2x256xf32>
    %c0_27 = arith.constant 0 : index
    %c0_28 = arith.constant 0 : index
    %c0_29 = arith.constant 0 : index
    %51 = vector.load %arg2[%c0_27, %c0_28, %c0_29] : memref<9x32x2xf32, #tpu.memory_space<vmem>>, vector<1x32x2xf32>
    %52 = vector.shape_cast %51 : vector<1x32x2xf32> to vector<32x2xf32>
    %cst_30 = arith.constant dense<0.000000e+00> : vector<32x256xf32>
    %53 = tpu.matmul %52, %50, %cst_30 {dimension_numbers = #tpu.dot_dimension_numbers<[1], [0], [0], [1], [0, 0, 1, 1], [], []>} : vector<32x2xf32>, vector<2x256xf32>, vector<32x256xf32> -> vector<32x256xf32>
    %54 = arith.addf %48, %53 : vector<32x256xf32>
    %c0_31 = arith.constant 0 : index
    %c112 = arith.constant 112 : index
    %55 = vector.load %arg10[%c0_31, %c112] : memref<2x512xf32, #tpu.memory_space<vmem>>, vector<2x256xf32>
    %c1_32 = arith.constant 1 : index
    %c0_33 = arith.constant 0 : index
    %c0_34 = arith.constant 0 : index
    %56 = vector.load %arg2[%c1_32, %c0_33, %c0_34] : memref<9x32x2xf32, #tpu.memory_space<vmem>>, vector<1x32x2xf32>
    %57 = vector.shape_cast %56 : vector<1x32x2xf32> to vector<32x2xf32>
    %cst_35 = arith.constant dense<0.000000e+00> : vector<32x256xf32>
    %58 = tpu.matmul %57, %55, %cst_35 {dimension_numbers = #tpu.dot_dimension_numbers<[1], [0], [0], [1], [0, 0, 1, 1], [], []>} : vector<32x2xf32>, vector<2x256xf32>, vector<32x256xf32> -> vector<32x256xf32>
    %59 = arith.addf %54, %58 : vector<32x256xf32>
    %c0_36 = arith.constant 0 : index
    %c113 = arith.constant 113 : index
    %60 = vector.load %arg10[%c0_36, %c113] : memref<2x512xf32, #tpu.memory_space<vmem>>, vector<2x256xf32>
    %61 = arith.mulf %60, %38 : vector<2x256xf32>
    %c2 = arith.constant 2 : index
    %c0_37 = arith.constant 0 : index
    %c0_38 = arith.constant 0 : index
    %62 = vector.load %arg2[%c2, %c0_37, %c0_38] : memref<9x32x2xf32, #tpu.memory_space<vmem>>, vector<1x32x2xf32>
    %63 = vector.shape_cast %62 : vector<1x32x2xf32> to vector<32x2xf32>
    %cst_39 = arith.constant dense<0.000000e+00> : vector<32x256xf32>
    %64 = tpu.matmul %63, %61, %cst_39 {dimension_numbers = #tpu.dot_dimension_numbers<[1], [0], [0], [1], [0, 0, 1, 1], [], []>} : vector<32x2xf32>, vector<2x256xf32>, vector<32x256xf32> -> vector<32x256xf32>
    %65 = arith.addf %59, %64 : vector<32x256xf32>
    %c0_40 = arith.constant 0 : index
    %c127 = arith.constant 127 : index
    %66 = vector.load %arg10[%c0_40, %c127] : memref<2x512xf32, #tpu.memory_space<vmem>>, vector<2x256xf32>
    %67 = arith.mulf %66, %36 : vector<2x256xf32>
    %c3 = arith.constant 3 : index
    %c0_41 = arith.constant 0 : index
    %c0_42 = arith.constant 0 : index
    %68 = vector.load %arg2[%c3, %c0_41, %c0_42] : memref<9x32x2xf32, #tpu.memory_space<vmem>>, vector<1x32x2xf32>
    %69 = vector.shape_cast %68 : vector<1x32x2xf32> to vector<32x2xf32>
    %cst_43 = arith.constant dense<0.000000e+00> : vector<32x256xf32>
    %70 = tpu.matmul %69, %67, %cst_43 {dimension_numbers = #tpu.dot_dimension_numbers<[1], [0], [0], [1], [0, 0, 1, 1], [], []>} : vector<32x2xf32>, vector<2x256xf32>, vector<32x256xf32> -> vector<32x256xf32>
    %71 = arith.addf %65, %70 : vector<32x256xf32>
    %c4 = arith.constant 4 : index
    %c0_44 = arith.constant 0 : index
    %c0_45 = arith.constant 0 : index
    %72 = vector.load %arg2[%c4, %c0_44, %c0_45] : memref<9x32x2xf32, #tpu.memory_space<vmem>>, vector<1x32x2xf32>
    %73 = vector.shape_cast %72 : vector<1x32x2xf32> to vector<32x2xf32>
    %cst_46 = arith.constant dense<0.000000e+00> : vector<32x256xf32>
    %74 = tpu.matmul %73, %46, %cst_46 {dimension_numbers = #tpu.dot_dimension_numbers<[1], [0], [0], [1], [0, 0, 1, 1], [], []>} : vector<32x2xf32>, vector<2x256xf32>, vector<32x256xf32> -> vector<32x256xf32>
    %75 = arith.addf %71, %74 : vector<32x256xf32>
    %c0_47 = arith.constant 0 : index
    %c129 = arith.constant 129 : index
    %76 = vector.load %arg10[%c0_47, %c129] : memref<2x512xf32, #tpu.memory_space<vmem>>, vector<2x256xf32>
    %77 = arith.mulf %76, %38 : vector<2x256xf32>
    %c5 = arith.constant 5 : index
    %c0_48 = arith.constant 0 : index
    %c0_49 = arith.constant 0 : index
    %78 = vector.load %arg2[%c5, %c0_48, %c0_49] : memref<9x32x2xf32, #tpu.memory_space<vmem>>, vector<1x32x2xf32>
    %79 = vector.shape_cast %78 : vector<1x32x2xf32> to vector<32x2xf32>
    %cst_50 = arith.constant dense<0.000000e+00> : vector<32x256xf32>
    %80 = tpu.matmul %79, %77, %cst_50 {dimension_numbers = #tpu.dot_dimension_numbers<[1], [0], [0], [1], [0, 0, 1, 1], [], []>} : vector<32x2xf32>, vector<2x256xf32>, vector<32x256xf32> -> vector<32x256xf32>
    %81 = arith.addf %75, %80 : vector<32x256xf32>
    %c0_51 = arith.constant 0 : index
    %c143 = arith.constant 143 : index
    %82 = vector.load %arg10[%c0_51, %c143] : memref<2x512xf32, #tpu.memory_space<vmem>>, vector<2x256xf32>
    %83 = arith.mulf %82, %36 : vector<2x256xf32>
    %c6 = arith.constant 6 : index
    %c0_52 = arith.constant 0 : index
    %c0_53 = arith.constant 0 : index
    %84 = vector.load %arg2[%c6, %c0_52, %c0_53] : memref<9x32x2xf32, #tpu.memory_space<vmem>>, vector<1x32x2xf32>
    %85 = vector.shape_cast %84 : vector<1x32x2xf32> to vector<32x2xf32>
    %cst_54 = arith.constant dense<0.000000e+00> : vector<32x256xf32>
    %86 = tpu.matmul %85, %83, %cst_54 {dimension_numbers = #tpu.dot_dimension_numbers<[1], [0], [0], [1], [0, 0, 1, 1], [], []>} : vector<32x2xf32>, vector<2x256xf32>, vector<32x256xf32> -> vector<32x256xf32>
    %87 = arith.addf %81, %86 : vector<32x256xf32>
    %c0_55 = arith.constant 0 : index
    %c144 = arith.constant 144 : index
    %88 = vector.load %arg10[%c0_55, %c144] : memref<2x512xf32, #tpu.memory_space<vmem>>, vector<2x256xf32>
    %c7 = arith.constant 7 : index
    %c0_56 = arith.constant 0 : index
    %c0_57 = arith.constant 0 : index
    %89 = vector.load %arg2[%c7, %c0_56, %c0_57] : memref<9x32x2xf32, #tpu.memory_space<vmem>>, vector<1x32x2xf32>
    %90 = vector.shape_cast %89 : vector<1x32x2xf32> to vector<32x2xf32>
    %cst_58 = arith.constant dense<0.000000e+00> : vector<32x256xf32>
    %91 = tpu.matmul %90, %88, %cst_58 {dimension_numbers = #tpu.dot_dimension_numbers<[1], [0], [0], [1], [0, 0, 1, 1], [], []>} : vector<32x2xf32>, vector<2x256xf32>, vector<32x256xf32> -> vector<32x256xf32>
    %92 = arith.addf %87, %91 : vector<32x256xf32>
    %c0_59 = arith.constant 0 : index
    %c145 = arith.constant 145 : index
    %93 = vector.load %arg10[%c0_59, %c145] : memref<2x512xf32, #tpu.memory_space<vmem>>, vector<2x256xf32>
    %94 = arith.mulf %93, %38 : vector<2x256xf32>
    %c8 = arith.constant 8 : index
    %c0_60 = arith.constant 0 : index
    %c0_61 = arith.constant 0 : index
    %95 = vector.load %arg2[%c8, %c0_60, %c0_61] : memref<9x32x2xf32, #tpu.memory_space<vmem>>, vector<1x32x2xf32>
    %96 = vector.shape_cast %95 : vector<1x32x2xf32> to vector<32x2xf32>
    %cst_62 = arith.constant dense<0.000000e+00> : vector<32x256xf32>
    %97 = tpu.matmul %96, %94, %cst_62 {dimension_numbers = #tpu.dot_dimension_numbers<[1], [0], [0], [1], [0, 0, 1, 1], [], []>} : vector<32x2xf32>, vector<2x256xf32>, vector<32x256xf32> -> vector<32x256xf32>
    %98 = arith.addf %92, %97 : vector<32x256xf32>
    %c0_63 = arith.constant 0 : index
    %c0_64 = arith.constant 0 : index
    %99 = vector.load %arg3[%c0_63, %c0_64] : memref<32x1xf32, #tpu.memory_space<vmem>>, vector<32x1xf32>
    %100 = vector.broadcast %99 : vector<32x1xf32> to vector<32x256xf32>
    %101 = arith.addf %98, %100 : vector<32x256xf32>
    %cst_65 = arith.constant 0.000000e+00 : f32
    %102 = vector.broadcast %cst_65 : f32 to vector<32x256xf32>
    %103 = arith.maximumf %101, %102 : vector<32x256xf32>
    %c0_66 = arith.constant 0 : index
    %c0_67 = arith.constant 0 : index
    %104 = vector.load %arg4[%c0_66, %c0_67] : memref<32x32xf32, #tpu.memory_space<vmem>>, vector<32x32xf32>
    %cst_68 = arith.constant dense<0.000000e+00> : vector<32x256xf32>
    %105 = tpu.matmul %104, %103, %cst_68 {dimension_numbers = #tpu.dot_dimension_numbers<[1], [0], [0], [1], [0, 0, 1, 1], [], []>} : vector<32x32xf32>, vector<32x256xf32>, vector<32x256xf32> -> vector<32x256xf32>
    %c0_69 = arith.constant 0 : index
    %c0_70 = arith.constant 0 : index
    %106 = vector.load %arg5[%c0_69, %c0_70] : memref<32x1xf32, #tpu.memory_space<vmem>>, vector<32x1xf32>
    %107 = vector.broadcast %106 : vector<32x1xf32> to vector<32x256xf32>
    %108 = arith.addf %105, %107 : vector<32x256xf32>
    %cst_71 = arith.constant 0.000000e+00 : f32
    %109 = vector.broadcast %cst_71 : f32 to vector<32x256xf32>
    %110 = arith.maximumf %108, %109 : vector<32x256xf32>
    %c0_72 = arith.constant 0 : index
    %c128_73 = arith.constant 128 : index
    %111 = vector.load %arg11[%c0_72, %c128_73] : memref<32x512xf32, #tpu.memory_space<vmem>>, vector<32x256xf32>
    tpu.vector_store %arg11[%c0_72, %c128_73], %110 {strides = array<i32>} : memref<32x512xf32, #tpu.memory_space<vmem>>, vector<32x256xf32>,
    %cst_74 = arith.constant 0.000000e+00 : f32
    %112 = vector.broadcast %cst_74 : f32 to vector<4x256xf32>
    %cst_75 = arith.constant 0.000000e+00 : f32
    %113 = vector.broadcast %cst_75 : f32 to vector<4x256xf32>
    %cst_76 = arith.constant 0.000000e+00 : f32
    %114 = vector.broadcast %cst_76 : f32 to vector<4x256xf32>
    %c0_77 = arith.constant 0 : index
    %c111_78 = arith.constant 111 : index
    %115 = vector.load %arg11[%c0_77, %c111_78] : memref<32x512xf32, #tpu.memory_space<vmem>>, vector<32x256xf32>
    %c0_79 = arith.constant 0 : index
    %c0_80 = arith.constant 0 : index
    %c0_81 = arith.constant 0 : index
    %116 = vector.load %arg6[%c0_79, %c0_80, %c0_81] : memref<9x4x32xf32, #tpu.memory_space<vmem>>, vector<1x4x32xf32>
    %117 = vector.shape_cast %116 : vector<1x4x32xf32> to vector<4x32xf32>
    %cst_82 = arith.constant dense<0.000000e+00> : vector<4x256xf32>
    %118 = tpu.matmul %117, %115, %cst_82 {dimension_numbers = #tpu.dot_dimension_numbers<[1], [0], [0], [1], [0, 0, 1, 1], [], []>} : vector<4x32xf32>, vector<32x256xf32>, vector<4x256xf32> -> vector<4x256xf32>
    %119 = arith.addf %113, %118 : vector<4x256xf32>
    %c0_83 = arith.constant 0 : index
    %c112_84 = arith.constant 112 : index
    %120 = vector.load %arg11[%c0_83, %c112_84] : memref<32x512xf32, #tpu.memory_space<vmem>>, vector<32x256xf32>
    %c1_85 = arith.constant 1 : index
    %c0_86 = arith.constant 0 : index
    %c0_87 = arith.constant 0 : index
    %121 = vector.load %arg6[%c1_85, %c0_86, %c0_87] : memref<9x4x32xf32, #tpu.memory_space<vmem>>, vector<1x4x32xf32>
    %122 = vector.shape_cast %121 : vector<1x4x32xf32> to vector<4x32xf32>
    %cst_88 = arith.constant dense<0.000000e+00> : vector<4x256xf32>
    %123 = tpu.matmul %122, %120, %cst_88 {dimension_numbers = #tpu.dot_dimension_numbers<[1], [0], [0], [1], [0, 0, 1, 1], [], []>} : vector<4x32xf32>, vector<32x256xf32>, vector<4x256xf32> -> vector<4x256xf32>
    %124 = arith.addf %112, %123 : vector<4x256xf32>
    %c0_89 = arith.constant 0 : index
    %c113_90 = arith.constant 113 : index
    %125 = vector.load %arg11[%c0_89, %c113_90] : memref<32x512xf32, #tpu.memory_space<vmem>>, vector<32x256xf32>
    %c2_91 = arith.constant 2 : index
    %c0_92 = arith.constant 0 : index
    %c0_93 = arith.constant 0 : index
    %126 = vector.load %arg6[%c2_91, %c0_92, %c0_93] : memref<9x4x32xf32, #tpu.memory_space<vmem>>, vector<1x4x32xf32>
    %127 = vector.shape_cast %126 : vector<1x4x32xf32> to vector<4x32xf32>
    %cst_94 = arith.constant dense<0.000000e+00> : vector<4x256xf32>
    %128 = tpu.matmul %127, %125, %cst_94 {dimension_numbers = #tpu.dot_dimension_numbers<[1], [0], [0], [1], [0, 0, 1, 1], [], []>} : vector<4x32xf32>, vector<32x256xf32>, vector<4x256xf32> -> vector<4x256xf32>
    %129 = arith.addf %114, %128 : vector<4x256xf32>
    %c0_95 = arith.constant 0 : index
    %c127_96 = arith.constant 127 : index
    %130 = vector.load %arg11[%c0_95, %c127_96] : memref<32x512xf32, #tpu.memory_space<vmem>>, vector<32x256xf32>
    %c3_97 = arith.constant 3 : index
    %c0_98 = arith.constant 0 : index
    %c0_99 = arith.constant 0 : index
    %131 = vector.load %arg6[%c3_97, %c0_98, %c0_99] : memref<9x4x32xf32, #tpu.memory_space<vmem>>, vector<1x4x32xf32>
    %132 = vector.shape_cast %131 : vector<1x4x32xf32> to vector<4x32xf32>
    %cst_100 = arith.constant dense<0.000000e+00> : vector<4x256xf32>
    %133 = tpu.matmul %132, %130, %cst_100 {dimension_numbers = #tpu.dot_dimension_numbers<[1], [0], [0], [1], [0, 0, 1, 1], [], []>} : vector<4x32xf32>, vector<32x256xf32>, vector<4x256xf32> -> vector<4x256xf32>
    %134 = arith.addf %119, %133 : vector<4x256xf32>
    %c4_101 = arith.constant 4 : index
    %c0_102 = arith.constant 0 : index
    %c0_103 = arith.constant 0 : index
    %135 = vector.load %arg6[%c4_101, %c0_102, %c0_103] : memref<9x4x32xf32, #tpu.memory_space<vmem>>, vector<1x4x32xf32>
    %136 = vector.shape_cast %135 : vector<1x4x32xf32> to vector<4x32xf32>
    %cst_104 = arith.constant dense<0.000000e+00> : vector<4x256xf32>
    %137 = tpu.matmul %136, %110, %cst_104 {dimension_numbers = #tpu.dot_dimension_numbers<[1], [0], [0], [1], [0, 0, 1, 1], [], []>} : vector<4x32xf32>, vector<32x256xf32>, vector<4x256xf32> -> vector<4x256xf32>
    %138 = arith.addf %124, %137 : vector<4x256xf32>
    %c0_105 = arith.constant 0 : index
    %c129_106 = arith.constant 129 : index
    %139 = vector.load %arg11[%c0_105, %c129_106] : memref<32x512xf32, #tpu.memory_space<vmem>>, vector<32x256xf32>
    %c5_107 = arith.constant 5 : index
    %c0_108 = arith.constant 0 : index
    %c0_109 = arith.constant 0 : index
    %140 = vector.load %arg6[%c5_107, %c0_108, %c0_109] : memref<9x4x32xf32, #tpu.memory_space<vmem>>, vector<1x4x32xf32>
    %141 = vector.shape_cast %140 : vector<1x4x32xf32> to vector<4x32xf32>
    %cst_110 = arith.constant dense<0.000000e+00> : vector<4x256xf32>
    %142 = tpu.matmul %141, %139, %cst_110 {dimension_numbers = #tpu.dot_dimension_numbers<[1], [0], [0], [1], [0, 0, 1, 1], [], []>} : vector<4x32xf32>, vector<32x256xf32>, vector<4x256xf32> -> vector<4x256xf32>
    %143 = arith.addf %129, %142 : vector<4x256xf32>
    %c0_111 = arith.constant 0 : index
    %c143_112 = arith.constant 143 : index
    %144 = vector.load %arg11[%c0_111, %c143_112] : memref<32x512xf32, #tpu.memory_space<vmem>>, vector<32x256xf32>
    %c6_113 = arith.constant 6 : index
    %c0_114 = arith.constant 0 : index
    %c0_115 = arith.constant 0 : index
    %145 = vector.load %arg6[%c6_113, %c0_114, %c0_115] : memref<9x4x32xf32, #tpu.memory_space<vmem>>, vector<1x4x32xf32>
    %146 = vector.shape_cast %145 : vector<1x4x32xf32> to vector<4x32xf32>
    %cst_116 = arith.constant dense<0.000000e+00> : vector<4x256xf32>
    %147 = tpu.matmul %146, %144, %cst_116 {dimension_numbers = #tpu.dot_dimension_numbers<[1], [0], [0], [1], [0, 0, 1, 1], [], []>} : vector<4x32xf32>, vector<32x256xf32>, vector<4x256xf32> -> vector<4x256xf32>
    %148 = arith.addf %134, %147 : vector<4x256xf32>
    %c0_117 = arith.constant 0 : index
    %c144_118 = arith.constant 144 : index
    %149 = vector.load %arg11[%c0_117, %c144_118] : memref<32x512xf32, #tpu.memory_space<vmem>>, vector<32x256xf32>
    %c7_119 = arith.constant 7 : index
    %c0_120 = arith.constant 0 : index
    %c0_121 = arith.constant 0 : index
    %150 = vector.load %arg6[%c7_119, %c0_120, %c0_121] : memref<9x4x32xf32, #tpu.memory_space<vmem>>, vector<1x4x32xf32>
    %151 = vector.shape_cast %150 : vector<1x4x32xf32> to vector<4x32xf32>
    %cst_122 = arith.constant dense<0.000000e+00> : vector<4x256xf32>
    %152 = tpu.matmul %151, %149, %cst_122 {dimension_numbers = #tpu.dot_dimension_numbers<[1], [0], [0], [1], [0, 0, 1, 1], [], []>} : vector<4x32xf32>, vector<32x256xf32>, vector<4x256xf32> -> vector<4x256xf32>
    %153 = arith.addf %138, %152 : vector<4x256xf32>
    %c0_123 = arith.constant 0 : index
    %c145_124 = arith.constant 145 : index
    %154 = vector.load %arg11[%c0_123, %c145_124] : memref<32x512xf32, #tpu.memory_space<vmem>>, vector<32x256xf32>
    %c8_125 = arith.constant 8 : index
    %c0_126 = arith.constant 0 : index
    %c0_127 = arith.constant 0 : index
    %155 = vector.load %arg6[%c8_125, %c0_126, %c0_127] : memref<9x4x32xf32, #tpu.memory_space<vmem>>, vector<1x4x32xf32>
    %156 = vector.shape_cast %155 : vector<1x4x32xf32> to vector<4x32xf32>
    %cst_128 = arith.constant dense<0.000000e+00> : vector<4x256xf32>
    %157 = tpu.matmul %156, %154, %cst_128 {dimension_numbers = #tpu.dot_dimension_numbers<[1], [0], [0], [1], [0, 0, 1, 1], [], []>} : vector<4x32xf32>, vector<32x256xf32>, vector<4x256xf32> -> vector<4x256xf32>
    %158 = arith.addf %143, %157 : vector<4x256xf32>
    %159 = arith.mulf %148, %40 : vector<4x256xf32>
    %160 = arith.addf %153, %159 : vector<4x256xf32>
    %161 = arith.mulf %158, %42 : vector<4x256xf32>
    %162 = arith.addf %160, %161 : vector<4x256xf32>
    %c0_129 = arith.constant 0 : index
    %c0_130 = arith.constant 0 : index
    %163 = vector.load %arg7[%c0_129, %c0_130] : memref<4x1xf32, #tpu.memory_space<vmem>>, vector<4x1xf32>
    %164 = vector.broadcast %163 : vector<4x1xf32> to vector<4x256xf32>
    %165 = arith.addf %162, %164 : vector<4x256xf32>
    %166 = vector.extract_strided_slice %165 {offsets = [0, 0], sizes = [2, 256], strides = [1, 1]} : vector<4x256xf32> to vector<2x256xf32>
    %167 = vector.extract_strided_slice %165 {offsets = [2, 0], sizes = [2, 256], strides = [1, 1]} : vector<4x256xf32> to vector<2x256xf32>
    %cst_131 = arith.constant 0.000000e+00 : f32
    %168 = vector.broadcast %cst_131 : f32 to vector<2x256xf32>
    %169 = arith.subf %168, %167 : vector<2x256xf32>
    %170 = math.exp %169 : vector<2x256xf32>
    %cst_132 = arith.constant 1.000000e+00 : f32
    %171 = vector.broadcast %cst_132 : f32 to vector<2x256xf32>
    %172 = arith.addf %171, %170 : vector<2x256xf32>
    %cst_133 = arith.constant 1.000000e+00 : f32
    %173 = vector.broadcast %cst_133 : f32 to vector<2x256xf32>
    %174 = arith.divf %173, %172 : vector<2x256xf32>
    %175 = arith.addf %44, %166 : vector<2x256xf32>
    %176 = arith.mulf %175, %174 : vector<2x256xf32>
    %c0_134 = arith.constant 0 : index
    %c0_135 = arith.constant 0 : index
    %c0_136 = arith.constant 0 : index
    %c0_137 = arith.constant 0 : index
    %177 = vector.load %arg8[%c0_134, %c0_135, %c0_136, %c0_137] : memref<2x1x2x256xf32, #tpu.memory_space<vmem>>, vector<1x1x2x256xf32>
    %178 = vector.shape_cast %177 : vector<1x1x2x256xf32> to vector<2x256xf32>
    %179 = vector.shape_cast %176 : vector<2x256xf32> to vector<1x1x2x256xf32>
    tpu.vector_store %arg8[%c0_134, %c0_135, %c0_136, %c0_137], %179 {strides = array<i32>} : memref<2x1x2x256xf32, #tpu.memory_space<vmem>>, vector<1x1x2x256xf32>,
    %180 = math.log %172 : vector<2x256xf32>
    %cst_138 = arith.constant dense<0.000000e+00> : vector<2xf32>
    %181 = vector.multi_reduction <add>, %180, %cst_138 [1] : vector<2x256xf32> to vector<2xf32>
    %182 = vector.shape_cast %181 : vector<2xf32> to vector<2x1xf32>
    %cst_139 = arith.constant dense<0.000000e+00> : vector<1xf32>
    %183 = vector.multi_reduction <add>, %182, %cst_139 [0] : vector<2x1xf32> to vector<1xf32>
    %184 = vector.shape_cast %183 : vector<1xf32> to vector<1x1xf32>
    %cst_140 = arith.constant 0.000000e+00 : f32
    %185 = vector.broadcast %cst_140 : f32 to vector<1x1xf32>
    %186 = arith.subf %185, %184 : vector<1x1xf32>
    %187 = vector.shape_cast %186 : vector<1x1xf32> to vector<1x1xf32>
    %188 = vector.broadcast %187 : vector<1x1xf32> to vector<1x128xf32>
    %c0_141 = arith.constant 0 : index
    %c0_142 = arith.constant 0 : index
    %c0_143 = arith.constant 0 : index
    %189 = vector.load %arg9[%c0_141, %c0_142, %c0_143] : memref<2x1x128xf32, #tpu.memory_space<vmem>>, vector<1x1x128xf32>
    %190 = vector.shape_cast %189 : vector<1x1x128xf32> to vector<1x128xf32>
    %191 = vector.shape_cast %188 : vector<1x128xf32> to vector<1x1x128xf32>
    tpu.vector_store %arg9[%c0_141, %c0_142, %c0_143], %191 {strides = array<i32>} : memref<2x1x128xf32, #tpu.memory_space<vmem>>, vector<1x1x128xf32>,
    %c1_144 = arith.constant 1 : index
    %c0_145 = arith.constant 0 : index
    %c0_146 = arith.constant 0 : index
    %c0_147 = arith.constant 0 : index
    %192 = vector.load %arg1[%c1_144, %c0_145, %c0_146, %c0_147] : memref<2x2x2x256xf32, #tpu.memory_space<vmem>>, vector<1x1x2x256xf32>
    %193 = vector.shape_cast %192 : vector<1x1x2x256xf32> to vector<2x256xf32>
    %c1_148 = arith.constant 1 : index
    %c1_149 = arith.constant 1 : index
    %c0_150 = arith.constant 0 : index
    %c0_151 = arith.constant 0 : index
    %194 = vector.load %arg1[%c1_148, %c1_149, %c0_150, %c0_151] : memref<2x2x2x256xf32, #tpu.memory_space<vmem>>, vector<1x1x2x256xf32>
    %195 = vector.shape_cast %194 : vector<1x1x2x256xf32> to vector<2x256xf32>
    %c0_152 = arith.constant 0 : index
    %c128_153 = arith.constant 128 : index
    %196 = vector.load %arg10[%c0_152, %c128_153] : memref<2x512xf32, #tpu.memory_space<vmem>>, vector<2x256xf32>
    tpu.vector_store %arg10[%c0_152, %c128_153], %195 {strides = array<i32>} : memref<2x512xf32, #tpu.memory_space<vmem>>, vector<2x256xf32>,
    %cst_154 = arith.constant 0.000000e+00 : f32
    %197 = vector.broadcast %cst_154 : f32 to vector<32x256xf32>
    %c0_155 = arith.constant 0 : index
    %c111_156 = arith.constant 111 : index
    %198 = vector.load %arg10[%c0_155, %c111_156] : memref<2x512xf32, #tpu.memory_space<vmem>>, vector<2x256xf32>
    %199 = arith.mulf %198, %36 : vector<2x256xf32>
    %c0_157 = arith.constant 0 : index
    %c0_158 = arith.constant 0 : index
    %c0_159 = arith.constant 0 : index
    %200 = vector.load %arg2[%c0_157, %c0_158, %c0_159] : memref<9x32x2xf32, #tpu.memory_space<vmem>>, vector<1x32x2xf32>
    %201 = vector.shape_cast %200 : vector<1x32x2xf32> to vector<32x2xf32>
    %cst_160 = arith.constant dense<0.000000e+00> : vector<32x256xf32>
    %202 = tpu.matmul %201, %199, %cst_160 {dimension_numbers = #tpu.dot_dimension_numbers<[1], [0], [0], [1], [0, 0, 1, 1], [], []>} : vector<32x2xf32>, vector<2x256xf32>, vector<32x256xf32> -> vector<32x256xf32>
    %203 = arith.addf %197, %202 : vector<32x256xf32>
    %c0_161 = arith.constant 0 : index
    %c112_162 = arith.constant 112 : index
    %204 = vector.load %arg10[%c0_161, %c112_162] : memref<2x512xf32, #tpu.memory_space<vmem>>, vector<2x256xf32>
    %c1_163 = arith.constant 1 : index
    %c0_164 = arith.constant 0 : index
    %c0_165 = arith.constant 0 : index
    %205 = vector.load %arg2[%c1_163, %c0_164, %c0_165] : memref<9x32x2xf32, #tpu.memory_space<vmem>>, vector<1x32x2xf32>
    %206 = vector.shape_cast %205 : vector<1x32x2xf32> to vector<32x2xf32>
    %cst_166 = arith.constant dense<0.000000e+00> : vector<32x256xf32>
    %207 = tpu.matmul %206, %204, %cst_166 {dimension_numbers = #tpu.dot_dimension_numbers<[1], [0], [0], [1], [0, 0, 1, 1], [], []>} : vector<32x2xf32>, vector<2x256xf32>, vector<32x256xf32> -> vector<32x256xf32>
    %208 = arith.addf %203, %207 : vector<32x256xf32>
    %c0_167 = arith.constant 0 : index
    %c113_168 = arith.constant 113 : index
    %209 = vector.load %arg10[%c0_167, %c113_168] : memref<2x512xf32, #tpu.memory_space<vmem>>, vector<2x256xf32>
    %210 = arith.mulf %209, %38 : vector<2x256xf32>
    %c2_169 = arith.constant 2 : index
    %c0_170 = arith.constant 0 : index
    %c0_171 = arith.constant 0 : index
    %211 = vector.load %arg2[%c2_169, %c0_170, %c0_171] : memref<9x32x2xf32, #tpu.memory_space<vmem>>, vector<1x32x2xf32>
    %212 = vector.shape_cast %211 : vector<1x32x2xf32> to vector<32x2xf32>
    %cst_172 = arith.constant dense<0.000000e+00> : vector<32x256xf32>
    %213 = tpu.matmul %212, %210, %cst_172 {dimension_numbers = #tpu.dot_dimension_numbers<[1], [0], [0], [1], [0, 0, 1, 1], [], []>} : vector<32x2xf32>, vector<2x256xf32>, vector<32x256xf32> -> vector<32x256xf32>
    %214 = arith.addf %208, %213 : vector<32x256xf32>
    %c0_173 = arith.constant 0 : index
    %c127_174 = arith.constant 127 : index
    %215 = vector.load %arg10[%c0_173, %c127_174] : memref<2x512xf32, #tpu.memory_space<vmem>>, vector<2x256xf32>
    %216 = arith.mulf %215, %36 : vector<2x256xf32>
    %c3_175 = arith.constant 3 : index
    %c0_176 = arith.constant 0 : index
    %c0_177 = arith.constant 0 : index
    %217 = vector.load %arg2[%c3_175, %c0_176, %c0_177] : memref<9x32x2xf32, #tpu.memory_space<vmem>>, vector<1x32x2xf32>
    %218 = vector.shape_cast %217 : vector<1x32x2xf32> to vector<32x2xf32>
    %cst_178 = arith.constant dense<0.000000e+00> : vector<32x256xf32>
    %219 = tpu.matmul %218, %216, %cst_178 {dimension_numbers = #tpu.dot_dimension_numbers<[1], [0], [0], [1], [0, 0, 1, 1], [], []>} : vector<32x2xf32>, vector<2x256xf32>, vector<32x256xf32> -> vector<32x256xf32>
    %220 = arith.addf %214, %219 : vector<32x256xf32>
    %c4_179 = arith.constant 4 : index
    %c0_180 = arith.constant 0 : index
    %c0_181 = arith.constant 0 : index
    %221 = vector.load %arg2[%c4_179, %c0_180, %c0_181] : memref<9x32x2xf32, #tpu.memory_space<vmem>>, vector<1x32x2xf32>
    %222 = vector.shape_cast %221 : vector<1x32x2xf32> to vector<32x2xf32>
    %cst_182 = arith.constant dense<0.000000e+00> : vector<32x256xf32>
    %223 = tpu.matmul %222, %195, %cst_182 {dimension_numbers = #tpu.dot_dimension_numbers<[1], [0], [0], [1], [0, 0, 1, 1], [], []>} : vector<32x2xf32>, vector<2x256xf32>, vector<32x256xf32> -> vector<32x256xf32>
    %224 = arith.addf %220, %223 : vector<32x256xf32>
    %c0_183 = arith.constant 0 : index
    %c129_184 = arith.constant 129 : index
    %225 = vector.load %arg10[%c0_183, %c129_184] : memref<2x512xf32, #tpu.memory_space<vmem>>, vector<2x256xf32>
    %226 = arith.mulf %225, %38 : vector<2x256xf32>
    %c5_185 = arith.constant 5 : index
    %c0_186 = arith.constant 0 : index
    %c0_187 = arith.constant 0 : index
    %227 = vector.load %arg2[%c5_185, %c0_186, %c0_187] : memref<9x32x2xf32, #tpu.memory_space<vmem>>, vector<1x32x2xf32>
    %228 = vector.shape_cast %227 : vector<1x32x2xf32> to vector<32x2xf32>
    %cst_188 = arith.constant dense<0.000000e+00> : vector<32x256xf32>
    %229 = tpu.matmul %228, %226, %cst_188 {dimension_numbers = #tpu.dot_dimension_numbers<[1], [0], [0], [1], [0, 0, 1, 1], [], []>} : vector<32x2xf32>, vector<2x256xf32>, vector<32x256xf32> -> vector<32x256xf32>
    %230 = arith.addf %224, %229 : vector<32x256xf32>
    %c0_189 = arith.constant 0 : index
    %c143_190 = arith.constant 143 : index
    %231 = vector.load %arg10[%c0_189, %c143_190] : memref<2x512xf32, #tpu.memory_space<vmem>>, vector<2x256xf32>
    %232 = arith.mulf %231, %36 : vector<2x256xf32>
    %c6_191 = arith.constant 6 : index
    %c0_192 = arith.constant 0 : index
    %c0_193 = arith.constant 0 : index
    %233 = vector.load %arg2[%c6_191, %c0_192, %c0_193] : memref<9x32x2xf32, #tpu.memory_space<vmem>>, vector<1x32x2xf32>
    %234 = vector.shape_cast %233 : vector<1x32x2xf32> to vector<32x2xf32>
    %cst_194 = arith.constant dense<0.000000e+00> : vector<32x256xf32>
    %235 = tpu.matmul %234, %232, %cst_194 {dimension_numbers = #tpu.dot_dimension_numbers<[1], [0], [0], [1], [0, 0, 1, 1], [], []>} : vector<32x2xf32>, vector<2x256xf32>, vector<32x256xf32> -> vector<32x256xf32>
    %236 = arith.addf %230, %235 : vector<32x256xf32>
    %c0_195 = arith.constant 0 : index
    %c144_196 = arith.constant 144 : index
    %237 = vector.load %arg10[%c0_195, %c144_196] : memref<2x512xf32, #tpu.memory_space<vmem>>, vector<2x256xf32>
    %c7_197 = arith.constant 7 : index
    %c0_198 = arith.constant 0 : index
    %c0_199 = arith.constant 0 : index
    %238 = vector.load %arg2[%c7_197, %c0_198, %c0_199] : memref<9x32x2xf32, #tpu.memory_space<vmem>>, vector<1x32x2xf32>
    %239 = vector.shape_cast %238 : vector<1x32x2xf32> to vector<32x2xf32>
    %cst_200 = arith.constant dense<0.000000e+00> : vector<32x256xf32>
    %240 = tpu.matmul %239, %237, %cst_200 {dimension_numbers = #tpu.dot_dimension_numbers<[1], [0], [0], [1], [0, 0, 1, 1], [], []>} : vector<32x2xf32>, vector<2x256xf32>, vector<32x256xf32> -> vector<32x256xf32>
    %241 = arith.addf %236, %240 : vector<32x256xf32>
    %c0_201 = arith.constant 0 : index
    %c145_202 = arith.constant 145 : index
    %242 = vector.load %arg10[%c0_201, %c145_202] : memref<2x512xf32, #tpu.memory_space<vmem>>, vector<2x256xf32>
    %243 = arith.mulf %242, %38 : vector<2x256xf32>
    %c8_203 = arith.constant 8 : index
    %c0_204 = arith.constant 0 : index
    %c0_205 = arith.constant 0 : index
    %244 = vector.load %arg2[%c8_203, %c0_204, %c0_205] : memref<9x32x2xf32, #tpu.memory_space<vmem>>, vector<1x32x2xf32>
    %245 = vector.shape_cast %244 : vector<1x32x2xf32> to vector<32x2xf32>
    %cst_206 = arith.constant dense<0.000000e+00> : vector<32x256xf32>
    %246 = tpu.matmul %245, %243, %cst_206 {dimension_numbers = #tpu.dot_dimension_numbers<[1], [0], [0], [1], [0, 0, 1, 1], [], []>} : vector<32x2xf32>, vector<2x256xf32>, vector<32x256xf32> -> vector<32x256xf32>
    %247 = arith.addf %241, %246 : vector<32x256xf32>
    %c0_207 = arith.constant 0 : index
    %c0_208 = arith.constant 0 : index
    %248 = vector.load %arg3[%c0_207, %c0_208] : memref<32x1xf32, #tpu.memory_space<vmem>>, vector<32x1xf32>
    %249 = vector.broadcast %248 : vector<32x1xf32> to vector<32x256xf32>
    %250 = arith.addf %247, %249 : vector<32x256xf32>
    %cst_209 = arith.constant 0.000000e+00 : f32
    %251 = vector.broadcast %cst_209 : f32 to vector<32x256xf32>
    %252 = arith.maximumf %250, %251 : vector<32x256xf32>
    %c0_210 = arith.constant 0 : index
    %c0_211 = arith.constant 0 : index
    %253 = vector.load %arg4[%c0_210, %c0_211] : memref<32x32xf32, #tpu.memory_space<vmem>>, vector<32x32xf32>
    %cst_212 = arith.constant dense<0.000000e+00> : vector<32x256xf32>
    %254 = tpu.matmul %253, %252, %cst_212 {dimension_numbers = #tpu.dot_dimension_numbers<[1], [0], [0], [1], [0, 0, 1, 1], [], []>} : vector<32x32xf32>, vector<32x256xf32>, vector<32x256xf32> -> vector<32x256xf32>
    %c0_213 = arith.constant 0 : index
    %c0_214 = arith.constant 0 : index
    %255 = vector.load %arg5[%c0_213, %c0_214] : memref<32x1xf32, #tpu.memory_space<vmem>>, vector<32x1xf32>
    %256 = vector.broadcast %255 : vector<32x1xf32> to vector<32x256xf32>
    %257 = arith.addf %254, %256 : vector<32x256xf32>
    %cst_215 = arith.constant 0.000000e+00 : f32
    %258 = vector.broadcast %cst_215 : f32 to vector<32x256xf32>
    %259 = arith.maximumf %257, %258 : vector<32x256xf32>
    %c0_216 = arith.constant 0 : index
    %c128_217 = arith.constant 128 : index
    %260 = vector.load %arg11[%c0_216, %c128_217] : memref<32x512xf32, #tpu.memory_space<vmem>>, vector<32x256xf32>
    tpu.vector_store %arg11[%c0_216, %c128_217], %259 {strides = array<i32>} : memref<32x512xf32, #tpu.memory_space<vmem>>, vector<32x256xf32>,
    %cst_218 = arith.constant 0.000000e+00 : f32
    %261 = vector.broadcast %cst_218 : f32 to vector<4x256xf32>
    %cst_219 = arith.constant 0.000000e+00 : f32
    %262 = vector.broadcast %cst_219 : f32 to vector<4x256xf32>
    %cst_220 = arith.constant 0.000000e+00 : f32
    %263 = vector.broadcast %cst_220 : f32 to vector<4x256xf32>
    %c0_221 = arith.constant 0 : index
    %c111_222 = arith.constant 111 : index
    %264 = vector.load %arg11[%c0_221, %c111_222] : memref<32x512xf32, #tpu.memory_space<vmem>>, vector<32x256xf32>
    %c0_223 = arith.constant 0 : index
    %c0_224 = arith.constant 0 : index
    %c0_225 = arith.constant 0 : index
    %265 = vector.load %arg6[%c0_223, %c0_224, %c0_225] : memref<9x4x32xf32, #tpu.memory_space<vmem>>, vector<1x4x32xf32>
    %266 = vector.shape_cast %265 : vector<1x4x32xf32> to vector<4x32xf32>
    %cst_226 = arith.constant dense<0.000000e+00> : vector<4x256xf32>
    %267 = tpu.matmul %266, %264, %cst_226 {dimension_numbers = #tpu.dot_dimension_numbers<[1], [0], [0], [1], [0, 0, 1, 1], [], []>} : vector<4x32xf32>, vector<32x256xf32>, vector<4x256xf32> -> vector<4x256xf32>
    %268 = arith.addf %262, %267 : vector<4x256xf32>
    %c0_227 = arith.constant 0 : index
    %c112_228 = arith.constant 112 : index
    %269 = vector.load %arg11[%c0_227, %c112_228] : memref<32x512xf32, #tpu.memory_space<vmem>>, vector<32x256xf32>
    %c1_229 = arith.constant 1 : index
    %c0_230 = arith.constant 0 : index
    %c0_231 = arith.constant 0 : index
    %270 = vector.load %arg6[%c1_229, %c0_230, %c0_231] : memref<9x4x32xf32, #tpu.memory_space<vmem>>, vector<1x4x32xf32>
    %271 = vector.shape_cast %270 : vector<1x4x32xf32> to vector<4x32xf32>
    %cst_232 = arith.constant dense<0.000000e+00> : vector<4x256xf32>
    %272 = tpu.matmul %271, %269, %cst_232 {dimension_numbers = #tpu.dot_dimension_numbers<[1], [0], [0], [1], [0, 0, 1, 1], [], []>} : vector<4x32xf32>, vector<32x256xf32>, vector<4x256xf32> -> vector<4x256xf32>
    %273 = arith.addf %261, %272 : vector<4x256xf32>
    %c0_233 = arith.constant 0 : index
    %c113_234 = arith.constant 113 : index
    %274 = vector.load %arg11[%c0_233, %c113_234] : memref<32x512xf32, #tpu.memory_space<vmem>>, vector<32x256xf32>
    %c2_235 = arith.constant 2 : index
    %c0_236 = arith.constant 0 : index
    %c0_237 = arith.constant 0 : index
    %275 = vector.load %arg6[%c2_235, %c0_236, %c0_237] : memref<9x4x32xf32, #tpu.memory_space<vmem>>, vector<1x4x32xf32>
    %276 = vector.shape_cast %275 : vector<1x4x32xf32> to vector<4x32xf32>
    %cst_238 = arith.constant dense<0.000000e+00> : vector<4x256xf32>
    %277 = tpu.matmul %276, %274, %cst_238 {dimension_numbers = #tpu.dot_dimension_numbers<[1], [0], [0], [1], [0, 0, 1, 1], [], []>} : vector<4x32xf32>, vector<32x256xf32>, vector<4x256xf32> -> vector<4x256xf32>
    %278 = arith.addf %263, %277 : vector<4x256xf32>
    %c0_239 = arith.constant 0 : index
    %c127_240 = arith.constant 127 : index
    %279 = vector.load %arg11[%c0_239, %c127_240] : memref<32x512xf32, #tpu.memory_space<vmem>>, vector<32x256xf32>
    %c3_241 = arith.constant 3 : index
    %c0_242 = arith.constant 0 : index
    %c0_243 = arith.constant 0 : index
    %280 = vector.load %arg6[%c3_241, %c0_242, %c0_243] : memref<9x4x32xf32, #tpu.memory_space<vmem>>, vector<1x4x32xf32>
    %281 = vector.shape_cast %280 : vector<1x4x32xf32> to vector<4x32xf32>
    %cst_244 = arith.constant dense<0.000000e+00> : vector<4x256xf32>
    %282 = tpu.matmul %281, %279, %cst_244 {dimension_numbers = #tpu.dot_dimension_numbers<[1], [0], [0], [1], [0, 0, 1, 1], [], []>} : vector<4x32xf32>, vector<32x256xf32>, vector<4x256xf32> -> vector<4x256xf32>
    %283 = arith.addf %268, %282 : vector<4x256xf32>
    %c4_245 = arith.constant 4 : index
    %c0_246 = arith.constant 0 : index
    %c0_247 = arith.constant 0 : index
    %284 = vector.load %arg6[%c4_245, %c0_246, %c0_247] : memref<9x4x32xf32, #tpu.memory_space<vmem>>, vector<1x4x32xf32>
    %285 = vector.shape_cast %284 : vector<1x4x32xf32> to vector<4x32xf32>
    %cst_248 = arith.constant dense<0.000000e+00> : vector<4x256xf32>
    %286 = tpu.matmul %285, %259, %cst_248 {dimension_numbers = #tpu.dot_dimension_numbers<[1], [0], [0], [1], [0, 0, 1, 1], [], []>} : vector<4x32xf32>, vector<32x256xf32>, vector<4x256xf32> -> vector<4x256xf32>
    %287 = arith.addf %273, %286 : vector<4x256xf32>
    %c0_249 = arith.constant 0 : index
    %c129_250 = arith.constant 129 : index
    %288 = vector.load %arg11[%c0_249, %c129_250] : memref<32x512xf32, #tpu.memory_space<vmem>>, vector<32x256xf32>
    %c5_251 = arith.constant 5 : index
    %c0_252 = arith.constant 0 : index
    %c0_253 = arith.constant 0 : index
    %289 = vector.load %arg6[%c5_251, %c0_252, %c0_253] : memref<9x4x32xf32, #tpu.memory_space<vmem>>, vector<1x4x32xf32>
    %290 = vector.shape_cast %289 : vector<1x4x32xf32> to vector<4x32xf32>
    %cst_254 = arith.constant dense<0.000000e+00> : vector<4x256xf32>
    %291 = tpu.matmul %290, %288, %cst_254 {dimension_numbers = #tpu.dot_dimension_numbers<[1], [0], [0], [1], [0, 0, 1, 1], [], []>} : vector<4x32xf32>, vector<32x256xf32>, vector<4x256xf32> -> vector<4x256xf32>
    %292 = arith.addf %278, %291 : vector<4x256xf32>
    %c0_255 = arith.constant 0 : index
    %c143_256 = arith.constant 143 : index
    %293 = vector.load %arg11[%c0_255, %c143_256] : memref<32x512xf32, #tpu.memory_space<vmem>>, vector<32x256xf32>
    %c6_257 = arith.constant 6 : index
    %c0_258 = arith.constant 0 : index
    %c0_259 = arith.constant 0 : index
    %294 = vector.load %arg6[%c6_257, %c0_258, %c0_259] : memref<9x4x32xf32, #tpu.memory_space<vmem>>, vector<1x4x32xf32>
    %295 = vector.shape_cast %294 : vector<1x4x32xf32> to vector<4x32xf32>
    %cst_260 = arith.constant dense<0.000000e+00> : vector<4x256xf32>
    %296 = tpu.matmul %295, %293, %cst_260 {dimension_numbers = #tpu.dot_dimension_numbers<[1], [0], [0], [1], [0, 0, 1, 1], [], []>} : vector<4x32xf32>, vector<32x256xf32>, vector<4x256xf32> -> vector<4x256xf32>
    %297 = arith.addf %283, %296 : vector<4x256xf32>
    %c0_261 = arith.constant 0 : index
    %c144_262 = arith.constant 144 : index
    %298 = vector.load %arg11[%c0_261, %c144_262] : memref<32x512xf32, #tpu.memory_space<vmem>>, vector<32x256xf32>
    %c7_263 = arith.constant 7 : index
    %c0_264 = arith.constant 0 : index
    %c0_265 = arith.constant 0 : index
    %299 = vector.load %arg6[%c7_263, %c0_264, %c0_265] : memref<9x4x32xf32, #tpu.memory_space<vmem>>, vector<1x4x32xf32>
    %300 = vector.shape_cast %299 : vector<1x4x32xf32> to vector<4x32xf32>
    %cst_266 = arith.constant dense<0.000000e+00> : vector<4x256xf32>
    %301 = tpu.matmul %300, %298, %cst_266 {dimension_numbers = #tpu.dot_dimension_numbers<[1], [0], [0], [1], [0, 0, 1, 1], [], []>} : vector<4x32xf32>, vector<32x256xf32>, vector<4x256xf32> -> vector<4x256xf32>
    %302 = arith.addf %287, %301 : vector<4x256xf32>
    %c0_267 = arith.constant 0 : index
    %c145_268 = arith.constant 145 : index
    %303 = vector.load %arg11[%c0_267, %c145_268] : memref<32x512xf32, #tpu.memory_space<vmem>>, vector<32x256xf32>
    %c8_269 = arith.constant 8 : index
    %c0_270 = arith.constant 0 : index
    %c0_271 = arith.constant 0 : index
    %304 = vector.load %arg6[%c8_269, %c0_270, %c0_271] : memref<9x4x32xf32, #tpu.memory_space<vmem>>, vector<1x4x32xf32>
    %305 = vector.shape_cast %304 : vector<1x4x32xf32> to vector<4x32xf32>
    %cst_272 = arith.constant dense<0.000000e+00> : vector<4x256xf32>
    %306 = tpu.matmul %305, %303, %cst_272 {dimension_numbers = #tpu.dot_dimension_numbers<[1], [0], [0], [1], [0, 0, 1, 1], [], []>} : vector<4x32xf32>, vector<32x256xf32>, vector<4x256xf32> -> vector<4x256xf32>
    %307 = arith.addf %292, %306 : vector<4x256xf32>
    %308 = arith.mulf %297, %40 : vector<4x256xf32>
    %309 = arith.addf %302, %308 : vector<4x256xf32>
    %310 = arith.mulf %307, %42 : vector<4x256xf32>
    %311 = arith.addf %309, %310 : vector<4x256xf32>
    %c0_273 = arith.constant 0 : index
    %c0_274 = arith.constant 0 : index
    %312 = vector.load %arg7[%c0_273, %c0_274] : memref<4x1xf32, #tpu.memory_space<vmem>>, vector<4x1xf32>
    %313 = vector.broadcast %312 : vector<4x1xf32> to vector<4x256xf32>
    %314 = arith.addf %311, %313 : vector<4x256xf32>
    %315 = vector.extract_strided_slice %314 {offsets = [0, 0], sizes = [2, 256], strides = [1, 1]} : vector<4x256xf32> to vector<2x256xf32>
    %316 = vector.extract_strided_slice %314 {offsets = [2, 0], sizes = [2, 256], strides = [1, 1]} : vector<4x256xf32> to vector<2x256xf32>
    %cst_275 = arith.constant 0.000000e+00 : f32
    %317 = vector.broadcast %cst_275 : f32 to vector<2x256xf32>
    %318 = arith.subf %317, %316 : vector<2x256xf32>
    %319 = math.exp %318 : vector<2x256xf32>
    %cst_276 = arith.constant 1.000000e+00 : f32
    %320 = vector.broadcast %cst_276 : f32 to vector<2x256xf32>
    %321 = arith.addf %320, %319 : vector<2x256xf32>
    %cst_277 = arith.constant 1.000000e+00 : f32
    %322 = vector.broadcast %cst_277 : f32 to vector<2x256xf32>
    %323 = arith.divf %322, %321 : vector<2x256xf32>
    %324 = arith.addf %193, %315 : vector<2x256xf32>
    %325 = arith.mulf %324, %323 : vector<2x256xf32>
    %c1_278 = arith.constant 1 : index
    %c0_279 = arith.constant 0 : index
    %c0_280 = arith.constant 0 : index
    %c0_281 = arith.constant 0 : index
    %326 = vector.load %arg8[%c1_278, %c0_279, %c0_280, %c0_281] : memref<2x1x2x256xf32, #tpu.memory_space<vmem>>, vector<1x1x2x256xf32>
    %327 = vector.shape_cast %326 : vector<1x1x2x256xf32> to vector<2x256xf32>
    %328 = vector.shape_cast %325 : vector<2x256xf32> to vector<1x1x2x256xf32>
    tpu.vector_store %arg8[%c1_278, %c0_279, %c0_280, %c0_281], %328 {strides = array<i32>} : memref<2x1x2x256xf32, #tpu.memory_space<vmem>>, vector<1x1x2x256xf32>,
    %329 = math.log %321 : vector<2x256xf32>
    %cst_282 = arith.constant dense<0.000000e+00> : vector<2xf32>
    %330 = vector.multi_reduction <add>, %329, %cst_282 [1] : vector<2x256xf32> to vector<2xf32>
    %331 = vector.shape_cast %330 : vector<2xf32> to vector<2x1xf32>
    %cst_283 = arith.constant dense<0.000000e+00> : vector<1xf32>
    %332 = vector.multi_reduction <add>, %331, %cst_283 [0] : vector<2x1xf32> to vector<1xf32>
    %333 = vector.shape_cast %332 : vector<1xf32> to vector<1x1xf32>
    %cst_284 = arith.constant 0.000000e+00 : f32
    %334 = vector.broadcast %cst_284 : f32 to vector<1x1xf32>
    %335 = arith.subf %334, %333 : vector<1x1xf32>
    %336 = vector.shape_cast %335 : vector<1x1xf32> to vector<1x1xf32>
    %337 = vector.broadcast %336 : vector<1x1xf32> to vector<1x128xf32>
    %c1_285 = arith.constant 1 : index
    %c0_286 = arith.constant 0 : index
    %c0_287 = arith.constant 0 : index
    %338 = vector.load %arg9[%c1_285, %c0_286, %c0_287] : memref<2x1x128xf32, #tpu.memory_space<vmem>>, vector<1x1x128xf32>
    %339 = vector.shape_cast %338 : vector<1x1x128xf32> to vector<1x128xf32>
    %340 = vector.shape_cast %337 : vector<1x128xf32> to vector<1x1x128xf32>
    tpu.vector_store %arg9[%c1_285, %c0_286, %c0_287], %340 {strides = array<i32>} : memref<2x1x128xf32, #tpu.memory_space<vmem>>, vector<1x1x128xf32>,
    return
  }
  func.func @transform_0(%arg0: i32) -> (i32, i32, i32, i32) {
    %c0_i32 = arith.constant 0 : i32
    %c0_i32_0 = arith.constant 0 : i32
    %c0_i32_1 = arith.constant 0 : i32
    %c0_i32_2 = arith.constant 0 : i32
    return %arg0, %c0_i32, %c0_i32_0, %c0_i32_1 : i32, i32, i32, i32
  }
  func.func @transform_1(%arg0: i32) -> (i32, i32, i32) {
    %c0_i32 = arith.constant 0 : i32
    %c0_i32_0 = arith.constant 0 : i32
    %c0_i32_1 = arith.constant 0 : i32
    %c0_i32_2 = arith.constant 0 : i32
    return %c0_i32, %c0_i32_0, %c0_i32_1 : i32, i32, i32
  }
  func.func @transform_2(%arg0: i32) -> (i32, i32) {
    %c0_i32 = arith.constant 0 : i32
    %c0_i32_0 = arith.constant 0 : i32
    %c0_i32_1 = arith.constant 0 : i32
    return %c0_i32, %c0_i32_0 : i32, i32
  }
  func.func @transform_3(%arg0: i32) -> (i32, i32) {
    %c0_i32 = arith.constant 0 : i32
    %c0_i32_0 = arith.constant 0 : i32
    %c0_i32_1 = arith.constant 0 : i32
    return %c0_i32, %c0_i32_0 : i32, i32
  }
  func.func @transform_4(%arg0: i32) -> (i32, i32) {
    %c0_i32 = arith.constant 0 : i32
    %c0_i32_0 = arith.constant 0 : i32
    %c0_i32_1 = arith.constant 0 : i32
    return %c0_i32, %c0_i32_0 : i32, i32
  }
  func.func @transform_5(%arg0: i32) -> (i32, i32, i32) {
    %c0_i32 = arith.constant 0 : i32
    %c0_i32_0 = arith.constant 0 : i32
    %c0_i32_1 = arith.constant 0 : i32
    %c0_i32_2 = arith.constant 0 : i32
    return %c0_i32, %c0_i32_0, %c0_i32_1 : i32, i32, i32
  }
  func.func @transform_6(%arg0: i32) -> (i32, i32) {
    %c0_i32 = arith.constant 0 : i32
    %c0_i32_0 = arith.constant 0 : i32
    %c0_i32_1 = arith.constant 0 : i32
    return %c0_i32, %c0_i32_0 : i32, i32
  }
  func.func @transform_7(%arg0: i32) -> (i32, i32, i32, i32) {
    %c0_i32 = arith.constant 0 : i32
    %c0_i32_0 = arith.constant 0 : i32
    %c0_i32_1 = arith.constant 0 : i32
    %c0_i32_2 = arith.constant 0 : i32
    return %arg0, %c0_i32, %c0_i32_0, %c0_i32_1 : i32, i32, i32, i32
  }
  func.func @transform_8(%arg0: i32) -> (i32, i32, i32) {
    %c0_i32 = arith.constant 0 : i32
    %c0_i32_0 = arith.constant 0 : i32
    %c0_i32_1 = arith.constant 0 : i32
    return %arg0, %c0_i32, %c0_i32_0 : i32, i32, i32
  }
}

</mosaic_0001>

<llo_original>
// kernel: coupling_forward.1
$region0: #{coupling_forward.1}
  #allocation0 [shape = 'u32[]', space=smem, size = 0x4, offset = 0x4, fixed_abs, tag = 'smem constant byte address 0x4 - core index']
  #allocation1 [shape = 'u32[72,128]{1,0:T(1,128)}', space=vmem, size = 0x9000, scoped, tag = 'internal scratch']
  #allocation2 [shape = 'f32[2,512]{1,0:T(2,128)}', space=vmem, size = 0x1000, scoped, tag = 'scratch operand']
  #allocation3 [shape = 'f32[32,512]{1,0:T(8,128)}', space=vmem, size = 0x10000, scoped, tag = 'scratch operand']
  %s0 = inlined_call_operand.vmem [shape: f32[2,2,2,256], index: 0, kind: input, shape index: {}, may-alias: {0,7}]
  %s1 = inlined_call_operand.vmem [shape: f32[9,32,2], index: 1, kind: input, shape index: {}]
  %s2 = inlined_call_operand.vmem [shape: f32[32,1], index: 2, kind: input, shape index: {}]
  %s3 = inlined_call_operand.vmem [shape: f32[32,32], index: 3, kind: input, shape index: {}]
  %s4 = inlined_call_operand.vmem [shape: f32[32,1], index: 4, kind: input, shape index: {}]
  %s5 = inlined_call_operand.vmem [shape: f32[9,4,32], index: 5, kind: input, shape index: {}]
  %s6 = inlined_call_operand.vmem [shape: f32[4,1], index: 6, kind: input, shape index: {}]
  %s7 = inlined_call_operand.vmem [shape: f32[2,2,2,256], index: 7, kind: output, shape index: {0}, may-alias: {0,7}]
  %s8 = inlined_call_operand.vmem [shape: f32[2,1,128], index: 8, kind: output, shape index: {1}]
  %9 = xla_tuple %s7, %s8
  %s10 = sld [smem:[#allocation0]]
  $region83: #{coupling_forward.1} parent=0
    _
  %s12 = ssub.s32 1, %s10
  %s13 = scalar_select 0, %s12, %s10
  $region1: #{coupling_forward.1} parent=0
    #allocation4 [shape = 'u8[4096]{0}', space=vmem, size = 0x1000, scoped, tag = 'output window, operand 0, single buffered']
    // Predicated region
    $region2: #{coupling_forward.1} parent=1 // pred_check
      _
    $region3: #{coupling_forward.1} parent=1 // pred_check_branch
      %15 = sbr.rel (0) target = $region5
    $region4: #{coupling_forward.1} parent=1 // pred_region
      _
    $region5: #{coupling_forward.1} parent=1 // pred_fallthru
      _
    // Predicated region
    $region6: #{coupling_forward.1} parent=1 // pred_check
      _
    $region7: #{coupling_forward.1} parent=1 // pred_check_branch
      %17 = sbr.rel (0) target = $region9
    $region8: #{coupling_forward.1} parent=1 // pred_region
      _
    $region9: #{coupling_forward.1} parent=1 // pred_fallthru
      _
    // Predicated region
    $region10: #{coupling_forward.1} parent=1 // pred_check
      _
    $region11: #{coupling_forward.1} parent=1 // pred_check_branch
      %19 = sbr.rel (0) target = $region13
    $region12: #{coupling_forward.1} parent=1 // pred_region
      _
    $region13: #{coupling_forward.1} parent=1 // pred_fallthru
      _
    // Predicated region
    $region14: #{coupling_forward.1} parent=1 // pred_check
      _
    $region15: #{coupling_forward.1} parent=1 // pred_check_branch
      %21 = sbr.rel (0) target = $region17
    $region16: #{coupling_forward.1} parent=1 // pred_region
      _
    $region17: #{coupling_forward.1} parent=1 // pred_fallthru
      _
    // Predicated region
    $region18: #{coupling_forward.1} parent=1 // pred_check
      _
    $region19: #{coupling_forward.1} parent=1 // pred_check_branch
      %23 = sbr.rel (0) target = $region21
    $region20: #{coupling_forward.1} parent=1 // pred_region
      _
    $region21: #{coupling_forward.1} parent=1 // pred_fallthru
      _
    // Predicated region
    $region22: #{coupling_forward.1} parent=1 // pred_check
      _
    $region23: #{coupling_forward.1} parent=1 // pred_check_branch
      %25 = sbr.rel (0) target = $region25
    $region24: #{coupling_forward.1} parent=1 // pred_region
      _
    $region25: #{coupling_forward.1} parent=1 // pred_fallthru
      _
    // Predicated region
    $region26: #{coupling_forward.1} parent=1 // pred_check
      _
    $region27: #{coupling_forward.1} parent=1 // pred_check_branch
      %27 = sbr.rel (0) target = $region29
    $region28: #{coupling_forward.1} parent=1 // pred_region
      _
    $region29: #{coupling_forward.1} parent=1 // pred_fallthru
      _
    %28 = vst [vmem:[#allocation2] sm:$0x3] 0.0
    %29 = vst [vmem:[#allocation2 + $0x6] sm:$0x3] 0.0
    %30 = vst [vmem:[#allocation3] sm:$0xff] 0.0
    %31 = vst [vmem:[#allocation3 + $0x20] sm:$0xff] 0.0
    %32 = vst [vmem:[#allocation3 + $0x40] sm:$0xff] 0.0
    %33 = vst [vmem:[#allocation3 + $0x60] sm:$0xff] 0.0
    %34 = vst [vmem:[#allocation3 + $0x18] sm:$0xff] 0.0
    %35 = vst [vmem:[#allocation3 + $0x38] sm:$0xff] 0.0
    %36 = vst [vmem:[#allocation3 + $0x58] sm:$0xff] 0.0
    %37 = vst [vmem:[#allocation3 + $0x78] sm:$0xff] 0.0
    %v38 = vlaneseq
    %v39 = vand.u32 %v38, 127
    %v40 = vadd.s32 %v39, 128
    %vm41 = vcmp.lt.s32.totalorder %v39, 0
    %v42 = vsub.s32 0, %v39
    %v43 = vsel %vm41, %v42, %v39
    %v44 = vshrl.u32 %v43, 4
    %v45 = vand.u32 %v43, 15
    %v46 = vsub.s32 0, %v45
    %v47 = vsel %vm41, %v46, %v45
    %vm48 = vcmp.lt.s32.totalorder %v40, 0
    %v49 = vsub.s32 0, %v40
    %v50 = vsel %vm48, %v49, %v40
    %v51 = vshrl.u32 %v50, 4
    %v52 = vand.u32 %v50, 15
    %v53 = vsub.s32 0, %v52
    %v54 = vsel %vm48, %v53, %v52
    %vm55 = vcmp.ne.s32.totalorder %v47, 0
    %vm56 = vcmp.ne.s32.totalorder %v54, 0
    %vm57 = vcmp.lt.s32.totalorder %v47, 0
    %vm58 = vcmp.lt.s32.totalorder %v54, 0
    %vm59 = vmand %vm57, %vm55
    %vm60 = vmand %vm58, %vm56
    %v61 = vadd.s32 %v47, 16
    %v62 = vadd.s32 %v54, 16
    %v63 = vsel %vm59, %v61, %v47
    %v64 = vsel %vm60, %v62, %v54
    %vm65 = vcmp.ge.s32.totalorder %v63, 1
    %vm66 = vcmp.ge.s32.totalorder %v64, 1
    %v67 = vsel %vm65, 1.0, 0.0
    %v68 = vsel %vm66, 1.0, 0.0
    %vm69 = vcmp.le.s32.totalorder %v63, 14
    %vm70 = vcmp.le.s32.totalorder %v64, 14
    %v71 = vsel %vm69, 1.0, 0.0
    %v72 = vsel %vm70, 1.0, 0.0
    %v73 = vld [vmem:[%s0] sm:$0xf]
    %s74 = scalar_lea.vmem %s0, 4
    %v75 = vld [vmem:[%s74] sm:$0xf]
    %76 = vst [vmem:[#allocation2 + $0x2] sm:$0xf] %v75
    %v77 = vld [vmem:[#allocation2] sm:$0x3f]
    %v80 = vrot.slane %v68, 6
    %vm81 = vcmask 1041408
    %v82 = vsel %vm81, %v67, %v80
    %83 = vrot.lane.b32.xlu0 %v82, 111
    %v84 = vpop.permute.xlu0 %83
    %v85 = vrot.slane %v84, 6
    %vm86 = vcmask 908288
    %v87 = vsel %vm86, %v85, %v84
    %v89 = vmul.f32 %v77, %v87
    %v90 = vld [vmem:[%s1] sm:$0xff]
    %v91 = vld [vmem:[%s1 + $0x8] sm:$0xff]
    %v92 = vld [vmem:[%s1 + $0x10] sm:$0xff]
    %v93 = vld [vmem:[%s1 + $0x18] sm:$0xff]
    %s94 = scalar_lea.vmem %s1, 32
    %v95 = vld [vmem:[%s94] sm:$0xff]
    %v96 = vld [vmem:[%s94 + $0x8] sm:$0xff]
    %v97 = vld [vmem:[%s94 + $0x10] sm:$0xff]
    %v98 = vld [vmem:[%s94 + $0x18] sm:$0xff]
    %100 = vst [vmem:[#allocation1] ss:$4 sm:$0xff] %v77
    %v101 = vld.sshfl [vmem:[#allocation1] sm:$0xff pattern:$0x73625140]
    %v102 = vld.sshfl [vmem:[#allocation1 + $0x8] sm:$0xff pattern:$0x73625140]
    %v103 = vld.sshfl [vmem:[#allocation1 + $0x10] sm:$0xff pattern:$0x73625140]
    %104 = vrot.lane.b32.xlu0 %v101, 16
    %v105 = vpop.permute.xlu0 %104
    %106 = vrot.lane.b32.xlu0 %v102, 16
    %v107 = vpop.permute.xlu0 %106
    %108 = vrot.lane.b32.xlu0 %v103, 16
    %v109 = vpop.permute.xlu0 %108
    %vm110 = vcmask 130048
    %v111 = vsel %vm110, %v105, %v107
    %v112 = vsel %vm110, %v107, %v109
    %vm113 = vcmask 15360
    %v115 = vsel %vm113, %v95, 0
    %v118 = vsel %vm113, %v96, 0
    %v121 = vsel %vm113, %v97, 0
    %v124 = vsel %vm113, %v98, 0
    %v126 = vsel %vm81, %v111, 0
    %v128 = vsel %vm81, %v112, 0
    %130 = vmatpush.msra.mxu0 0.0
    %131 = vmatpush.msra.mxu0 0.0
    %132 = vmatpush.msra.mxu0 0.0
    %133 = vmatpush.msra.mxu0 0.0
    %134 = vmatpush.msra.mxu0 0.0
    %135 = vmatpush.msra.mxu0 0.0
    %136 = vmatpush.msra.mxu0 0.0
    %137 = vmatpush.msra.mxu0 0.0
    %138 = vmatpush.msra.mxu0 0.0
    %139 = vmatpush.msra.mxu0 0.0
    %140 = vmatpush.msra.mxu0 0.0
    %141 = vmatpush.msra.mxu0 0.0
    %142 = vmatpush.msra.mxu0 0.0
    %143 = vmatpush.msra.mxu0 0.0
    %144 = vmatpush.msra.mxu0 0.0
    %145 = vmatpush.msra.mxu0 %v126
    %146 = vmatmul.f32.gmra.mxu0 %v115
    %v147 = vpop.f32.mrf.mxu0
    %v148 = vadd.f32 0.0, %v147
    %149 = vmatmul.f32.gmra.mxu0 %v118
    %v150 = vpop.f32.mrf.mxu0
    %v151 = vadd.f32 0.0, %v150
    %152 = vmatmul.f32.gmra.mxu0 %v121
    %v153 = vpop.f32.mrf.mxu0
    %v154 = vadd.f32 0.0, %v153
    %155 = vmatmul.f32.gmra.mxu0 %v124
    %v156 = vpop.f32.mrf.mxu0
    %v157 = vadd.f32 0.0, %v156
    %158 = vdwg.mxu0
    %159 = vmatpush.msra.mxu0 0.0
    %160 = vmatpush.msra.mxu0 0.0
    %161 = vmatpush.msra.mxu0 0.0
    %162 = vmatpush.msra.mxu0 0.0
    %163 = vmatpush.msra.mxu0 0.0
    %164 = vmatpush.msra.mxu0 0.0
    %165 = vmatpush.msra.mxu0 0.0
    %166 = vmatpush.msra.mxu0 0.0
    %167 = vmatpush.msra.mxu0 0.0
    %168 = vmatpush.msra.mxu0 0.0
    %169 = vmatpush.msra.mxu0 0.0
    %170 = vmatpush.msra.mxu0 0.0
    %171 = vmatpush.msra.mxu0 0.0
    %172 = vmatpush.msra.mxu0 0.0
    %173 = vmatpush.msra.mxu0 0.0
    %174 = vmatpush.msra.mxu0 %v128
    %175 = vmatmul.f32.gmra.mxu0 %v115
    %v176 = vpop.f32.mrf.mxu0
    %v177 = vadd.f32 0.0, %v176
    %178 = vmatmul.f32.gmra.mxu0 %v118
    %v179 = vpop.f32.mrf.mxu0
    %v180 = vadd.f32 0.0, %v179
    %181 = vmatmul.f32.gmra.mxu0 %v121
    %v182 = vpop.f32.mrf.mxu0
    %v183 = vadd.f32 0.0, %v182
    %184 = vmatmul.f32.gmra.mxu0 %v124
    %v185 = vpop.f32.mrf.mxu0
    %v186 = vadd.f32 0.0, %v185
    %187 = vdwg.mxu0
    %189 = vst [vmem:[#allocation1] ss:$4 sm:$0xff] %v89
    %v190 = vld.sshfl [vmem:[#allocation1] sm:$0xff pattern:$0x73625140]
    %v191 = vld.sshfl [vmem:[#allocation1 + $0x8] sm:$0xff pattern:$0x73625140]
    %v192 = vld.sshfl [vmem:[#allocation1 + $0x10] sm:$0xff pattern:$0x73625140]
    %193 = vrot.lane.b32.xlu0 %v190, 17
    %v194 = vpop.permute.xlu0 %193
    %195 = vrot.lane.b32.xlu0 %v191, 17
    %v196 = vpop.permute.xlu0 %195
    %197 = vrot.lane.b32.xlu0 %v192, 17
    %v198 = vpop.permute.xlu0 %197
    %vm199 = vcmask 138240
    %v200 = vsel %vm199, %v194, %v196
    %v201 = vsel %vm199, %v196, %v198
    %v203 = vsel %vm113, %v90, 0
    %v206 = vsel %vm113, %v91, 0
    %v209 = vsel %vm113, %v92, 0
    %v212 = vsel %vm113, %v93, 0
    %v214 = vsel %vm81, %v200, 0
    %v216 = vsel %vm81, %v201, 0
    %218 = vmatpush.msra.mxu0 0.0
    %219 = vmatpush.msra.mxu0 0.0
    %220 = vmatpush.msra.mxu0 0.0
    %221 = vmatpush.msra.mxu0 0.0
    %222 = vmatpush.msra.mxu0 0.0
    %223 = vmatpush.msra.mxu0 0.0
    %224 = vmatpush.msra.mxu0 0.0
    %225 = vmatpush.msra.mxu0 0.0
    %226 = vmatpush.msra.mxu0 0.0
    %227 = vmatpush.msra.mxu0 0.0
    %228 = vmatpush.msra.mxu0 0.0
    %229 = vmatpush.msra.mxu0 0.0
    %230 = vmatpush.msra.mxu0 0.0
    %231 = vmatpush.msra.mxu0 0.0
    %232 = vmatpush.msra.mxu0 0.0
    %233 = vmatpush.msra.mxu0 %v214
    %234 = vmatmul.f32.gmra.mxu0 %v203
    %v235 = vpop.f32.mrf.mxu0
    %v236 = vadd.f32 %v148, %v235
    %237 = vmatmul.f32.gmra.mxu0 %v206
    %v238 = vpop.f32.mrf.mxu0
    %v239 = vadd.f32 %v151, %v238
    %240 = vmatmul.f32.gmra.mxu0 %v209
    %v241 = vpop.f32.mrf.mxu0
    %v242 = vadd.f32 %v154, %v241
    %243 = vmatmul.f32.gmra.mxu0 %v212
    %v244 = vpop.f32.mrf.mxu0
    %v245 = vadd.f32 %v157, %v244
    %246 = vdwg.mxu0
    %247 = vmatpush.msra.mxu0 0.0
    %248 = vmatpush.msra.mxu0 0.0
    %249 = vmatpush.msra.mxu0 0.0
    %250 = vmatpush.msra.mxu0 0.0
    %251 = vmatpush.msra.mxu0 0.0
    %252 = vmatpush.msra.mxu0 0.0
    %253 = vmatpush.msra.mxu0 0.0
    %254 = vmatpush.msra.mxu0 0.0
    %255 = vmatpush.msra.mxu0 0.0
    %256 = vmatpush.msra.mxu0 0.0
    %257 = vmatpush.msra.mxu0 0.0
    %258 = vmatpush.msra.mxu0 0.0
    %259 = vmatpush.msra.mxu0 0.0
    %260 = vmatpush.msra.mxu0 0.0
    %261 = vmatpush.msra.mxu0 0.0
    %262 = vmatpush.msra.mxu0 %v216
    %263 = vmatmul.f32.gmra.mxu0 %v203
    %v264 = vpop.f32.mrf.mxu0
    %v265 = vadd.f32 %v177, %v264
    %266 = vmatmul.f32.gmra.mxu0 %v206
    %v267 = vpop.f32.mrf.mxu0
    %v268 = vadd.f32 %v180, %v267
    %269 = vmatmul.f32.gmra.mxu0 %v209
    %v270 = vpop.f32.mrf.mxu0
    %v271 = vadd.f32 %v183, %v270
    %272 = vmatmul.f32.gmra.mxu0 %v212
    %v273 = vpop.f32.mrf.mxu0
    %v274 = vadd.f32 %v186, %v273
    %275 = vdwg.mxu0
    %v276 = vld [vmem:[#allocation2] sm:$0x3f]
    %v279 = vrot.slane %v72, 6
    %v280 = vsel %vm81, %v71, %v279
    %281 = vrot.lane.b32.xlu0 %v280, 113
    %v282 = vpop.permute.xlu0 %281
    %v283 = vrot.slane %v282, 6
    %vm284 = vcmask 924672
    %v285 = vsel %vm284, %v283, %v282
    %v287 = vmul.f32 %v276, %v285
    %s288 = scalar_lea.vmem %s1, 64
    %v289 = vld [vmem:[%s288] sm:$0xff]
    %v290 = vld [vmem:[%s288 + $0x8] sm:$0xff]
    %v291 = vld [vmem:[%s288 + $0x10] sm:$0xff]
    %v292 = vld [vmem:[%s288 + $0x18] sm:$0xff]
    %294 = vst [vmem:[#allocation1] ss:$4 sm:$0xff] %v287
    %v295 = vld.sshfl [vmem:[#allocation1] sm:$0xff pattern:$0x73625140]
    %v296 = vld.sshfl [vmem:[#allocation1 + $0x8] sm:$0xff pattern:$0x73625140]
    %v297 = vld.sshfl [vmem:[#allocation1 + $0x10] sm:$0xff pattern:$0x73625140]
    %298 = vrot.lane.b32.xlu0 %v295, 15
    %v299 = vpop.permute.xlu0 %298
    %300 = vrot.lane.b32.xlu0 %v296, 15
    %v301 = vpop.permute.xlu0 %300
    %302 = vrot.lane.b32.xlu0 %v297, 15
    %v303 = vpop.permute.xlu0 %302
    %vm304 = vcmask 121856
    %v305 = vsel %vm304, %v299, %v301
    %v306 = vsel %vm304, %v301, %v303
    %v308 = vsel %vm113, %v289, 0
    %v311 = vsel %vm113, %v290, 0
    %v314 = vsel %vm113, %v291, 0
    %v317 = vsel %vm113, %v292, 0
    %v319 = vsel %vm81, %v305, 0
    %v321 = vsel %vm81, %v306, 0
    %323 = vmatpush.msra.mxu0 0.0
    %324 = vmatpush.msra.mxu0 0.0
    %325 = vmatpush.msra.mxu0 0.0
    %326 = vmatpush.msra.mxu0 0.0
    %327 = vmatpush.msra.mxu0 0.0
    %328 = vmatpush.msra.mxu0 0.0
    %329 = vmatpush.msra.mxu0 0.0
    %330 = vmatpush.msra.mxu0 0.0
    %331 = vmatpush.msra.mxu0 0.0
    %332 = vmatpush.msra.mxu0 0.0
    %333 = vmatpush.msra.mxu0 0.0
    %334 = vmatpush.msra.mxu0 0.0
    %335 = vmatpush.msra.mxu0 0.0
    %336 = vmatpush.msra.mxu0 0.0
    %337 = vmatpush.msra.mxu0 0.0
    %338 = vmatpush.msra.mxu0 %v319
    %339 = vmatmul.f32.gmra.mxu0 %v308
    %v340 = vpop.f32.mrf.mxu0
    %v341 = vadd.f32 0.0, %v340
    %342 = vmatmul.f32.gmra.mxu0 %v311
    %v343 = vpop.f32.mrf.mxu0
    %v344 = vadd.f32 0.0, %v343
    %345 = vmatmul.f32.gmra.mxu0 %v314
    %v346 = vpop.f32.mrf.mxu0
    %v347 = vadd.f32 0.0, %v346
    %348 = vmatmul.f32.gmra.mxu0 %v317
    %v349 = vpop.f32.mrf.mxu0
    %v350 = vadd.f32 0.0, %v349
    %351 = vdwg.mxu0
    %352 = vmatpush.msra.mxu0 0.0
    %353 = vmatpush.msra.mxu0 0.0
    %354 = vmatpush.msra.mxu0 0.0
    %355 = vmatpush.msra.mxu0 0.0
    %356 = vmatpush.msra.mxu0 0.0
    %357 = vmatpush.msra.mxu0 0.0
    %358 = vmatpush.msra.mxu0 0.0
    %359 = vmatpush.msra.mxu0 0.0
    %360 = vmatpush.msra.mxu0 0.0
    %361 = vmatpush.msra.mxu0 0.0
    %362 = vmatpush.msra.mxu0 0.0
    %363 = vmatpush.msra.mxu0 0.0
    %364 = vmatpush.msra.mxu0 0.0
    %365 = vmatpush.msra.mxu0 0.0
    %366 = vmatpush.msra.mxu0 0.0
    %367 = vmatpush.msra.mxu0 %v321
    %368 = vmatmul.f32.gmra.mxu0 %v308
    %v369 = vpop.f32.mrf.mxu0
    %v370 = vadd.f32 0.0, %v369
    %371 = vmatmul.f32.gmra.mxu0 %v311
    %v372 = vpop.f32.mrf.mxu0
    %v373 = vadd.f32 0.0, %v372
    %374 = vmatmul.f32.gmra.mxu0 %v314
    %v375 = vpop.f32.mrf.mxu0
    %v376 = vadd.f32 0.0, %v375
    %377 = vmatmul.f32.gmra.mxu0 %v317
    %v378 = vpop.f32.mrf.mxu0
    %v379 = vadd.f32 0.0, %v378
    %380 = vdwg.mxu0
    %v381 = vadd.f32 %v236, %v341
    %v382 = vadd.f32 %v265, %v370
    %v383 = vadd.f32 %v239, %v344
    %v384 = vadd.f32 %v268, %v373
    %v385 = vadd.f32 %v242, %v347
    %v386 = vadd.f32 %v271, %v376
    %v387 = vadd.f32 %v245, %v350
    %v388 = vadd.f32 %v274, %v379
    %v389 = vld [vmem:[#allocation2] sm:$0x3f]
    %390 = vrot.lane.b32.xlu0 %v82, 127
    %v391 = vpop.permute.xlu0 %390
    %v392 = vrot.slane %v391, 6
    %vm393 = vcmask 1039360
    %v394 = vsel %vm393, %v392, %v391
    %v396 = vmul.f32 %v389, %v394
    %s397 = scalar_lea.vmem %s1, 96
    %v398 = vld [vmem:[%s397] sm:$0xff]
    %v399 = vld [vmem:[%s397 + $0x8] sm:$0xff]
    %v400 = vld [vmem:[%s397 + $0x10] sm:$0xff]
    %v401 = vld [vmem:[%s397 + $0x18] sm:$0xff]
    %403 = vst [vmem:[#allocation1] ss:$4 sm:$0xff] %v396
    %v404 = vld.sshfl [vmem:[#allocation1] sm:$0xff pattern:$0x73625140]
    %v405 = vld.sshfl [vmem:[#allocation1 + $0x8] sm:$0xff pattern:$0x73625140]
    %v406 = vld.sshfl [vmem:[#allocation1 + $0x10] sm:$0xff pattern:$0x73625140]
    %407 = vrot.lane.b32.xlu0 %v404, 1
    %v408 = vpop.permute.xlu0 %407
    %409 = vrot.lane.b32.xlu0 %v405, 1
    %v410 = vpop.permute.xlu0 %409
    %411 = vrot.lane.b32.xlu0 %v406, 1
    %v412 = vpop.permute.xlu0 %411
    %vm413 = vcmask 7168
    %v414 = vsel %vm413, %v408, %v410
    %v415 = vsel %vm413, %v410, %v412
    %v417 = vsel %vm113, %v398, 0
    %v420 = vsel %vm113, %v399, 0
    %v423 = vsel %vm113, %v400, 0
    %v426 = vsel %vm113, %v401, 0
    %v428 = vsel %vm81, %v414, 0
    %v430 = vsel %vm81, %v415, 0
    %432 = vmatpush.msra.mxu0 0.0
    %433 = vmatpush.msra.mxu0 0.0
    %434 = vmatpush.msra.mxu0 0.0
    %435 = vmatpush.msra.mxu0 0.0
    %436 = vmatpush.msra.mxu0 0.0
    %437 = vmatpush.msra.mxu0 0.0
    %438 = vmatpush.msra.mxu0 0.0
    %439 = vmatpush.msra.mxu0 0.0
    %440 = vmatpush.msra.mxu0 0.0
    %441 = vmatpush.msra.mxu0 0.0
    %442 = vmatpush.msra.mxu0 0.0
    %443 = vmatpush.msra.mxu0 0.0
    %444 = vmatpush.msra.mxu0 0.0
    %445 = vmatpush.msra.mxu0 0.0
    %446 = vmatpush.msra.mxu0 0.0
    %447 = vmatpush.msra.mxu0 %v428
    %448 = vmatmul.f32.gmra.mxu0 %v417
    %v449 = vpop.f32.mrf.mxu0
    %v450 = vadd.f32 0.0, %v449
    %451 = vmatmul.f32.gmra.mxu0 %v420
    %v452 = vpop.f32.mrf.mxu0
    %v453 = vadd.f32 0.0, %v452
    %454 = vmatmul.f32.gmra.mxu0 %v423
    %v455 = vpop.f32.mrf.mxu0
    %v456 = vadd.f32 0.0, %v455
    %457 = vmatmul.f32.gmra.mxu0 %v426
    %v458 = vpop.f32.mrf.mxu0
    %v459 = vadd.f32 0.0, %v458
    %460 = vdwg.mxu0
    %461 = vmatpush.msra.mxu0 0.0
    %462 = vmatpush.msra.mxu0 0.0
    %463 = vmatpush.msra.mxu0 0.0
    %464 = vmatpush.msra.mxu0 0.0
    %465 = vmatpush.msra.mxu0 0.0
    %466 = vmatpush.msra.mxu0 0.0
    %467 = vmatpush.msra.mxu0 0.0
    %468 = vmatpush.msra.mxu0 0.0
    %469 = vmatpush.msra.mxu0 0.0
    %470 = vmatpush.msra.mxu0 0.0
    %471 = vmatpush.msra.mxu0 0.0
    %472 = vmatpush.msra.mxu0 0.0
    %473 = vmatpush.msra.mxu0 0.0
    %474 = vmatpush.msra.mxu0 0.0
    %475 = vmatpush.msra.mxu0 0.0
    %476 = vmatpush.msra.mxu0 %v430
    %477 = vmatmul.f32.gmra.mxu0 %v417
    %v478 = vpop.f32.mrf.mxu0
    %v479 = vadd.f32 0.0, %v478
    %480 = vmatmul.f32.gmra.mxu0 %v420
    %v481 = vpop.f32.mrf.mxu0
    %v482 = vadd.f32 0.0, %v481
    %483 = vmatmul.f32.gmra.mxu0 %v423
    %v484 = vpop.f32.mrf.mxu0
    %v485 = vadd.f32 0.0, %v484
    %486 = vmatmul.f32.gmra.mxu0 %v426
    %v487 = vpop.f32.mrf.mxu0
    %v488 = vadd.f32 0.0, %v487
    %489 = vdwg.mxu0
    %v490 = vadd.f32 %v381, %v450
    %v491 = vadd.f32 %v382, %v479
    %v492 = vadd.f32 %v383, %v453
    %v493 = vadd.f32 %v384, %v482
    %v494 = vadd.f32 %v385, %v456
    %v495 = vadd.f32 %v386, %v485
    %v496 = vadd.f32 %v387, %v459
    %v497 = vadd.f32 %v388, %v488
    %s498 = scalar_lea.vmem %s1, 128
    %v499 = vld [vmem:[%s498] sm:$0xff]
    %v500 = vld [vmem:[%s498 + $0x8] sm:$0xff]
    %v501 = vld [vmem:[%s498 + $0x10] sm:$0xff]
    %v502 = vld [vmem:[%s498 + $0x18] sm:$0xff]
    %504 = vst [vmem:[#allocation1] ss:$4 sm:$0xff] %v75
    %v505 = vld.sshfl [vmem:[#allocation1] sm:$0xff pattern:$0x73625140]
    %v506 = vld.sshfl [vmem:[#allocation1 + $0x8] sm:$0xff pattern:$0x73625140]
    %v508 = vsel %vm113, %v499, 0
    %v511 = vsel %vm113, %v500, 0
    %v514 = vsel %vm113, %v501, 0
    %v517 = vsel %vm113, %v502, 0
    %v519 = vsel %vm81, %v505, 0
    %v521 = vsel %vm81, %v506, 0
    %523 = vmatpush.msra.mxu0 0.0
    %524 = vmatpush.msra.mxu0 0.0
    %525 = vmatpush.msra.mxu0 0.0
    %526 = vmatpush.msra.mxu0 0.0
    %527 = vmatpush.msra.mxu0 0.0
    %528 = vmatpush.msra.mxu0 0.0
    %529 = vmatpush.msra.mxu0 0.0
    %530 = vmatpush.msra.mxu0 0.0
    %531 = vmatpush.msra.mxu0 0.0
    %532 = vmatpush.msra.mxu0 0.0
    %533 = vmatpush.msra.mxu0 0.0
    %534 = vmatpush.msra.mxu0 0.0
    %535 = vmatpush.msra.mxu0 0.0
    %536 = vmatpush.msra.mxu0 0.0
    %537 = vmatpush.msra.mxu0 0.0
    %538 = vmatpush.msra.mxu0 %v519
    %539 = vmatmul.f32.gmra.mxu0 %v508
    %v540 = vpop.f32.mrf.mxu0
    %v541 = vadd.f32 0.0, %v540
    %542 = vmatmul.f32.gmra.mxu0 %v511
    %v543 = vpop.f32.mrf.mxu0
    %v544 = vadd.f32 0.0, %v543
    %545 = vmatmul.f32.gmra.mxu0 %v514
    %v546 = vpop.f32.mrf.mxu0
    %v547 = vadd.f32 0.0, %v546
    %548 = vmatmul.f32.gmra.mxu0 %v517
    %v549 = vpop.f32.mrf.mxu0
    %v550 = vadd.f32 0.0, %v549
    %551 = vdwg.mxu0
    %552 = vmatpush.msra.mxu0 0.0
    %553 = vmatpush.msra.mxu0 0.0
    %554 = vmatpush.msra.mxu0 0.0
    %555 = vmatpush.msra.mxu0 0.0
    %556 = vmatpush.msra.mxu0 0.0
    %557 = vmatpush.msra.mxu0 0.0
    %558 = vmatpush.msra.mxu0 0.0
    %559 = vmatpush.msra.mxu0 0.0
    %560 = vmatpush.msra.mxu0 0.0
    %561 = vmatpush.msra.mxu0 0.0
    %562 = vmatpush.msra.mxu0 0.0
    %563 = vmatpush.msra.mxu0 0.0
    %564 = vmatpush.msra.mxu0 0.0
    %565 = vmatpush.msra.mxu0 0.0
    %566 = vmatpush.msra.mxu0 0.0
    %567 = vmatpush.msra.mxu0 %v521
    %568 = vmatmul.f32.gmra.mxu0 %v508
    %v569 = vpop.f32.mrf.mxu0
    %v570 = vadd.f32 0.0, %v569
    %571 = vmatmul.f32.gmra.mxu0 %v511
    %v572 = vpop.f32.mrf.mxu0
    %v573 = vadd.f32 0.0, %v572
    %574 = vmatmul.f32.gmra.mxu0 %v514
    %v575 = vpop.f32.mrf.mxu0
    %v576 = vadd.f32 0.0, %v575
    %577 = vmatmul.f32.gmra.mxu0 %v517
    %v578 = vpop.f32.mrf.mxu0
    %v579 = vadd.f32 0.0, %v578
    %580 = vdwg.mxu0
    %v581 = vadd.f32 %v490, %v541
    %v582 = vadd.f32 %v491, %v570
    %v583 = vadd.f32 %v492, %v544
    %v584 = vadd.f32 %v493, %v573
    %v585 = vadd.f32 %v494, %v547
    %v586 = vadd.f32 %v495, %v576
    %v587 = vadd.f32 %v496, %v550
    %v588 = vadd.f32 %v497, %v579
    %v589 = vld [vmem:[#allocation2 + $0x2] sm:$0x3f]
    %590 = vrot.lane.b32.xlu0 %v280, 1
    %v591 = vpop.permute.xlu0 %590
    %v592 = vrot.slane %v591, 6
    %v593 = vsel %vm413, %v592, %v591
    %v595 = vmul.f32 %v589, %v593
    %s596 = scalar_lea.vmem %s1, 160
    %v597 = vld [vmem:[%s596] sm:$0xff]
    %v598 = vld [vmem:[%s596 + $0x8] sm:$0xff]
    %v599 = vld [vmem:[%s596 + $0x10] sm:$0xff]
    %v600 = vld [vmem:[%s596 + $0x18] sm:$0xff]
    %602 = vst [vmem:[#allocation1] ss:$4 sm:$0xff] %v595
    %v603 = vld.sshfl [vmem:[#allocation1] sm:$0xff pattern:$0x73625140]
    %v604 = vld.sshfl [vmem:[#allocation1 + $0x8] sm:$0xff pattern:$0x73625140]
    %v605 = vld.sshfl [vmem:[#allocation1 + $0x10] sm:$0xff pattern:$0x73625140]
    %606 = vrot.lane.b32.xlu0 %v603, 127
    %v607 = vpop.permute.xlu0 %606
    %608 = vrot.lane.b32.xlu0 %v604, 127
    %v609 = vpop.permute.xlu0 %608
    %610 = vrot.lane.b32.xlu0 %v605, 127
    %v611 = vpop.permute.xlu0 %610
    %v612 = vsel %vm393, %v607, %v609
    %v613 = vsel %vm393, %v609, %v611
    %v615 = vsel %vm113, %v597, 0
    %v618 = vsel %vm113, %v598, 0
    %v621 = vsel %vm113, %v599, 0
    %v624 = vsel %vm113, %v600, 0
    %v626 = vsel %vm81, %v612, 0
    %v628 = vsel %vm81, %v613, 0
    %630 = vmatpush.msra.mxu0 0.0
    %631 = vmatpush.msra.mxu0 0.0
    %632 = vmatpush.msra.mxu0 0.0
    %633 = vmatpush.msra.mxu0 0.0
    %634 = vmatpush.msra.mxu0 0.0
    %635 = vmatpush.msra.mxu0 0.0
    %636 = vmatpush.msra.mxu0 0.0
    %637 = vmatpush.msra.mxu0 0.0
    %638 = vmatpush.msra.mxu0 0.0
    %639 = vmatpush.msra.mxu0 0.0
    %640 = vmatpush.msra.mxu0 0.0
    %641 = vmatpush.msra.mxu0 0.0
    %642 = vmatpush.msra.mxu0 0.0
    %643 = vmatpush.msra.mxu0 0.0
    %644 = vmatpush.msra.mxu0 0.0
    %645 = vmatpush.msra.mxu0 %v626
    %646 = vmatmul.f32.gmra.mxu0 %v615
    %v647 = vpop.f32.mrf.mxu0
    %v648 = vadd.f32 0.0, %v647
    %649 = vmatmul.f32.gmra.mxu0 %v618
    %v650 = vpop.f32.mrf.mxu0
    %v651 = vadd.f32 0.0, %v650
    %652 = vmatmul.f32.gmra.mxu0 %v621
    %v653 = vpop.f32.mrf.mxu0
    %v654 = vadd.f32 0.0, %v653
    %655 = vmatmul.f32.gmra.mxu0 %v624
    %v656 = vpop.f32.mrf.mxu0
    %v657 = vadd.f32 0.0, %v656
    %658 = vdwg.mxu0
    %659 = vmatpush.msra.mxu0 0.0
    %660 = vmatpush.msra.mxu0 0.0
    %661 = vmatpush.msra.mxu0 0.0
    %662 = vmatpush.msra.mxu0 0.0
    %663 = vmatpush.msra.mxu0 0.0
    %664 = vmatpush.msra.mxu0 0.0
    %665 = vmatpush.msra.mxu0 0.0
    %666 = vmatpush.msra.mxu0 0.0
    %667 = vmatpush.msra.mxu0 0.0
    %668 = vmatpush.msra.mxu0 0.0
    %669 = vmatpush.msra.mxu0 0.0
    %670 = vmatpush.msra.mxu0 0.0
    %671 = vmatpush.msra.mxu0 0.0
    %672 = vmatpush.msra.mxu0 0.0
    %673 = vmatpush.msra.mxu0 0.0
    %674 = vmatpush.msra.mxu0 %v628
    %675 = vmatmul.f32.gmra.mxu0 %v615
    %v676 = vpop.f32.mrf.mxu0
    %v677 = vadd.f32 0.0, %v676
    %678 = vmatmul.f32.gmra.mxu0 %v618
    %v679 = vpop.f32.mrf.mxu0
    %v680 = vadd.f32 0.0, %v679
    %681 = vmatmul.f32.gmra.mxu0 %v621
    %v682 = vpop.f32.mrf.mxu0
    %v683 = vadd.f32 0.0, %v682
    %684 = vmatmul.f32.gmra.mxu0 %v624
    %v685 = vpop.f32.mrf.mxu0
    %v686 = vadd.f32 0.0, %v685
    %687 = vdwg.mxu0
    %v688 = vadd.f32 %v581, %v648
    %v689 = vadd.f32 %v582, %v677
    %v690 = vadd.f32 %v583, %v651
    %v691 = vadd.f32 %v584, %v680
    %v692 = vadd.f32 %v585, %v654
    %v693 = vadd.f32 %v586, %v683
    %v694 = vadd.f32 %v587, %v657
    %v695 = vadd.f32 %v588, %v686
    %v696 = vld [vmem:[#allocation2 + $0x2] sm:$0x3f]
    %697 = vrot.lane.b32.xlu0 %v82, 15
    %v698 = vpop.permute.xlu0 %697
    %v699 = vrot.slane %v698, 6
    %v700 = vsel %vm304, %v699, %v698
    %v702 = vmul.f32 %v696, %v700
    %s703 = scalar_lea.vmem %s1, 192
    %v704 = vld [vmem:[%s703] sm:$0xff]
    %v705 = vld [vmem:[%s703 + $0x8] sm:$0xff]
    %v706 = vld [vmem:[%s703 + $0x10] sm:$0xff]
    %v707 = vld [vmem:[%s703 + $0x18] sm:$0xff]
    %709 = vst [vmem:[#allocation1] ss:$4 sm:$0xff] %v702
    %v710 = vld.sshfl [vmem:[#allocation1] sm:$0xff pattern:$0x73625140]
    %v711 = vld.sshfl [vmem:[#allocation1 + $0x8] sm:$0xff pattern:$0x73625140]
    %v712 = vld.sshfl [vmem:[#allocation1 + $0x10] sm:$0xff pattern:$0x73625140]
    %713 = vrot.lane.b32.xlu0 %v710, 113
    %v714 = vpop.permute.xlu0 %713
    %715 = vrot.lane.b32.xlu0 %v711, 113
    %v716 = vpop.permute.xlu0 %715
    %717 = vrot.lane.b32.xlu0 %v712, 113
    %v718 = vpop.permute.xlu0 %717
    %v719 = vsel %vm284, %v714, %v716
    %v720 = vsel %vm284, %v716, %v718
    %v722 = vsel %vm113, %v704, 0
    %v725 = vsel %vm113, %v705, 0
    %v728 = vsel %vm113, %v706, 0
    %v731 = vsel %vm113, %v707, 0
    %v733 = vsel %vm81, %v719, 0
    %v735 = vsel %vm81, %v720, 0
    %737 = vmatpush.msra.mxu0 0.0
    %738 = vmatpush.msra.mxu0 0.0
    %739 = vmatpush.msra.mxu0 0.0
    %740 = vmatpush.msra.mxu0 0.0
    %741 = vmatpush.msra.mxu0 0.0
    %742 = vmatpush.msra.mxu0 0.0
    %743 = vmatpush.msra.mxu0 0.0
    %744 = vmatpush.msra.mxu0 0.0
    %745 = vmatpush.msra.mxu0 0.0
    %746 = vmatpush.msra.mxu0 0.0
    %747 = vmatpush.msra.mxu0 0.0
    %748 = vmatpush.msra.mxu0 0.0
    %749 = vmatpush.msra.mxu0 0.0
    %750 = vmatpush.msra.mxu0 0.0
    %751 = vmatpush.msra.mxu0 0.0
    %752 = vmatpush.msra.mxu0 %v733
    %753 = vmatmul.f32.gmra.mxu0 %v722
    %v754 = vpop.f32.mrf.mxu0
    %v755 = vadd.f32 0.0, %v754
    %756 = vmatmul.f32.gmra.mxu0 %v725
    %v757 = vpop.f32.mrf.mxu0
    %v758 = vadd.f32 0.0, %v757
    %759 = vmatmul.f32.gmra.mxu0 %v728
    %v760 = vpop.f32.mrf.mxu0
    %v761 = vadd.f32 0.0, %v760
    %762 = vmatmul.f32.gmra.mxu0 %v731
    %v763 = vpop.f32.mrf.mxu0
    %v764 = vadd.f32 0.0, %v763
    %765 = vdwg.mxu0
    %766 = vmatpush.msra.mxu0 0.0
    %767 = vmatpush.msra.mxu0 0.0
    %768 = vmatpush.msra.mxu0 0.0
    %769 = vmatpush.msra.mxu0 0.0
    %770 = vmatpush.msra.mxu0 0.0
    %771 = vmatpush.msra.mxu0 0.0
    %772 = vmatpush.msra.mxu0 0.0
    %773 = vmatpush.msra.mxu0 0.0
    %774 = vmatpush.msra.mxu0 0.0
    %775 = vmatpush.msra.mxu0 0.0
    %776 = vmatpush.msra.mxu0 0.0
    %777 = vmatpush.msra.mxu0 0.0
    %778 = vmatpush.msra.mxu0 0.0
    %779 = vmatpush.msra.mxu0 0.0
    %780 = vmatpush.msra.mxu0 0.0
    %781 = vmatpush.msra.mxu0 %v735
    %782 = vmatmul.f32.gmra.mxu0 %v722
    %v783 = vpop.f32.mrf.mxu0
    %v784 = vadd.f32 0.0, %v783
    %785 = vmatmul.f32.gmra.mxu0 %v725
    %v786 = vpop.f32.mrf.mxu0
    %v787 = vadd.f32 0.0, %v786
    %788 = vmatmul.f32.gmra.mxu0 %v728
    %v789 = vpop.f32.mrf.mxu0
    %v790 = vadd.f32 0.0, %v789
    %791 = vmatmul.f32.gmra.mxu0 %v731
    %v792 = vpop.f32.mrf.mxu0
    %v793 = vadd.f32 0.0, %v792
    %794 = vdwg.mxu0
    %v795 = vadd.f32 %v688, %v755
    %v796 = vadd.f32 %v689, %v784
    %v797 = vadd.f32 %v690, %v758
    %v798 = vadd.f32 %v691, %v787
    %v799 = vadd.f32 %v692, %v761
    %v800 = vadd.f32 %v693, %v790
    %v801 = vadd.f32 %v694, %v764
    %v802 = vadd.f32 %v695, %v793
    %v803 = vld [vmem:[#allocation2 + $0x2] sm:$0x3f]
    %s804 = scalar_lea.vmem %s1, 224
    %v805 = vld [vmem:[%s804] sm:$0xff]
    %v806 = vld [vmem:[%s804 + $0x8] sm:$0xff]
    %v807 = vld [vmem:[%s804 + $0x10] sm:$0xff]
    %v808 = vld [vmem:[%s804 + $0x18] sm:$0xff]
    %810 = vst [vmem:[#allocation1] ss:$4 sm:$0xff] %v803
    %v811 = vld.sshfl [vmem:[#allocation1] sm:$0xff pattern:$0x73625140]
    %v812 = vld.sshfl [vmem:[#allocation1 + $0x8] sm:$0xff pattern:$0x73625140]
    %v813 = vld.sshfl [vmem:[#allocation1 + $0x10] sm:$0xff pattern:$0x73625140]
    %814 = vrot.lane.b32.xlu0 %v811, 112
    %v815 = vpop.permute.xlu0 %814
    %816 = vrot.lane.b32.xlu0 %v812, 112
    %v817 = vpop.permute.xlu0 %816
    %818 = vrot.lane.b32.xlu0 %v813, 112
    %v819 = vpop.permute.xlu0 %818
    %vm820 = vcmask 916480
    %v821 = vsel %vm820, %v815, %v817
    %v822 = vsel %vm820, %v817, %v819
    %v824 = vsel %vm113, %v805, 0
    %v827 = vsel %vm113, %v806, 0
    %v830 = vsel %vm113, %v807, 0
    %v833 = vsel %vm113, %v808, 0
    %v835 = vsel %vm81, %v821, 0
    %v837 = vsel %vm81, %v822, 0
    %839 = vmatpush.msra.mxu0 0.0
    %840 = vmatpush.msra.mxu0 0.0
    %841 = vmatpush.msra.mxu0 0.0
    %842 = vmatpush.msra.mxu0 0.0
    %843 = vmatpush.msra.mxu0 0.0
    %844 = vmatpush.msra.mxu0 0.0
    %845 = vmatpush.msra.mxu0 0.0
    %846 = vmatpush.msra.mxu0 0.0
    %847 = vmatpush.msra.mxu0 0.0
    %848 = vmatpush.msra.mxu0 0.0
    %849 = vmatpush.msra.mxu0 0.0
    %850 = vmatpush.msra.mxu0 0.0
    %851 = vmatpush.msra.mxu0 0.0
    %852 = vmatpush.msra.mxu0 0.0
    %853 = vmatpush.msra.mxu0 0.0
    %854 = vmatpush.msra.mxu0 %v835
    %855 = vmatmul.f32.gmra.mxu0 %v824
    %v856 = vpop.f32.mrf.mxu0
    %v857 = vadd.f32 0.0, %v856
    %858 = vmatmul.f32.gmra.mxu0 %v827
    %v859 = vpop.f32.mrf.mxu0
    %v860 = vadd.f32 0.0, %v859
    %861 = vmatmul.f32.gmra.mxu0 %v830
    %v862 = vpop.f32.mrf.mxu0
    %v863 = vadd.f32 0.0, %v862
    %864 = vmatmul.f32.gmra.mxu0 %v833
    %v865 = vpop.f32.mrf.mxu0
    %v866 = vadd.f32 0.0, %v865
    %867 = vdwg.mxu0
    %868 = vmatpush.msra.mxu0 0.0
    %869 = vmatpush.msra.mxu0 0.0
    %870 = vmatpush.msra.mxu0 0.0
    %871 = vmatpush.msra.mxu0 0.0
    %872 = vmatpush.msra.mxu0 0.0
    %873 = vmatpush.msra.mxu0 0.0
    %874 = vmatpush.msra.mxu0 0.0
    %875 = vmatpush.msra.mxu0 0.0
    %876 = vmatpush.msra.mxu0 0.0
    %877 = vmatpush.msra.mxu0 0.0
    %878 = vmatpush.msra.mxu0 0.0
    %879 = vmatpush.msra.mxu0 0.0
    %880 = vmatpush.msra.mxu0 0.0
    %881 = vmatpush.msra.mxu0 0.0
    %882 = vmatpush.msra.mxu0 0.0
    %883 = vmatpush.msra.mxu0 %v837
    %884 = vmatmul.f32.gmra.mxu0 %v824
    %v885 = vpop.f32.mrf.mxu0
    %v886 = vadd.f32 0.0, %v885
    %887 = vmatmul.f32.gmra.mxu0 %v827
    %v888 = vpop.f32.mrf.mxu0
    %v889 = vadd.f32 0.0, %v888
    %890 = vmatmul.f32.gmra.mxu0 %v830
    %v891 = vpop.f32.mrf.mxu0
    %v892 = vadd.f32 0.0, %v891
    %893 = vmatmul.f32.gmra.mxu0 %v833
    %v894 = vpop.f32.mrf.mxu0
    %v895 = vadd.f32 0.0, %v894
    %896 = vdwg.mxu0
    %v897 = vadd.f32 %v795, %v857
    %v898 = vadd.f32 %v796, %v886
    %v899 = vadd.f32 %v797, %v860
    %v900 = vadd.f32 %v798, %v889
    %v901 = vadd.f32 %v799, %v863
    %v902 = vadd.f32 %v800, %v892
    %v903 = vadd.f32 %v801, %v866
    %v904 = vadd.f32 %v802, %v895
    %v905 = vld [vmem:[#allocation2 + $0x2] sm:$0x3f]
    %906 = vrot.lane.b32.xlu0 %v280, 17
    %v907 = vpop.permute.xlu0 %906
    %v908 = vrot.slane %v907, 6
    %v909 = vsel %vm199, %v908, %v907
    %v911 = vmul.f32 %v905, %v909
    %s912 = scalar_lea.vmem %s1, 256
    %v913 = vld [vmem:[%s912] sm:$0xff]
    %v914 = vld [vmem:[%s912 + $0x8] sm:$0xff]
    %v915 = vld [vmem:[%s912 + $0x10] sm:$0xff]
    %v916 = vld [vmem:[%s912 + $0x18] sm:$0xff]
    %918 = vst [vmem:[#allocation1] ss:$4 sm:$0xff] %v911
    %v919 = vld.sshfl [vmem:[#allocation1] sm:$0xff pattern:$0x73625140]
    %v920 = vld.sshfl [vmem:[#allocation1 + $0x8] sm:$0xff pattern:$0x73625140]
    %v921 = vld.sshfl [vmem:[#allocation1 + $0x10] sm:$0xff pattern:$0x73625140]
    %922 = vrot.lane.b32.xlu0 %v919, 111
    %v923 = vpop.permute.xlu0 %922
    %924 = vrot.lane.b32.xlu0 %v920, 111
    %v925 = vpop.permute.xlu0 %924
    %926 = vrot.lane.b32.xlu0 %v921, 111
    %v927 = vpop.permute.xlu0 %926
    %v928 = vsel %vm86, %v923, %v925
    %v929 = vsel %vm86, %v925, %v927
    %v931 = vsel %vm113, %v913, 0
    %v934 = vsel %vm113, %v914, 0
    %v937 = vsel %vm113, %v915, 0
    %v940 = vsel %vm113, %v916, 0
    %v942 = vsel %vm81, %v928, 0
    %v944 = vsel %vm81, %v929, 0
    %946 = vmatpush.msra.mxu0 0.0
    %947 = vmatpush.msra.mxu0 0.0
    %948 = vmatpush.msra.mxu0 0.0
    %949 = vmatpush.msra.mxu0 0.0
    %950 = vmatpush.msra.mxu0 0.0
    %951 = vmatpush.msra.mxu0 0.0
    %952 = vmatpush.msra.mxu0 0.0
    %953 = vmatpush.msra.mxu0 0.0
    %954 = vmatpush.msra.mxu0 0.0
    %955 = vmatpush.msra.mxu0 0.0
    %956 = vmatpush.msra.mxu0 0.0
    %957 = vmatpush.msra.mxu0 0.0
    %958 = vmatpush.msra.mxu0 0.0
    %959 = vmatpush.msra.mxu0 0.0
    %960 = vmatpush.msra.mxu0 0.0
    %961 = vmatpush.msra.mxu0 %v942
    %962 = vmatmul.f32.gmra.mxu0 %v931
    %v963 = vpop.f32.mrf.mxu0
    %v964 = vadd.f32 0.0, %v963
    %965 = vmatmul.f32.gmra.mxu0 %v934
    %v966 = vpop.f32.mrf.mxu0
    %v967 = vadd.f32 0.0, %v966
    %968 = vmatmul.f32.gmra.mxu0 %v937
    %v969 = vpop.f32.mrf.mxu0
    %v970 = vadd.f32 0.0, %v969
    %971 = vmatmul.f32.gmra.mxu0 %v940
    %v972 = vpop.f32.mrf.mxu0
    %v973 = vadd.f32 0.0, %v972
    %974 = vdwg.mxu0
    %975 = vmatpush.msra.mxu0 0.0
    %976 = vmatpush.msra.mxu0 0.0
    %977 = vmatpush.msra.mxu0 0.0
    %978 = vmatpush.msra.mxu0 0.0
    %979 = vmatpush.msra.mxu0 0.0
    %980 = vmatpush.msra.mxu0 0.0
    %981 = vmatpush.msra.mxu0 0.0
    %982 = vmatpush.msra.mxu0 0.0
    %983 = vmatpush.msra.mxu0 0.0
    %984 = vmatpush.msra.mxu0 0.0
    %985 = vmatpush.msra.mxu0 0.0
    %986 = vmatpush.msra.mxu0 0.0
    %987 = vmatpush.msra.mxu0 0.0
    %988 = vmatpush.msra.mxu0 0.0
    %989 = vmatpush.msra.mxu0 0.0
    %990 = vmatpush.msra.mxu0 %v944
    %991 = vmatmul.f32.gmra.mxu0 %v931
    %v992 = vpop.f32.mrf.mxu0
    %v993 = vadd.f32 0.0, %v992
    %994 = vmatmul.f32.gmra.mxu0 %v934
    %v995 = vpop.f32.mrf.mxu0
    %v996 = vadd.f32 0.0, %v995
    %997 = vmatmul.f32.gmra.mxu0 %v937
    %v998 = vpop.f32.mrf.mxu0
    %v999 = vadd.f32 0.0, %v998
    %1000 = vmatmul.f32.gmra.mxu0 %v940
    %v1001 = vpop.f32.mrf.mxu0
    %v1002 = vadd.f32 0.0, %v1001
    %1003 = vdwg.mxu0
    %v1004 = vadd.f32 %v897, %v964
    %v1005 = vadd.f32 %v898, %v993
    %v1006 = vadd.f32 %v899, %v967
    %v1007 = vadd.f32 %v900, %v996
    %v1008 = vadd.f32 %v901, %v970
    %v1009 = vadd.f32 %v902, %v999
    %v1010 = vadd.f32 %v903, %v973
    %v1011 = vadd.f32 %v904, %v1002
    %v1012 = vld [vmem:[%s2] sm:$0xff]
    %v1013 = vld [vmem:[%s2 + $0x8] sm:$0xff]
    %v1014 = vld [vmem:[%s2 + $0x10] sm:$0xff]
    %v1015 = vld [vmem:[%s2 + $0x18] sm:$0xff]
    %1017 = vset.pattern.permute.xlu0 0
    %1018 = vperm.xlu0 %1017, %v1012
    %v1019 = vpop.permute.xlu0 %1018
    %1022 = vset.pattern.permute.xlu0 0
    %1023 = vperm.xlu0 %1022, %v1013
    %v1024 = vpop.permute.xlu0 %1023
    %1027 = vset.pattern.permute.xlu0 0
    %1028 = vperm.xlu0 %1027, %v1014
    %v1029 = vpop.permute.xlu0 %1028
    %1032 = vset.pattern.permute.xlu0 0
    %1033 = vperm.xlu0 %1032, %v1015
    %v1034 = vpop.permute.xlu0 %1033
    %v1036 = vadd.f32 %v1004, %v1019
    %v1037 = vadd.f32 %v1005, %v1019
    %v1038 = vadd.f32 %v1006, %v1024
    %v1039 = vadd.f32 %v1007, %v1024
    %v1040 = vadd.f32 %v1008, %v1029
    %v1041 = vadd.f32 %v1009, %v1029
    %v1042 = vadd.f32 %v1010, %v1034
    %v1043 = vadd.f32 %v1011, %v1034
    %v1044 = vmax.f32 %v1036, 0.0
    %v1045 = vmax.f32 %v1037, 0.0
    %v1046 = vmax.f32 %v1038, 0.0
    %v1047 = vmax.f32 %v1039, 0.0
    %v1048 = vmax.f32 %v1040, 0.0
    %v1049 = vmax.f32 %v1041, 0.0
    %v1050 = vmax.f32 %v1042, 0.0
    %v1051 = vmax.f32 %v1043, 0.0
    %v1052 = vld [vmem:[%s3] sm:$0xff]
    %v1053 = vld [vmem:[%s3 + $0x8] sm:$0xff]
    %v1054 = vld [vmem:[%s3 + $0x10] sm:$0xff]
    %v1055 = vld [vmem:[%s3 + $0x18] sm:$0xff]
    %v1056 = vld [vmem:[%s4] sm:$0xff]
    %v1057 = vld [vmem:[%s4 + $0x8] sm:$0xff]
    %v1058 = vld [vmem:[%s4 + $0x10] sm:$0xff]
    %v1059 = vld [vmem:[%s4 + $0x18] sm:$0xff]
    %1061 = vset.pattern.permute.xlu0 0
    %1062 = vperm.xlu0 %1061, %v1056
    %v1063 = vpop.permute.xlu0 %1062
    %1066 = vset.pattern.permute.xlu0 0
    %1067 = vperm.xlu0 %1066, %v1057
    %v1068 = vpop.permute.xlu0 %1067
    %1071 = vset.pattern.permute.xlu0 0
    %1072 = vperm.xlu0 %1071, %v1058
    %v1073 = vpop.permute.xlu0 %1072
    %1076 = vset.pattern.permute.xlu0 0
    %1077 = vperm.xlu0 %1076, %v1059
    %v1078 = vpop.permute.xlu0 %1077
    %vm1080 = vcmask 261120
    %v1082 = vsel %vm1080, %v1052, 0
    %v1085 = vsel %vm1080, %v1053, 0
    %v1088 = vsel %vm1080, %v1054, 0
    %v1091 = vsel %vm1080, %v1055, 0
    %1093 = vmatpush.msra.mxu0 0.0
    %1094 = vmatpush.msra.mxu0 0.0
    %1095 = vmatpush.msra.mxu0 0.0
    %1096 = vmatpush.msra.mxu0 0.0
    %1097 = vmatpush.msra.mxu0 0.0
    %1098 = vmatpush.msra.mxu0 0.0
    %1099 = vmatpush.msra.mxu0 0.0
    %1100 = vmatpush.msra.mxu0 0.0
    %1101 = vmatpush.msra.mxu0 0.0
    %1102 = vmatpush.msra.mxu0 0.0
    %1103 = vmatpush.msra.mxu0 0.0
    %1104 = vmatpush.msra.mxu0 0.0
    %1105 = vmatpush.msra.mxu0 %v1050
    %1106 = vmatpush.msra.mxu0 %v1048
    %1107 = vmatpush.msra.mxu0 %v1046
    %1108 = vmatpush.msra.mxu0 %v1044
    %1109 = vmatmul.f32.gmra.mxu0 %v1082
    %v1110 = vpop.f32.mrf.mxu0
    %v1111 = vadd.f32 %v1063, %v1110
    %1112 = vmatmul.f32.gmra.mxu0 %v1085
    %v1113 = vpop.f32.mrf.mxu0
    %v1114 = vadd.f32 %v1068, %v1113
    %1115 = vmatmul.f32.gmra.mxu0 %v1088
    %v1116 = vpop.f32.mrf.mxu0
    %v1117 = vadd.f32 %v1073, %v1116
    %1118 = vmatmul.f32.gmra.mxu0 %v1091
    %v1119 = vpop.f32.mrf.mxu0
    %v1120 = vadd.f32 %v1078, %v1119
    %1121 = vdwg.mxu0
    %1122 = vmatpush.msra.mxu0 0.0
    %1123 = vmatpush.msra.mxu0 0.0
    %1124 = vmatpush.msra.mxu0 0.0
    %1125 = vmatpush.msra.mxu0 0.0
    %1126 = vmatpush.msra.mxu0 0.0
    %1127 = vmatpush.msra.mxu0 0.0
    %1128 = vmatpush.msra.mxu0 0.0
    %1129 = vmatpush.msra.mxu0 0.0
    %1130 = vmatpush.msra.mxu0 0.0
    %1131 = vmatpush.msra.mxu0 0.0
    %1132 = vmatpush.msra.mxu0 0.0
    %1133 = vmatpush.msra.mxu0 0.0
    %1134 = vmatpush.msra.mxu0 %v1051
    %1135 = vmatpush.msra.mxu0 %v1049
    %1136 = vmatpush.msra.mxu0 %v1047
    %1137 = vmatpush.msra.mxu0 %v1045
    %1138 = vmatmul.f32.gmra.mxu0 %v1082
    %v1139 = vpop.f32.mrf.mxu0
    %v1140 = vadd.f32 %v1063, %v1139
    %1141 = vmatmul.f32.gmra.mxu0 %v1085
    %v1142 = vpop.f32.mrf.mxu0
    %v1143 = vadd.f32 %v1068, %v1142
    %1144 = vmatmul.f32.gmra.mxu0 %v1088
    %v1145 = vpop.f32.mrf.mxu0
    %v1146 = vadd.f32 %v1073, %v1145
    %1147 = vmatmul.f32.gmra.mxu0 %v1091
    %v1148 = vpop.f32.mrf.mxu0
    %v1149 = vadd.f32 %v1078, %v1148
    %1150 = vdwg.mxu0
    %v1151 = vmax.f32 %v1111, 0.0
    %v1152 = vmax.f32 %v1140, 0.0
    %v1153 = vmax.f32 %v1114, 0.0
    %v1154 = vmax.f32 %v1143, 0.0
    %v1155 = vmax.f32 %v1117, 0.0
    %v1156 = vmax.f32 %v1146, 0.0
    %v1157 = vmax.f32 %v1120, 0.0
    %v1158 = vmax.f32 %v1149, 0.0
    %1159 = vst [vmem:[#allocation3 + $0x8] sm:$0xff] %v1151
    %1160 = vst [vmem:[#allocation3 + $0x10] sm:$0xff] %v1152
    %1161 = vst [vmem:[#allocation3 + $0x28] sm:$0xff] %v1153
    %1162 = vst [vmem:[#allocation3 + $0x30] sm:$0xff] %v1154
    %1163 = vst [vmem:[#allocation3 + $0x48] sm:$0xff] %v1155
    %1164 = vst [vmem:[#allocation3 + $0x50] sm:$0xff] %v1156
    %1165 = vst [vmem:[#allocation3 + $0x68] sm:$0xff] %v1157
    %1166 = vst [vmem:[#allocation3 + $0x70] sm:$0xff] %v1158
    %v1167 = vld [vmem:[#allocation3] sm:$0xff]
    %v1168 = vld [vmem:[#allocation3 + $0x8] sm:$0xff]
    %v1169 = vld [vmem:[#allocation3 + $0x10] sm:$0xff]
    %v1170 = vld [vmem:[#allocation3 + $0x20] sm:$0xff]
    %v1171 = vld [vmem:[#allocation3 + $0x28] sm:$0xff]
    %v1172 = vld [vmem:[#allocation3 + $0x30] sm:$0xff]
    %v1173 = vld [vmem:[#allocation3 + $0x40] sm:$0xff]
    %v1174 = vld [vmem:[#allocation3 + $0x48] sm:$0xff]
    %v1175 = vld [vmem:[#allocation3 + $0x50] sm:$0xff]
    %v1176 = vld [vmem:[#allocation3 + $0x60] sm:$0xff]
    %v1177 = vld [vmem:[#allocation3 + $0x68] sm:$0xff]
    %v1178 = vld [vmem:[#allocation3 + $0x70] sm:$0xff]
    %v1179 = vld [vmem:[%s5] sm:$0xf]
    %s1180 = scalar_lea.vmem %s5, 4
    %v1181 = vld [vmem:[%s1180] sm:$0xf]
    %s1182 = scalar_lea.vmem %s5, 8
    %v1183 = vld [vmem:[%s1182] sm:$0xf]
    %s1184 = scalar_lea.vmem %s5, 12
    %v1185 = vld [vmem:[%s1184] sm:$0xf]
    %1198 = vrot.lane.b32.xlu0 %v1167, 1
    %v1199 = vpop.permute.xlu0 %1198
    %1200 = vrot.lane.b32.xlu0 %v1168, 1
    %v1201 = vpop.permute.xlu0 %1200
    %1202 = vrot.lane.b32.xlu0 %v1169, 1
    %v1203 = vpop.permute.xlu0 %1202
    %1204 = vrot.lane.b32.xlu0 %v1170, 1
    %v1205 = vpop.permute.xlu0 %1204
    %1206 = vrot.lane.b32.xlu0 %v1171, 1
    %v1207 = vpop.permute.xlu0 %1206
    %1208 = vrot.lane.b32.xlu0 %v1172, 1
    %v1209 = vpop.permute.xlu0 %1208
    %1210 = vrot.lane.b32.xlu0 %v1173, 1
    %v1211 = vpop.permute.xlu0 %1210
    %1212 = vrot.lane.b32.xlu0 %v1174, 1
    %v1213 = vpop.permute.xlu0 %1212
    %1214 = vrot.lane.b32.xlu0 %v1175, 1
    %v1215 = vpop.permute.xlu0 %1214
    %1216 = vrot.lane.b32.xlu0 %v1176, 1
    %v1217 = vpop.permute.xlu0 %1216
    %1218 = vrot.lane.b32.xlu0 %v1177, 1
    %v1219 = vpop.permute.xlu0 %1218
    %1220 = vrot.lane.b32.xlu0 %v1178, 1
    %v1221 = vpop.permute.xlu0 %1220
    %v1222 = vsel %vm413, %v1199, %v1201
    %v1223 = vsel %vm413, %v1201, %v1203
    %v1224 = vsel %vm413, %v1205, %v1207
    %v1225 = vsel %vm413, %v1207, %v1209
    %v1226 = vsel %vm413, %v1211, %v1213
    %v1227 = vsel %vm413, %v1213, %v1215
    %v1228 = vsel %vm413, %v1217, %v1219
    %v1229 = vsel %vm413, %v1219, %v1221
    %v1239 = vsel %vm1080, %v1185, 0
    %1241 = vmatpush.msra.mxu0 0.0
    %1242 = vmatpush.msra.mxu0 0.0
    %1243 = vmatpush.msra.mxu0 0.0
    %1244 = vmatpush.msra.mxu0 0.0
    %1245 = vmatpush.msra.mxu0 0.0
    %1246 = vmatpush.msra.mxu0 0.0
    %1247 = vmatpush.msra.mxu0 0.0
    %1248 = vmatpush.msra.mxu0 0.0
    %1249 = vmatpush.msra.mxu0 0.0
    %1250 = vmatpush.msra.mxu0 0.0
    %1251 = vmatpush.msra.mxu0 0.0
    %1252 = vmatpush.msra.mxu0 0.0
    %1253 = vmatpush.msra.mxu0 %v1228
    %1254 = vmatpush.msra.mxu0 %v1226
    %1255 = vmatpush.msra.mxu0 %v1224
    %1256 = vmatpush.msra.mxu0 %v1222
    %1257 = vmatmul.f32.gmra.mxu0 %v1239
    %v1258 = vpop.f32.mrf.mxu0
    %v1259 = vadd.f32 0.0, %v1258
    %1260 = vdwg.mxu0
    %1261 = vmatpush.msra.mxu0 0.0
    %1262 = vmatpush.msra.mxu0 0.0
    %1263 = vmatpush.msra.mxu0 0.0
    %1264 = vmatpush.msra.mxu0 0.0
    %1265 = vmatpush.msra.mxu0 0.0
    %1266 = vmatpush.msra.mxu0 0.0
    %1267 = vmatpush.msra.mxu0 0.0
    %1268 = vmatpush.msra.mxu0 0.0
    %1269 = vmatpush.msra.mxu0 0.0
    %1270 = vmatpush.msra.mxu0 0.0
    %1271 = vmatpush.msra.mxu0 0.0
    %1272 = vmatpush.msra.mxu0 0.0
    %1273 = vmatpush.msra.mxu0 %v1229
    %1274 = vmatpush.msra.mxu0 %v1227
    %1275 = vmatpush.msra.mxu0 %v1225
    %1276 = vmatpush.msra.mxu0 %v1223
    %1277 = vmatmul.f32.gmra.mxu0 %v1239
    %v1278 = vpop.f32.mrf.mxu0
    %v1279 = vadd.f32 0.0, %v1278
    %1280 = vdwg.mxu0
    %1281 = vrot.lane.b32.xlu0 %v1167, 17
    %v1282 = vpop.permute.xlu0 %1281
    %1283 = vrot.lane.b32.xlu0 %v1168, 17
    %v1284 = vpop.permute.xlu0 %1283
    %1285 = vrot.lane.b32.xlu0 %v1169, 17
    %v1286 = vpop.permute.xlu0 %1285
    %1287 = vrot.lane.b32.xlu0 %v1170, 17
    %v1288 = vpop.permute.xlu0 %1287
    %1289 = vrot.lane.b32.xlu0 %v1171, 17
    %v1290 = vpop.permute.xlu0 %1289
    %1291 = vrot.lane.b32.xlu0 %v1172, 17
    %v1292 = vpop.permute.xlu0 %1291
    %1293 = vrot.lane.b32.xlu0 %v1173, 17
    %v1294 = vpop.permute.xlu0 %1293
    %1295 = vrot.lane.b32.xlu0 %v1174, 17
    %v1296 = vpop.permute.xlu0 %1295
    %1297 = vrot.lane.b32.xlu0 %v1175, 17
    %v1298 = vpop.permute.xlu0 %1297
    %1299 = vrot.lane.b32.xlu0 %v1176, 17
    %v1300 = vpop.permute.xlu0 %1299
    %1301 = vrot.lane.b32.xlu0 %v1177, 17
    %v1302 = vpop.permute.xlu0 %1301
    %1303 = vrot.lane.b32.xlu0 %v1178, 17
    %v1304 = vpop.permute.xlu0 %1303
    %v1305 = vsel %vm199, %v1282, %v1284
    %v1306 = vsel %vm199, %v1284, %v1286
    %v1307 = vsel %vm199, %v1288, %v1290
    %v1308 = vsel %vm199, %v1290, %v1292
    %v1309 = vsel %vm199, %v1294, %v1296
    %v1310 = vsel %vm199, %v1296, %v1298
    %v1311 = vsel %vm199, %v1300, %v1302
    %v1312 = vsel %vm199, %v1302, %v1304
    %v1322 = vsel %vm1080, %v1179, 0
    %1324 = vmatpush.msra.mxu0 0.0
    %1325 = vmatpush.msra.mxu0 0.0
    %1326 = vmatpush.msra.mxu0 0.0
    %1327 = vmatpush.msra.mxu0 0.0
    %1328 = vmatpush.msra.mxu0 0.0
    %1329 = vmatpush.msra.mxu0 0.0
    %1330 = vmatpush.msra.mxu0 0.0
    %1331 = vmatpush.msra.mxu0 0.0
    %1332 = vmatpush.msra.mxu0 0.0
    %1333 = vmatpush.msra.mxu0 0.0
    %1334 = vmatpush.msra.mxu0 0.0
    %1335 = vmatpush.msra.mxu0 0.0
    %1336 = vmatpush.msra.mxu0 %v1311
    %1337 = vmatpush.msra.mxu0 %v1309
    %1338 = vmatpush.msra.mxu0 %v1307
    %1339 = vmatpush.msra.mxu0 %v1305
    %1340 = vmatmul.f32.gmra.mxu0 %v1322
    %v1341 = vpop.f32.mrf.mxu0
    %v1342 = vadd.f32 %v1259, %v1341
    %1343 = vdwg.mxu0
    %1344 = vmatpush.msra.mxu0 0.0
    %1345 = vmatpush.msra.mxu0 0.0
    %1346 = vmatpush.msra.mxu0 0.0
    %1347 = vmatpush.msra.mxu0 0.0
    %1348 = vmatpush.msra.mxu0 0.0
    %1349 = vmatpush.msra.mxu0 0.0
    %1350 = vmatpush.msra.mxu0 0.0
    %1351 = vmatpush.msra.mxu0 0.0
    %1352 = vmatpush.msra.mxu0 0.0
    %1353 = vmatpush.msra.mxu0 0.0
    %1354 = vmatpush.msra.mxu0 0.0
    %1355 = vmatpush.msra.mxu0 0.0
    %1356 = vmatpush.msra.mxu0 %v1312
    %1357 = vmatpush.msra.mxu0 %v1310
    %1358 = vmatpush.msra.mxu0 %v1308
    %1359 = vmatpush.msra.mxu0 %v1306
    %1360 = vmatmul.f32.gmra.mxu0 %v1322
    %v1361 = vpop.f32.mrf.mxu0
    %v1362 = vadd.f32 %v1279, %v1361
    %1363 = vdwg.mxu0
    %s1364 = scalar_lea.vmem %s5, 16
    %v1365 = vld [vmem:[%s1364] sm:$0xf]
    %v1367 = vsel %vm1080, %v1365, 0
    %1369 = vmatpush.msra.mxu0 0.0
    %1370 = vmatpush.msra.mxu0 0.0
    %1371 = vmatpush.msra.mxu0 0.0
    %1372 = vmatpush.msra.mxu0 0.0
    %1373 = vmatpush.msra.mxu0 0.0
    %1374 = vmatpush.msra.mxu0 0.0
    %1375 = vmatpush.msra.mxu0 0.0
    %1376 = vmatpush.msra.mxu0 0.0
    %1377 = vmatpush.msra.mxu0 0.0
    %1378 = vmatpush.msra.mxu0 0.0
    %1379 = vmatpush.msra.mxu0 0.0
    %1380 = vmatpush.msra.mxu0 0.0
    %1381 = vmatpush.msra.mxu0 %v1157
    %1382 = vmatpush.msra.mxu0 %v1155
    %1383 = vmatpush.msra.mxu0 %v1153
    %1384 = vmatpush.msra.mxu0 %v1151
    %1385 = vmatmul.f32.gmra.mxu0 %v1367
    %v1386 = vpop.f32.mrf.mxu0
    %v1387 = vadd.f32 0.0, %v1386
    %1388 = vdwg.mxu0
    %1389 = vmatpush.msra.mxu0 0.0
    %1390 = vmatpush.msra.mxu0 0.0
    %1391 = vmatpush.msra.mxu0 0.0
    %1392 = vmatpush.msra.mxu0 0.0
    %1393 = vmatpush.msra.mxu0 0.0
    %1394 = vmatpush.msra.mxu0 0.0
    %1395 = vmatpush.msra.mxu0 0.0
    %1396 = vmatpush.msra.mxu0 0.0
    %1397 = vmatpush.msra.mxu0 0.0
    %1398 = vmatpush.msra.mxu0 0.0
    %1399 = vmatpush.msra.mxu0 0.0
    %1400 = vmatpush.msra.mxu0 0.0
    %1401 = vmatpush.msra.mxu0 %v1158
    %1402 = vmatpush.msra.mxu0 %v1156
    %1403 = vmatpush.msra.mxu0 %v1154
    %1404 = vmatpush.msra.mxu0 %v1152
    %1405 = vmatmul.f32.gmra.mxu0 %v1367
    %v1406 = vpop.f32.mrf.mxu0
    %v1407 = vadd.f32 0.0, %v1406
    %1408 = vdwg.mxu0
    %1409 = vrot.lane.b32.xlu0 %v1167, 16
    %v1410 = vpop.permute.xlu0 %1409
    %1411 = vrot.lane.b32.xlu0 %v1168, 16
    %v1412 = vpop.permute.xlu0 %1411
    %1413 = vrot.lane.b32.xlu0 %v1169, 16
    %v1414 = vpop.permute.xlu0 %1413
    %1415 = vrot.lane.b32.xlu0 %v1170, 16
    %v1416 = vpop.permute.xlu0 %1415
    %1417 = vrot.lane.b32.xlu0 %v1171, 16
    %v1418 = vpop.permute.xlu0 %1417
    %1419 = vrot.lane.b32.xlu0 %v1172, 16
    %v1420 = vpop.permute.xlu0 %1419
    %1421 = vrot.lane.b32.xlu0 %v1173, 16
    %v1422 = vpop.permute.xlu0 %1421
    %1423 = vrot.lane.b32.xlu0 %v1174, 16
    %v1424 = vpop.permute.xlu0 %1423
    %1425 = vrot.lane.b32.xlu0 %v1175, 16
    %v1426 = vpop.permute.xlu0 %1425
    %1427 = vrot.lane.b32.xlu0 %v1176, 16
    %v1428 = vpop.permute.xlu0 %1427
    %1429 = vrot.lane.b32.xlu0 %v1177, 16
    %v1430 = vpop.permute.xlu0 %1429
    %1431 = vrot.lane.b32.xlu0 %v1178, 16
    %v1432 = vpop.permute.xlu0 %1431
    %v1433 = vsel %vm110, %v1410, %v1412
    %v1434 = vsel %vm110, %v1412, %v1414
    %v1435 = vsel %vm110, %v1416, %v1418
    %v1436 = vsel %vm110, %v1418, %v1420
    %v1437 = vsel %vm110, %v1422, %v1424
    %v1438 = vsel %vm110, %v1424, %v1426
    %v1439 = vsel %vm110, %v1428, %v1430
    %v1440 = vsel %vm110, %v1430, %v1432
    %v1450 = vsel %vm1080, %v1181, 0
    %1452 = vmatpush.msra.mxu0 0.0
    %1453 = vmatpush.msra.mxu0 0.0
    %1454 = vmatpush.msra.mxu0 0.0
    %1455 = vmatpush.msra.mxu0 0.0
    %1456 = vmatpush.msra.mxu0 0.0
    %1457 = vmatpush.msra.mxu0 0.0
    %1458 = vmatpush.msra.mxu0 0.0
    %1459 = vmatpush.msra.mxu0 0.0
    %1460 = vmatpush.msra.mxu0 0.0
    %1461 = vmatpush.msra.mxu0 0.0
    %1462 = vmatpush.msra.mxu0 0.0
    %1463 = vmatpush.msra.mxu0 0.0
    %1464 = vmatpush.msra.mxu0 %v1439
    %1465 = vmatpush.msra.mxu0 %v1437
    %1466 = vmatpush.msra.mxu0 %v1435
    %1467 = vmatpush.msra.mxu0 %v1433
    %1468 = vmatmul.f32.gmra.mxu0 %v1450
    %v1469 = vpop.f32.mrf.mxu0
    %v1470 = vadd.f32 %v1387, %v1469
    %1471 = vdwg.mxu0
    %1472 = vmatpush.msra.mxu0 0.0
    %1473 = vmatpush.msra.mxu0 0.0
    %1474 = vmatpush.msra.mxu0 0.0
    %1475 = vmatpush.msra.mxu0 0.0
    %1476 = vmatpush.msra.mxu0 0.0
    %1477 = vmatpush.msra.mxu0 0.0
    %1478 = vmatpush.msra.mxu0 0.0
    %1479 = vmatpush.msra.mxu0 0.0
    %1480 = vmatpush.msra.mxu0 0.0
    %1481 = vmatpush.msra.mxu0 0.0
    %1482 = vmatpush.msra.mxu0 0.0
    %1483 = vmatpush.msra.mxu0 0.0
    %1484 = vmatpush.msra.mxu0 %v1440
    %1485 = vmatpush.msra.mxu0 %v1438
    %1486 = vmatpush.msra.mxu0 %v1436
    %1487 = vmatpush.msra.mxu0 %v1434
    %1488 = vmatmul.f32.gmra.mxu0 %v1450
    %v1489 = vpop.f32.mrf.mxu0
    %v1490 = vadd.f32 %v1407, %v1489
    %1491 = vdwg.mxu0
    %v1492 = vld [vmem:[#allocation3 + $0x8] sm:$0xff]
    %v1493 = vld [vmem:[#allocation3 + $0x10] sm:$0xff]
    %v1494 = vld [vmem:[#allocation3 + $0x18] sm:$0xff]
    %v1495 = vld [vmem:[#allocation3 + $0x28] sm:$0xff]
    %v1496 = vld [vmem:[#allocation3 + $0x30] sm:$0xff]
    %v1497 = vld [vmem:[#allocation3 + $0x38] sm:$0xff]
    %v1498 = vld [vmem:[#allocation3 + $0x48] sm:$0xff]
    %v1499 = vld [vmem:[#allocation3 + $0x50] sm:$0xff]
    %v1500 = vld [vmem:[#allocation3 + $0x58] sm:$0xff]
    %v1501 = vld [vmem:[#allocation3 + $0x68] sm:$0xff]
    %v1502 = vld [vmem:[#allocation3 + $0x70] sm:$0xff]
    %v1503 = vld [vmem:[#allocation3 + $0x78] sm:$0xff]
    %s1504 = scalar_lea.vmem %s5, 20
    %v1505 = vld [vmem:[%s1504] sm:$0xf]
    %1518 = vrot.lane.b32.xlu0 %v1492, 127
    %v1519 = vpop.permute.xlu0 %1518
    %1520 = vrot.lane.b32.xlu0 %v1493, 127
    %v1521 = vpop.permute.xlu0 %1520
    %1522 = vrot.lane.b32.xlu0 %v1494, 127
    %v1523 = vpop.permute.xlu0 %1522
    %1524 = vrot.lane.b32.xlu0 %v1495, 127
    %v1525 = vpop.permute.xlu0 %1524
    %1526 = vrot.lane.b32.xlu0 %v1496, 127
    %v1527 = vpop.permute.xlu0 %1526
    %1528 = vrot.lane.b32.xlu0 %v1497, 127
    %v1529 = vpop.permute.xlu0 %1528
    %1530 = vrot.lane.b32.xlu0 %v1498, 127
    %v1531 = vpop.permute.xlu0 %1530
    %1532 = vrot.lane.b32.xlu0 %v1499, 127
    %v1533 = vpop.permute.xlu0 %1532
    %1534 = vrot.lane.b32.xlu0 %v1500, 127
    %v1535 = vpop.permute.xlu0 %1534
    %1536 = vrot.lane.b32.xlu0 %v1501, 127
    %v1537 = vpop.permute.xlu0 %1536
    %1538 = vrot.lane.b32.xlu0 %v1502, 127
    %v1539 = vpop.permute.xlu0 %1538
    %1540 = vrot.lane.b32.xlu0 %v1503, 127
    %v1541 = vpop.permute.xlu0 %1540
    %v1542 = vsel %vm393, %v1519, %v1521
    %v1543 = vsel %vm393, %v1521, %v1523
    %v1544 = vsel %vm393, %v1525, %v1527
    %v1545 = vsel %vm393, %v1527, %v1529
    %v1546 = vsel %vm393, %v1531, %v1533
    %v1547 = vsel %vm393, %v1533, %v1535
    %v1548 = vsel %vm393, %v1537, %v1539
    %v1549 = vsel %vm393, %v1539, %v1541
    %v1559 = vsel %vm1080, %v1505, 0
    %1561 = vmatpush.msra.mxu0 0.0
    %1562 = vmatpush.msra.mxu0 0.0
    %1563 = vmatpush.msra.mxu0 0.0
    %1564 = vmatpush.msra.mxu0 0.0
    %1565 = vmatpush.msra.mxu0 0.0
    %1566 = vmatpush.msra.mxu0 0.0
    %1567 = vmatpush.msra.mxu0 0.0
    %1568 = vmatpush.msra.mxu0 0.0
    %1569 = vmatpush.msra.mxu0 0.0
    %1570 = vmatpush.msra.mxu0 0.0
    %1571 = vmatpush.msra.mxu0 0.0
    %1572 = vmatpush.msra.mxu0 0.0
    %1573 = vmatpush.msra.mxu0 %v1548
    %1574 = vmatpush.msra.mxu0 %v1546
    %1575 = vmatpush.msra.mxu0 %v1544
    %1576 = vmatpush.msra.mxu0 %v1542
    %1577 = vmatmul.f32.gmra.mxu0 %v1559
    %v1578 = vpop.f32.mrf.mxu0
    %v1579 = vadd.f32 0.0, %v1578
    %1580 = vdwg.mxu0
    %1581 = vmatpush.msra.mxu0 0.0
    %1582 = vmatpush.msra.mxu0 0.0
    %1583 = vmatpush.msra.mxu0 0.0
    %1584 = vmatpush.msra.mxu0 0.0
    %1585 = vmatpush.msra.mxu0 0.0
    %1586 = vmatpush.msra.mxu0 0.0
    %1587 = vmatpush.msra.mxu0 0.0
    %1588 = vmatpush.msra.mxu0 0.0
    %1589 = vmatpush.msra.mxu0 0.0
    %1590 = vmatpush.msra.mxu0 0.0
    %1591 = vmatpush.msra.mxu0 0.0
    %1592 = vmatpush.msra.mxu0 0.0
    %1593 = vmatpush.msra.mxu0 %v1549
    %1594 = vmatpush.msra.mxu0 %v1547
    %1595 = vmatpush.msra.mxu0 %v1545
    %1596 = vmatpush.msra.mxu0 %v1543
    %1597 = vmatmul.f32.gmra.mxu0 %v1559
    %v1598 = vpop.f32.mrf.mxu0
    %v1599 = vadd.f32 0.0, %v1598
    %1600 = vdwg.mxu0
    %1601 = vrot.lane.b32.xlu0 %v1167, 15
    %v1602 = vpop.permute.xlu0 %1601
    %1603 = vrot.lane.b32.xlu0 %v1168, 15
    %v1604 = vpop.permute.xlu0 %1603
    %1605 = vrot.lane.b32.xlu0 %v1169, 15
    %v1606 = vpop.permute.xlu0 %1605
    %1607 = vrot.lane.b32.xlu0 %v1170, 15
    %v1608 = vpop.permute.xlu0 %1607
    %1609 = vrot.lane.b32.xlu0 %v1171, 15
    %v1610 = vpop.permute.xlu0 %1609
    %1611 = vrot.lane.b32.xlu0 %v1172, 15
    %v1612 = vpop.permute.xlu0 %1611
    %1613 = vrot.lane.b32.xlu0 %v1173, 15
    %v1614 = vpop.permute.xlu0 %1613
    %1615 = vrot.lane.b32.xlu0 %v1174, 15
    %v1616 = vpop.permute.xlu0 %1615
    %1617 = vrot.lane.b32.xlu0 %v1175, 15
    %v1618 = vpop.permute.xlu0 %1617
    %1619 = vrot.lane.b32.xlu0 %v1176, 15
    %v1620 = vpop.permute.xlu0 %1619
    %1621 = vrot.lane.b32.xlu0 %v1177, 15
    %v1622 = vpop.permute.xlu0 %1621
    %1623 = vrot.lane.b32.xlu0 %v1178, 15
    %v1624 = vpop.permute.xlu0 %1623
    %v1625 = vsel %vm304, %v1602, %v1604
    %v1626 = vsel %vm304, %v1604, %v1606
    %v1627 = vsel %vm304, %v1608, %v1610
    %v1628 = vsel %vm304, %v1610, %v1612
    %v1629 = vsel %vm304, %v1614, %v1616
    %v1630 = vsel %vm304, %v1616, %v1618
    %v1631 = vsel %vm304, %v1620, %v1622
    %v1632 = vsel %vm304, %v1622, %v1624
    %v1642 = vsel %vm1080, %v1183, 0
    %1644 = vmatpush.msra.mxu0 0.0
    %1645 = vmatpush.msra.mxu0 0.0
    %1646 = vmatpush.msra.mxu0 0.0
    %1647 = vmatpush.msra.mxu0 0.0
    %1648 = vmatpush.msra.mxu0 0.0
    %1649 = vmatpush.msra.mxu0 0.0
    %1650 = vmatpush.msra.mxu0 0.0
    %1651 = vmatpush.msra.mxu0 0.0
    %1652 = vmatpush.msra.mxu0 0.0
    %1653 = vmatpush.msra.mxu0 0.0
    %1654 = vmatpush.msra.mxu0 0.0
    %1655 = vmatpush.msra.mxu0 0.0
    %1656 = vmatpush.msra.mxu0 %v1631
    %1657 = vmatpush.msra.mxu0 %v1629
    %1658 = vmatpush.msra.mxu0 %v1627
    %1659 = vmatpush.msra.mxu0 %v1625
    %1660 = vmatmul.f32.gmra.mxu0 %v1642
    %v1661 = vpop.f32.mrf.mxu0
    %v1662 = vadd.f32 %v1579, %v1661
    %1663 = vdwg.mxu0
    %1664 = vmatpush.msra.mxu0 0.0
    %1665 = vmatpush.msra.mxu0 0.0
    %1666 = vmatpush.msra.mxu0 0.0
    %1667 = vmatpush.msra.mxu0 0.0
    %1668 = vmatpush.msra.mxu0 0.0
    %1669 = vmatpush.msra.mxu0 0.0
    %1670 = vmatpush.msra.mxu0 0.0
    %1671 = vmatpush.msra.mxu0 0.0
    %1672 = vmatpush.msra.mxu0 0.0
    %1673 = vmatpush.msra.mxu0 0.0
    %1674 = vmatpush.msra.mxu0 0.0
    %1675 = vmatpush.msra.mxu0 0.0
    %1676 = vmatpush.msra.mxu0 %v1632
    %1677 = vmatpush.msra.mxu0 %v1630
    %1678 = vmatpush.msra.mxu0 %v1628
    %1679 = vmatpush.msra.mxu0 %v1626
    %1680 = vmatmul.f32.gmra.mxu0 %v1642
    %v1681 = vpop.f32.mrf.mxu0
    %v1682 = vadd.f32 %v1599, %v1681
    %1683 = vdwg.mxu0
    %s1684 = scalar_lea.vmem %s5, 24
    %v1685 = vld [vmem:[%s1684] sm:$0xf]
    %1686 = vrot.lane.b32.xlu0 %v1492, 113
    %v1687 = vpop.permute.xlu0 %1686
    %1688 = vrot.lane.b32.xlu0 %v1493, 113
    %v1689 = vpop.permute.xlu0 %1688
    %1690 = vrot.lane.b32.xlu0 %v1494, 113
    %v1691 = vpop.permute.xlu0 %1690
    %1692 = vrot.lane.b32.xlu0 %v1495, 113
    %v1693 = vpop.permute.xlu0 %1692
    %1694 = vrot.lane.b32.xlu0 %v1496, 113
    %v1695 = vpop.permute.xlu0 %1694
    %1696 = vrot.lane.b32.xlu0 %v1497, 113
    %v1697 = vpop.permute.xlu0 %1696
    %1698 = vrot.lane.b32.xlu0 %v1498, 113
    %v1699 = vpop.permute.xlu0 %1698
    %1700 = vrot.lane.b32.xlu0 %v1499, 113
    %v1701 = vpop.permute.xlu0 %1700
    %1702 = vrot.lane.b32.xlu0 %v1500, 113
    %v1703 = vpop.permute.xlu0 %1702
    %1704 = vrot.lane.b32.xlu0 %v1501, 113
    %v1705 = vpop.permute.xlu0 %1704
    %1706 = vrot.lane.b32.xlu0 %v1502, 113
    %v1707 = vpop.permute.xlu0 %1706
    %1708 = vrot.lane.b32.xlu0 %v1503, 113
    %v1709 = vpop.permute.xlu0 %1708
    %v1710 = vsel %vm284, %v1687, %v1689
    %v1711 = vsel %vm284, %v1689, %v1691
    %v1712 = vsel %vm284, %v1693, %v1695
    %v1713 = vsel %vm284, %v1695, %v1697
    %v1714 = vsel %vm284, %v1699, %v1701
    %v1715 = vsel %vm284, %v1701, %v1703
    %v1716 = vsel %vm284, %v1705, %v1707
    %v1717 = vsel %vm284, %v1707, %v1709
    %v1727 = vsel %vm1080, %v1685, 0
    %1729 = vmatpush.msra.mxu0 0.0
    %1730 = vmatpush.msra.mxu0 0.0
    %1731 = vmatpush.msra.mxu0 0.0
    %1732 = vmatpush.msra.mxu0 0.0
    %1733 = vmatpush.msra.mxu0 0.0
    %1734 = vmatpush.msra.mxu0 0.0
    %1735 = vmatpush.msra.mxu0 0.0
    %1736 = vmatpush.msra.mxu0 0.0
    %1737 = vmatpush.msra.mxu0 0.0
    %1738 = vmatpush.msra.mxu0 0.0
    %1739 = vmatpush.msra.mxu0 0.0
    %1740 = vmatpush.msra.mxu0 0.0
    %1741 = vmatpush.msra.mxu0 %v1716
    %1742 = vmatpush.msra.mxu0 %v1714
    %1743 = vmatpush.msra.mxu0 %v1712
    %1744 = vmatpush.msra.mxu0 %v1710
    %1745 = vmatmul.f32.gmra.mxu0 %v1727
    %v1746 = vpop.f32.mrf.mxu0
    %v1747 = vadd.f32 0.0, %v1746
    %1748 = vdwg.mxu0
    %1749 = vmatpush.msra.mxu0 0.0
    %1750 = vmatpush.msra.mxu0 0.0
    %1751 = vmatpush.msra.mxu0 0.0
    %1752 = vmatpush.msra.mxu0 0.0
    %1753 = vmatpush.msra.mxu0 0.0
    %1754 = vmatpush.msra.mxu0 0.0
    %1755 = vmatpush.msra.mxu0 0.0
    %1756 = vmatpush.msra.mxu0 0.0
    %1757 = vmatpush.msra.mxu0 0.0
    %1758 = vmatpush.msra.mxu0 0.0
    %1759 = vmatpush.msra.mxu0 0.0
    %1760 = vmatpush.msra.mxu0 0.0
    %1761 = vmatpush.msra.mxu0 %v1717
    %1762 = vmatpush.msra.mxu0 %v1715
    %1763 = vmatpush.msra.mxu0 %v1713
    %1764 = vmatpush.msra.mxu0 %v1711
    %1765 = vmatmul.f32.gmra.mxu0 %v1727
    %v1766 = vpop.f32.mrf.mxu0
    %v1767 = vadd.f32 0.0, %v1766
    %1768 = vdwg.mxu0
    %v1769 = vadd.f32 %v1342, %v1747
    %v1770 = vadd.f32 %v1362, %v1767
    %s1771 = scalar_lea.vmem %s5, 28
    %v1772 = vld [vmem:[%s1771] sm:$0xf]
    %1773 = vrot.lane.b32.xlu0 %v1492, 112
    %v1774 = vpop.permute.xlu0 %1773
    %1775 = vrot.lane.b32.xlu0 %v1493, 112
    %v1776 = vpop.permute.xlu0 %1775
    %1777 = vrot.lane.b32.xlu0 %v1494, 112
    %v1778 = vpop.permute.xlu0 %1777
    %1779 = vrot.lane.b32.xlu0 %v1495, 112
    %v1780 = vpop.permute.xlu0 %1779
    %1781 = vrot.lane.b32.xlu0 %v1496, 112
    %v1782 = vpop.permute.xlu0 %1781
    %1783 = vrot.lane.b32.xlu0 %v1497, 112
    %v1784 = vpop.permute.xlu0 %1783
    %1785 = vrot.lane.b32.xlu0 %v1498, 112
    %v1786 = vpop.permute.xlu0 %1785
    %1787 = vrot.lane.b32.xlu0 %v1499, 112
    %v1788 = vpop.permute.xlu0 %1787
    %1789 = vrot.lane.b32.xlu0 %v1500, 112
    %v1790 = vpop.permute.xlu0 %1789
    %1791 = vrot.lane.b32.xlu0 %v1501, 112
    %v1792 = vpop.permute.xlu0 %1791
    %1793 = vrot.lane.b32.xlu0 %v1502, 112
    %v1794 = vpop.permute.xlu0 %1793
    %1795 = vrot.lane.b32.xlu0 %v1503, 112
    %v1796 = vpop.permute.xlu0 %1795
    %v1797 = vsel %vm820, %v1774, %v1776
    %v1798 = vsel %vm820, %v1776, %v1778
    %v1799 = vsel %vm820, %v1780, %v1782
    %v1800 = vsel %vm820, %v1782, %v1784
    %v1801 = vsel %vm820, %v1786, %v1788
    %v1802 = vsel %vm820, %v1788, %v1790
    %v1803 = vsel %vm820, %v1792, %v1794
    %v1804 = vsel %vm820, %v1794, %v1796
    %v1814 = vsel %vm1080, %v1772, 0
    %1816 = vmatpush.msra.mxu0 0.0
    %1817 = vmatpush.msra.mxu0 0.0
    %1818 = vmatpush.msra.mxu0 0.0
    %1819 = vmatpush.msra.mxu0 0.0
    %1820 = vmatpush.msra.mxu0 0.0
    %1821 = vmatpush.msra.mxu0 0.0
    %1822 = vmatpush.msra.mxu0 0.0
    %1823 = vmatpush.msra.mxu0 0.0
    %1824 = vmatpush.msra.mxu0 0.0
    %1825 = vmatpush.msra.mxu0 0.0
    %1826 = vmatpush.msra.mxu0 0.0
    %1827 = vmatpush.msra.mxu0 0.0
    %1828 = vmatpush.msra.mxu0 %v1803
    %1829 = vmatpush.msra.mxu0 %v1801
    %1830 = vmatpush.msra.mxu0 %v1799
    %1831 = vmatpush.msra.mxu0 %v1797
    %1832 = vmatmul.f32.gmra.mxu0 %v1814
    %v1833 = vpop.f32.mrf.mxu0
    %v1834 = vadd.f32 0.0, %v1833
    %1835 = vdwg.mxu0
    %1836 = vmatpush.msra.mxu0 0.0
    %1837 = vmatpush.msra.mxu0 0.0
    %1838 = vmatpush.msra.mxu0 0.0
    %1839 = vmatpush.msra.mxu0 0.0
    %1840 = vmatpush.msra.mxu0 0.0
    %1841 = vmatpush.msra.mxu0 0.0
    %1842 = vmatpush.msra.mxu0 0.0
    %1843 = vmatpush.msra.mxu0 0.0
    %1844 = vmatpush.msra.mxu0 0.0
    %1845 = vmatpush.msra.mxu0 0.0
    %1846 = vmatpush.msra.mxu0 0.0
    %1847 = vmatpush.msra.mxu0 0.0
    %1848 = vmatpush.msra.mxu0 %v1804
    %1849 = vmatpush.msra.mxu0 %v1802
    %1850 = vmatpush.msra.mxu0 %v1800
    %1851 = vmatpush.msra.mxu0 %v1798
    %1852 = vmatmul.f32.gmra.mxu0 %v1814
    %v1853 = vpop.f32.mrf.mxu0
    %v1854 = vadd.f32 0.0, %v1853
    %1855 = vdwg.mxu0
    %v1856 = vadd.f32 %v1470, %v1834
    %v1857 = vadd.f32 %v1490, %v1854
    %s1858 = scalar_lea.vmem %s5, 32
    %v1859 = vld [vmem:[%s1858] sm:$0xf]
    %1860 = vrot.lane.b32.xlu0 %v1492, 111
    %v1861 = vpop.permute.xlu0 %1860
    %1862 = vrot.lane.b32.xlu0 %v1493, 111
    %v1863 = vpop.permute.xlu0 %1862
    %1864 = vrot.lane.b32.xlu0 %v1494, 111
    %v1865 = vpop.permute.xlu0 %1864
    %1866 = vrot.lane.b32.xlu0 %v1495, 111
    %v1867 = vpop.permute.xlu0 %1866
    %1868 = vrot.lane.b32.xlu0 %v1496, 111
    %v1869 = vpop.permute.xlu0 %1868
    %1870 = vrot.lane.b32.xlu0 %v1497, 111
    %v1871 = vpop.permute.xlu0 %1870
    %1872 = vrot.lane.b32.xlu0 %v1498, 111
    %v1873 = vpop.permute.xlu0 %1872
    %1874 = vrot.lane.b32.xlu0 %v1499, 111
    %v1875 = vpop.permute.xlu0 %1874
    %1876 = vrot.lane.b32.xlu0 %v1500, 111
    %v1877 = vpop.permute.xlu0 %1876
    %1878 = vrot.lane.b32.xlu0 %v1501, 111
    %v1879 = vpop.permute.xlu0 %1878
    %1880 = vrot.lane.b32.xlu0 %v1502, 111
    %v1881 = vpop.permute.xlu0 %1880
    %1882 = vrot.lane.b32.xlu0 %v1503, 111
    %v1883 = vpop.permute.xlu0 %1882
    %v1884 = vsel %vm86, %v1861, %v1863
    %v1885 = vsel %vm86, %v1863, %v1865
    %v1886 = vsel %vm86, %v1867, %v1869
    %v1887 = vsel %vm86, %v1869, %v1871
    %v1888 = vsel %vm86, %v1873, %v1875
    %v1889 = vsel %vm86, %v1875, %v1877
    %v1890 = vsel %vm86, %v1879, %v1881
    %v1891 = vsel %vm86, %v1881, %v1883
    %v1901 = vsel %vm1080, %v1859, 0
    %1903 = vmatpush.msra.mxu0 0.0
    %1904 = vmatpush.msra.mxu0 0.0
    %1905 = vmatpush.msra.mxu0 0.0
    %1906 = vmatpush.msra.mxu0 0.0
    %1907 = vmatpush.msra.mxu0 0.0
    %1908 = vmatpush.msra.mxu0 0.0
    %1909 = vmatpush.msra.mxu0 0.0
    %1910 = vmatpush.msra.mxu0 0.0
    %1911 = vmatpush.msra.mxu0 0.0
    %1912 = vmatpush.msra.mxu0 0.0
    %1913 = vmatpush.msra.mxu0 0.0
    %1914 = vmatpush.msra.mxu0 0.0
    %1915 = vmatpush.msra.mxu0 %v1890
    %1916 = vmatpush.msra.mxu0 %v1888
    %1917 = vmatpush.msra.mxu0 %v1886
    %1918 = vmatpush.msra.mxu0 %v1884
    %1919 = vmatmul.f32.gmra.mxu0 %v1901
    %v1920 = vpop.f32.mrf.mxu0
    %v1921 = vadd.f32 0.0, %v1920
    %1922 = vdwg.mxu0
    %1923 = vmatpush.msra.mxu0 0.0
    %1924 = vmatpush.msra.mxu0 0.0
    %1925 = vmatpush.msra.mxu0 0.0
    %1926 = vmatpush.msra.mxu0 0.0
    %1927 = vmatpush.msra.mxu0 0.0
    %1928 = vmatpush.msra.mxu0 0.0
    %1929 = vmatpush.msra.mxu0 0.0
    %1930 = vmatpush.msra.mxu0 0.0
    %1931 = vmatpush.msra.mxu0 0.0
    %1932 = vmatpush.msra.mxu0 0.0
    %1933 = vmatpush.msra.mxu0 0.0
    %1934 = vmatpush.msra.mxu0 0.0
    %1935 = vmatpush.msra.mxu0 %v1891
    %1936 = vmatpush.msra.mxu0 %v1889
    %1937 = vmatpush.msra.mxu0 %v1887
    %1938 = vmatpush.msra.mxu0 %v1885
    %1939 = vmatmul.f32.gmra.mxu0 %v1901
    %v1940 = vpop.f32.mrf.mxu0
    %v1941 = vadd.f32 0.0, %v1940
    %1942 = vdwg.mxu0
    %v1943 = vadd.f32 %v1662, %v1921
    %v1944 = vadd.f32 %v1682, %v1941
    %v1945 = vmul.f32 %v1769, %v67
    %v1946 = vmul.f32 %v1770, %v68
    %v1947 = vadd.f32 %v1856, %v1945
    %v1948 = vadd.f32 %v1857, %v1946
    %v1949 = vmul.f32 %v1943, %v71
    %v1950 = vmul.f32 %v1944, %v72
    %v1951 = vadd.f32 %v1947, %v1949
    %v1952 = vadd.f32 %v1948, %v1950
    %v1953 = vld [vmem:[%s6] sm:$0xf]
    %1955 = vset.pattern.permute.xlu0 0
    %1956 = vperm.xlu0 %1955, %v1953
    %v1957 = vpop.permute.xlu0 %1956
    %v1959 = vadd.f32 %v1951, %v1957
    %v1960 = vadd.f32 %v1952, %v1957
    %v1961 = vsub.f32 0.0, %v1959
    %v1962 = vsub.f32 0.0, %v1960
    %v1963 = vmul.f32 %v1961, 1.442695
    %v1964 = vpow.pop %v1963
    %v1965 = vmul.f32 %v1962, 1.442695
    %v1966 = vpow.pop %v1965
    %v1967 = vadd.f32 %v1964, 1.0
    %v1968 = vadd.f32 %v1966, 1.0
    %v1969 = vrcp.pop %v1967
    %v1970 = vmul.f32 %v1967, %v1969
    %v1971 = vsub.f32 1.0, %v1970
    %v1972 = vmul.f32 %v1969, %v1971
    %v1973 = vadd.f32 %v1969, %v1972
    %vm1974 = vweird.f32 %v1967
    %vm1975 = vweird.f32 %v1969
    %vm1976 = vmor %vm1974, %vm1975
    %v1977 = vsel %vm1976, %v1969, %v1973
    %v1978 = vand.u32 2147483647, %v1967
    %vm1979 = vcmp.eq.f32.partialorder %v1978, 8.507059e+37
    %v1980 = vand.u32 %v1967, 2147483648
    %v1981 = vor.u32 1.1754944e-38, %v1980
    %v1982 = vsel %vm1979, %v1981, %v1977
    %v1983 = vmul.f32 1.0, %v1982
    %v1984 = vrcp.pop %v1968
    %v1985 = vmul.f32 %v1968, %v1984
    %v1986 = vsub.f32 1.0, %v1985
    %v1987 = vmul.f32 %v1984, %v1986
    %v1988 = vadd.f32 %v1984, %v1987
    %vm1989 = vweird.f32 %v1968
    %vm1990 = vweird.f32 %v1984
    %vm1991 = vmor %vm1989, %vm1990
    %v1992 = vsel %vm1991, %v1984, %v1988
    %v1993 = vand.u32 2147483647, %v1968
    %vm1994 = vcmp.eq.f32.partialorder %v1993, 8.507059e+37
    %v1995 = vand.u32 %v1968, 2147483648
    %v1996 = vor.u32 1.1754944e-38, %v1995
    %v1997 = vsel %vm1994, %v1996, %v1992
    %v1998 = vmul.f32 1.0, %v1997
    %v2001 = vrot.slane %v1960, 6
    %v2002 = vsel %vm81, %v1959, %v2001
    %v2004 = vadd.f32 %v73, %v2002
    %2007 = vst.sshfl [vmem:[#allocation1] sm:$0xff pattern:$0x73625140] %v1983
    %2008 = vst.sshfl [vmem:[#allocation1 + $0x8] sm:$0xff pattern:$0x73625140] %v1998
    %s2009 = scalar_lea.vmem [#allocation1], 1
    %v2010 = vld [vmem:[%s2009] ss:$4 sm:$0xff]
    %v2012 = vmul.f32 %v2004, %v2010
    %2013 = vst [vmem:[#allocation4] sm:$0xf] %v2012
    %v2014 = vlog2.pop %v1967
    %v2015 = vmul.f32 %v2014, 0.6931472
    %v2016 = vlog2.pop %v1968
    %v2017 = vmul.f32 %v2016, 0.6931472
    %vm2018 = vcmask 1043458
    %v2019 = vsel %vm2018, %v2015, 0.0
    %v2020 = vsel %vm2018, %v2017, 0.0
    %v2021 = vadd.f32 %v2019, %v2020
    %2022 = vadd.xlane.f32.xlu0 %v2021
    %v2023 = vpop.xlane.xlu0 %2022
    %v2025 = vrot.slane %v2023, 2
    %v2027 = vsel %vm81, %v2025, 0.0
    %v2028 = vrot.slane %v2027, 4
    %v2029 = vadd.f32 %v2027, %v2028
    %v2030 = vrot.slane %v2029, 2
    %v2031 = vadd.f32 %v2029, %v2030
    %v2032 = vrot.slane %v2031, 1
    %v2033 = vadd.f32 %v2031, %v2032
    %v2034 = vsub.f32 0.0, %v2033
    %2035 = vst [vmem:[%s8] sm:$0x1] %v2034
    %s2036 = scalar_lea.vmem %s0, 8
    %v2037 = vld [vmem:[%s2036] sm:$0xf]
    %s2038 = scalar_lea.vmem %s0, 12
    %v2039 = vld [vmem:[%s2038] sm:$0xf]
    %2040 = vst [vmem:[#allocation2 + $0x2] sm:$0xf] %v2039
    %v2041 = vld [vmem:[#allocation2] sm:$0x3f]
    %v2042 = vmul.f32 %v2041, %v87
    %v2043 = vld [vmem:[%s1] sm:$0xff]
    %v2044 = vld [vmem:[%s1 + $0x8] sm:$0xff]
    %v2045 = vld [vmem:[%s1 + $0x10] sm:$0xff]
    %v2046 = vld [vmem:[%s1 + $0x18] sm:$0xff]
    %v2047 = vld [vmem:[%s94] sm:$0xff]
    %v2048 = vld [vmem:[%s94 + $0x8] sm:$0xff]
    %v2049 = vld [vmem:[%s94 + $0x10] sm:$0xff]
    %v2050 = vld [vmem:[%s94 + $0x18] sm:$0xff]
    %2052 = vst [vmem:[#allocation1] ss:$4 sm:$0xff] %v2041
    %v2053 = vld.sshfl [vmem:[#allocation1] sm:$0xff pattern:$0x73625140]
    %v2054 = vld.sshfl [vmem:[#allocation1 + $0x8] sm:$0xff pattern:$0x73625140]
    %v2055 = vld.sshfl [vmem:[#allocation1 + $0x10] sm:$0xff pattern:$0x73625140]
    %2056 = vrot.lane.b32.xlu0 %v2053, 16
    %v2057 = vpop.permute.xlu0 %2056
    %2058 = vrot.lane.b32.xlu0 %v2054, 16
    %v2059 = vpop.permute.xlu0 %2058
    %2060 = vrot.lane.b32.xlu0 %v2055, 16
    %v2061 = vpop.permute.xlu0 %2060
    %v2062 = vsel %vm110, %v2057, %v2059
    %v2063 = vsel %vm110, %v2059, %v2061
    %v2065 = vsel %vm113, %v2047, 0
    %v2068 = vsel %vm113, %v2048, 0
    %v2071 = vsel %vm113, %v2049, 0
    %v2074 = vsel %vm113, %v2050, 0
    %v2076 = vsel %vm81, %v2062, 0
    %v2078 = vsel %vm81, %v2063, 0
    %2080 = vmatpush.msra.mxu0 0.0
    %2081 = vmatpush.msra.mxu0 0.0
    %2082 = vmatpush.msra.mxu0 0.0
    %2083 = vmatpush.msra.mxu0 0.0
    %2084 = vmatpush.msra.mxu0 0.0
    %2085 = vmatpush.msra.mxu0 0.0
    %2086 = vmatpush.msra.mxu0 0.0
    %2087 = vmatpush.msra.mxu0 0.0
    %2088 = vmatpush.msra.mxu0 0.0
    %2089 = vmatpush.msra.mxu0 0.0
    %2090 = vmatpush.msra.mxu0 0.0
    %2091 = vmatpush.msra.mxu0 0.0
    %2092 = vmatpush.msra.mxu0 0.0
    %2093 = vmatpush.msra.mxu0 0.0
    %2094 = vmatpush.msra.mxu0 0.0
    %2095 = vmatpush.msra.mxu0 %v2076
    %2096 = vmatmul.f32.gmra.mxu0 %v2065
    %v2097 = vpop.f32.mrf.mxu0
    %v2098 = vadd.f32 0.0, %v2097
    %2099 = vmatmul.f32.gmra.mxu0 %v2068
    %v2100 = vpop.f32.mrf.mxu0
    %v2101 = vadd.f32 0.0, %v2100
    %2102 = vmatmul.f32.gmra.mxu0 %v2071
    %v2103 = vpop.f32.mrf.mxu0
    %v2104 = vadd.f32 0.0, %v2103
    %2105 = vmatmul.f32.gmra.mxu0 %v2074
    %v2106 = vpop.f32.mrf.mxu0
    %v2107 = vadd.f32 0.0, %v2106
    %2108 = vdwg.mxu0
    %2109 = vmatpush.msra.mxu0 0.0
    %2110 = vmatpush.msra.mxu0 0.0
    %2111 = vmatpush.msra.mxu0 0.0
    %2112 = vmatpush.msra.mxu0 0.0
    %2113 = vmatpush.msra.mxu0 0.0
    %2114 = vmatpush.msra.mxu0 0.0
    %2115 = vmatpush.msra.mxu0 0.0
    %2116 = vmatpush.msra.mxu0 0.0
    %2117 = vmatpush.msra.mxu0 0.0
    %2118 = vmatpush.msra.mxu0 0.0
    %2119 = vmatpush.msra.mxu0 0.0
    %2120 = vmatpush.msra.mxu0 0.0
    %2121 = vmatpush.msra.mxu0 0.0
    %2122 = vmatpush.msra.mxu0 0.0
    %2123 = vmatpush.msra.mxu0 0.0
    %2124 = vmatpush.msra.mxu0 %v2078
    %2125 = vmatmul.f32.gmra.mxu0 %v2065
    %v2126 = vpop.f32.mrf.mxu0
    %v2127 = vadd.f32 0.0, %v2126
    %2128 = vmatmul.f32.gmra.mxu0 %v2068
    %v2129 = vpop.f32.mrf.mxu0
    %v2130 = vadd.f32 0.0, %v2129
    %2131 = vmatmul.f32.gmra.mxu0 %v2071
    %v2132 = vpop.f32.mrf.mxu0
    %v2133 = vadd.f32 0.0, %v2132
    %2134 = vmatmul.f32.gmra.mxu0 %v2074
    %v2135 = vpop.f32.mrf.mxu0
    %v2136 = vadd.f32 0.0, %v2135
    %2137 = vdwg.mxu0
    %2139 = vst [vmem:[#allocation1] ss:$4 sm:$0xff] %v2042
    %v2140 = vld.sshfl [vmem:[#allocation1] sm:$0xff pattern:$0x73625140]
    %v2141 = vld.sshfl [vmem:[#allocation1 + $0x8] sm:$0xff pattern:$0x73625140]
    %v2142 = vld.sshfl [vmem:[#allocation1 + $0x10] sm:$0xff pattern:$0x73625140]
    %2143 = vrot.lane.b32.xlu0 %v2140, 17
    %v2144 = vpop.permute.xlu0 %2143
    %2145 = vrot.lane.b32.xlu0 %v2141, 17
    %v2146 = vpop.permute.xlu0 %2145
    %2147 = vrot.lane.b32.xlu0 %v2142, 17
    %v2148 = vpop.permute.xlu0 %2147
    %v2149 = vsel %vm199, %v2144, %v2146
    %v2150 = vsel %vm199, %v2146, %v2148
    %v2152 = vsel %vm113, %v2043, 0
    %v2155 = vsel %vm113, %v2044, 0
    %v2158 = vsel %vm113, %v2045, 0
    %v2161 = vsel %vm113, %v2046, 0
    %v2163 = vsel %vm81, %v2149, 0
    %v2165 = vsel %vm81, %v2150, 0
    %2167 = vmatpush.msra.mxu0 0.0
    %2168 = vmatpush.msra.mxu0 0.0
    %2169 = vmatpush.msra.mxu0 0.0
    %2170 = vmatpush.msra.mxu0 0.0
    %2171 = vmatpush.msra.mxu0 0.0
    %2172 = vmatpush.msra.mxu0 0.0
    %2173 = vmatpush.msra.mxu0 0.0
    %2174 = vmatpush.msra.mxu0 0.0
    %2175 = vmatpush.msra.mxu0 0.0
    %2176 = vmatpush.msra.mxu0 0.0
    %2177 = vmatpush.msra.mxu0 0.0
    %2178 = vmatpush.msra.mxu0 0.0
    %2179 = vmatpush.msra.mxu0 0.0
    %2180 = vmatpush.msra.mxu0 0.0
    %2181 = vmatpush.msra.mxu0 0.0
    %2182 = vmatpush.msra.mxu0 %v2163
    %2183 = vmatmul.f32.gmra.mxu0 %v2152
    %v2184 = vpop.f32.mrf.mxu0
    %v2185 = vadd.f32 %v2098, %v2184
    %2186 = vmatmul.f32.gmra.mxu0 %v2155
    %v2187 = vpop.f32.mrf.mxu0
    %v2188 = vadd.f32 %v2101, %v2187
    %2189 = vmatmul.f32.gmra.mxu0 %v2158
    %v2190 = vpop.f32.mrf.mxu0
    %v2191 = vadd.f32 %v2104, %v2190
    %2192 = vmatmul.f32.gmra.mxu0 %v2161
    %v2193 = vpop.f32.mrf.mxu0
    %v2194 = vadd.f32 %v2107, %v2193
    %2195 = vdwg.mxu0
    %2196 = vmatpush.msra.mxu0 0.0
    %2197 = vmatpush.msra.mxu0 0.0
    %2198 = vmatpush.msra.mxu0 0.0
    %2199 = vmatpush.msra.mxu0 0.0
    %2200 = vmatpush.msra.mxu0 0.0
    %2201 = vmatpush.msra.mxu0 0.0
    %2202 = vmatpush.msra.mxu0 0.0
    %2203 = vmatpush.msra.mxu0 0.0
    %2204 = vmatpush.msra.mxu0 0.0
    %2205 = vmatpush.msra.mxu0 0.0
    %2206 = vmatpush.msra.mxu0 0.0
    %2207 = vmatpush.msra.mxu0 0.0
    %2208 = vmatpush.msra.mxu0 0.0
    %2209 = vmatpush.msra.mxu0 0.0
    %2210 = vmatpush.msra.mxu0 0.0
    %2211 = vmatpush.msra.mxu0 %v2165
    %2212 = vmatmul.f32.gmra.mxu0 %v2152
    %v2213 = vpop.f32.mrf.mxu0
    %v2214 = vadd.f32 %v2127, %v2213
    %2215 = vmatmul.f32.gmra.mxu0 %v2155
    %v2216 = vpop.f32.mrf.mxu0
    %v2217 = vadd.f32 %v2130, %v2216
    %2218 = vmatmul.f32.gmra.mxu0 %v2158
    %v2219 = vpop.f32.mrf.mxu0
    %v2220 = vadd.f32 %v2133, %v2219
    %2221 = vmatmul.f32.gmra.mxu0 %v2161
    %v2222 = vpop.f32.mrf.mxu0
    %v2223 = vadd.f32 %v2136, %v2222
    %2224 = vdwg.mxu0
    %v2225 = vld [vmem:[#allocation2] sm:$0x3f]
    %v2226 = vmul.f32 %v2225, %v285
    %v2227 = vld [vmem:[%s288] sm:$0xff]
    %v2228 = vld [vmem:[%s288 + $0x8] sm:$0xff]
    %v2229 = vld [vmem:[%s288 + $0x10] sm:$0xff]
    %v2230 = vld [vmem:[%s288 + $0x18] sm:$0xff]
    %2232 = vst [vmem:[#allocation1] ss:$4 sm:$0xff] %v2226
    %v2233 = vld.sshfl [vmem:[#allocation1] sm:$0xff pattern:$0x73625140]
    %v2234 = vld.sshfl [vmem:[#allocation1 + $0x8] sm:$0xff pattern:$0x73625140]
    %v2235 = vld.sshfl [vmem:[#allocation1 + $0x10] sm:$0xff pattern:$0x73625140]
    %2236 = vrot.lane.b32.xlu0 %v2233, 15
    %v2237 = vpop.permute.xlu0 %2236
    %2238 = vrot.lane.b32.xlu0 %v2234, 15
    %v2239 = vpop.permute.xlu0 %2238
    %2240 = vrot.lane.b32.xlu0 %v2235, 15
    %v2241 = vpop.permute.xlu0 %2240
    %v2242 = vsel %vm304, %v2237, %v2239
    %v2243 = vsel %vm304, %v2239, %v2241
    %v2245 = vsel %vm113, %v2227, 0
    %v2248 = vsel %vm113, %v2228, 0
    %v2251 = vsel %vm113, %v2229, 0
    %v2254 = vsel %vm113, %v2230, 0
    %v2256 = vsel %vm81, %v2242, 0
    %v2258 = vsel %vm81, %v2243, 0
    %2260 = vmatpush.msra.mxu0 0.0
    %2261 = vmatpush.msra.mxu0 0.0
    %2262 = vmatpush.msra.mxu0 0.0
    %2263 = vmatpush.msra.mxu0 0.0
    %2264 = vmatpush.msra.mxu0 0.0
    %2265 = vmatpush.msra.mxu0 0.0
    %2266 = vmatpush.msra.mxu0 0.0
    %2267 = vmatpush.msra.mxu0 0.0
    %2268 = vmatpush.msra.mxu0 0.0
    %2269 = vmatpush.msra.mxu0 0.0
    %2270 = vmatpush.msra.mxu0 0.0
    %2271 = vmatpush.msra.mxu0 0.0
    %2272 = vmatpush.msra.mxu0 0.0
    %2273 = vmatpush.msra.mxu0 0.0
    %2274 = vmatpush.msra.mxu0 0.0
    %2275 = vmatpush.msra.mxu0 %v2256
    %2276 = vmatmul.f32.gmra.mxu0 %v2245
    %v2277 = vpop.f32.mrf.mxu0
    %v2278 = vadd.f32 0.0, %v2277
    %2279 = vmatmul.f32.gmra.mxu0 %v2248
    %v2280 = vpop.f32.mrf.mxu0
    %v2281 = vadd.f32 0.0, %v2280
    %2282 = vmatmul.f32.gmra.mxu0 %v2251
    %v2283 = vpop.f32.mrf.mxu0
    %v2284 = vadd.f32 0.0, %v2283
    %2285 = vmatmul.f32.gmra.mxu0 %v2254
    %v2286 = vpop.f32.mrf.mxu0
    %v2287 = vadd.f32 0.0, %v2286
    %2288 = vdwg.mxu0
    %2289 = vmatpush.msra.mxu0 0.0
    %2290 = vmatpush.msra.mxu0 0.0
    %2291 = vmatpush.msra.mxu0 0.0
    %2292 = vmatpush.msra.mxu0 0.0
    %2293 = vmatpush.msra.mxu0 0.0
    %2294 = vmatpush.msra.mxu0 0.0
    %2295 = vmatpush.msra.mxu0 0.0
    %2296 = vmatpush.msra.mxu0 0.0
    %2297 = vmatpush.msra.mxu0 0.0
    %2298 = vmatpush.msra.mxu0 0.0
    %2299 = vmatpush.msra.mxu0 0.0
    %2300 = vmatpush.msra.mxu0 0.0
    %2301 = vmatpush.msra.mxu0 0.0
    %2302 = vmatpush.msra.mxu0 0.0
    %2303 = vmatpush.msra.mxu0 0.0
    %2304 = vmatpush.msra.mxu0 %v2258
    %2305 = vmatmul.f32.gmra.mxu0 %v2245
    %v2306 = vpop.f32.mrf.mxu0
    %v2307 = vadd.f32 0.0, %v2306
    %2308 = vmatmul.f32.gmra.mxu0 %v2248
    %v2309 = vpop.f32.mrf.mxu0
    %v2310 = vadd.f32 0.0, %v2309
    %2311 = vmatmul.f32.gmra.mxu0 %v2251
    %v2312 = vpop.f32.mrf.mxu0
    %v2313 = vadd.f32 0.0, %v2312
    %2314 = vmatmul.f32.gmra.mxu0 %v2254
    %v2315 = vpop.f32.mrf.mxu0
    %v2316 = vadd.f32 0.0, %v2315
    %2317 = vdwg.mxu0
    %v2318 = vadd.f32 %v2185, %v2278
    %v2319 = vadd.f32 %v2214, %v2307
    %v2320 = vadd.f32 %v2188, %v2281
    %v2321 = vadd.f32 %v2217, %v2310
    %v2322 = vadd.f32 %v2191, %v2284
    %v2323 = vadd.f32 %v2220, %v2313
    %v2324 = vadd.f32 %v2194, %v2287
    %v2325 = vadd.f32 %v2223, %v2316
    %v2326 = vld [vmem:[#allocation2] sm:$0x3f]
    %v2327 = vmul.f32 %v2326, %v394
    %v2328 = vld [vmem:[%s397] sm:$0xff]
    %v2329 = vld [vmem:[%s397 + $0x8] sm:$0xff]
    %v2330 = vld [vmem:[%s397 + $0x10] sm:$0xff]
    %v2331 = vld [vmem:[%s397 + $0x18] sm:$0xff]
    %2333 = vst [vmem:[#allocation1] ss:$4 sm:$0xff] %v2327
    %v2334 = vld.sshfl [vmem:[#allocation1] sm:$0xff pattern:$0x73625140]
    %v2335 = vld.sshfl [vmem:[#allocation1 + $0x8] sm:$0xff pattern:$0x73625140]
    %v2336 = vld.sshfl [vmem:[#allocation1 + $0x10] sm:$0xff pattern:$0x73625140]
    %2337 = vrot.lane.b32.xlu0 %v2334, 1
    %v2338 = vpop.permute.xlu0 %2337
    %2339 = vrot.lane.b32.xlu0 %v2335, 1
    %v2340 = vpop.permute.xlu0 %2339
    %2341 = vrot.lane.b32.xlu0 %v2336, 1
    %v2342 = vpop.permute.xlu0 %2341
    %v2343 = vsel %vm413, %v2338, %v2340
    %v2344 = vsel %vm413, %v2340, %v2342
    %v2346 = vsel %vm113, %v2328, 0
    %v2349 = vsel %vm113, %v2329, 0
    %v2352 = vsel %vm113, %v2330, 0
    %v2355 = vsel %vm113, %v2331, 0
    %v2357 = vsel %vm81, %v2343, 0
    %v2359 = vsel %vm81, %v2344, 0
    %2361 = vmatpush.msra.mxu0 0.0
    %2362 = vmatpush.msra.mxu0 0.0
    %2363 = vmatpush.msra.mxu0 0.0
    %2364 = vmatpush.msra.mxu0 0.0
    %2365 = vmatpush.msra.mxu0 0.0
    %2366 = vmatpush.msra.mxu0 0.0
    %2367 = vmatpush.msra.mxu0 0.0
    %2368 = vmatpush.msra.mxu0 0.0
    %2369 = vmatpush.msra.mxu0 0.0
    %2370 = vmatpush.msra.mxu0 0.0
    %2371 = vmatpush.msra.mxu0 0.0
    %2372 = vmatpush.msra.mxu0 0.0
    %2373 = vmatpush.msra.mxu0 0.0
    %2374 = vmatpush.msra.mxu0 0.0
    %2375 = vmatpush.msra.mxu0 0.0
    %2376 = vmatpush.msra.mxu0 %v2357
    %2377 = vmatmul.f32.gmra.mxu0 %v2346
    %v2378 = vpop.f32.mrf.mxu0
    %v2379 = vadd.f32 0.0, %v2378
    %2380 = vmatmul.f32.gmra.mxu0 %v2349
    %v2381 = vpop.f32.mrf.mxu0
    %v2382 = vadd.f32 0.0, %v2381
    %2383 = vmatmul.f32.gmra.mxu0 %v2352
    %v2384 = vpop.f32.mrf.mxu0
    %v2385 = vadd.f32 0.0, %v2384
    %2386 = vmatmul.f32.gmra.mxu0 %v2355
    %v2387 = vpop.f32.mrf.mxu0
    %v2388 = vadd.f32 0.0, %v2387
    %2389 = vdwg.mxu0
    %2390 = vmatpush.msra.mxu0 0.0
    %2391 = vmatpush.msra.mxu0 0.0
    %2392 = vmatpush.msra.mxu0 0.0
    %2393 = vmatpush.msra.mxu0 0.0
    %2394 = vmatpush.msra.mxu0 0.0
    %2395 = vmatpush.msra.mxu0 0.0
    %2396 = vmatpush.msra.mxu0 0.0
    %2397 = vmatpush.msra.mxu0 0.0
    %2398 = vmatpush.msra.mxu0 0.0
    %2399 = vmatpush.msra.mxu0 0.0
    %2400 = vmatpush.msra.mxu0 0.0
    %2401 = vmatpush.msra.mxu0 0.0
    %2402 = vmatpush.msra.mxu0 0.0
    %2403 = vmatpush.msra.mxu0 0.0
    %2404 = vmatpush.msra.mxu0 0.0
    %2405 = vmatpush.msra.mxu0 %v2359
    %2406 = vmatmul.f32.gmra.mxu0 %v2346
    %v2407 = vpop.f32.mrf.mxu0
    %v2408 = vadd.f32 0.0, %v2407
    %2409 = vmatmul.f32.gmra.mxu0 %v2349
    %v2410 = vpop.f32.mrf.mxu0
    %v2411 = vadd.f32 0.0, %v2410
    %2412 = vmatmul.f32.gmra.mxu0 %v2352
    %v2413 = vpop.f32.mrf.mxu0
    %v2414 = vadd.f32 0.0, %v2413
    %2415 = vmatmul.f32.gmra.mxu0 %v2355
    %v2416 = vpop.f32.mrf.mxu0
    %v2417 = vadd.f32 0.0, %v2416
    %2418 = vdwg.mxu0
    %v2419 = vadd.f32 %v2318, %v2379
    %v2420 = vadd.f32 %v2319, %v2408
    %v2421 = vadd.f32 %v2320, %v2382
    %v2422 = vadd.f32 %v2321, %v2411
    %v2423 = vadd.f32 %v2322, %v2385
    %v2424 = vadd.f32 %v2323, %v2414
    %v2425 = vadd.f32 %v2324, %v2388
    %v2426 = vadd.f32 %v2325, %v2417
    %v2427 = vld [vmem:[%s498] sm:$0xff]
    %v2428 = vld [vmem:[%s498 + $0x8] sm:$0xff]
    %v2429 = vld [vmem:[%s498 + $0x10] sm:$0xff]
    %v2430 = vld [vmem:[%s498 + $0x18] sm:$0xff]
    %2432 = vst [vmem:[#allocation1] ss:$4 sm:$0xff] %v2039
    %v2433 = vld.sshfl [vmem:[#allocation1] sm:$0xff pattern:$0x73625140]
    %v2434 = vld.sshfl [vmem:[#allocation1 + $0x8] sm:$0xff pattern:$0x73625140]
    %v2436 = vsel %vm113, %v2427, 0
    %v2439 = vsel %vm113, %v2428, 0
    %v2442 = vsel %vm113, %v2429, 0
    %v2445 = vsel %vm113, %v2430, 0
    %v2447 = vsel %vm81, %v2433, 0
    %v2449 = vsel %vm81, %v2434, 0
    %2451 = vmatpush.msra.mxu0 0.0
    %2452 = vmatpush.msra.mxu0 0.0
    %2453 = vmatpush.msra.mxu0 0.0
    %2454 = vmatpush.msra.mxu0 0.0
    %2455 = vmatpush.msra.mxu0 0.0
    %2456 = vmatpush.msra.mxu0 0.0
    %2457 = vmatpush.msra.mxu0 0.0
    %2458 = vmatpush.msra.mxu0 0.0
    %2459 = vmatpush.msra.mxu0 0.0
    %2460 = vmatpush.msra.mxu0 0.0
    %2461 = vmatpush.msra.mxu0 0.0
    %2462 = vmatpush.msra.mxu0 0.0
    %2463 = vmatpush.msra.mxu0 0.0
    %2464 = vmatpush.msra.mxu0 0.0
    %2465 = vmatpush.msra.mxu0 0.0
    %2466 = vmatpush.msra.mxu0 %v2447
    %2467 = vmatmul.f32.gmra.mxu0 %v2436
    %v2468 = vpop.f32.mrf.mxu0
    %v2469 = vadd.f32 0.0, %v2468
    %2470 = vmatmul.f32.gmra.mxu0 %v2439
    %v2471 = vpop.f32.mrf.mxu0
    %v2472 = vadd.f32 0.0, %v2471
    %2473 = vmatmul.f32.gmra.mxu0 %v2442
    %v2474 = vpop.f32.mrf.mxu0
    %v2475 = vadd.f32 0.0, %v2474
    %2476 = vmatmul.f32.gmra.mxu0 %v2445
    %v2477 = vpop.f32.mrf.mxu0
    %v2478 = vadd.f32 0.0, %v2477
    %2479 = vdwg.mxu0
    %2480 = vmatpush.msra.mxu0 0.0
    %2481 = vmatpush.msra.mxu0 0.0
    %2482 = vmatpush.msra.mxu0 0.0
    %2483 = vmatpush.msra.mxu0 0.0
    %2484 = vmatpush.msra.mxu0 0.0
    %2485 = vmatpush.msra.mxu0 0.0
    %2486 = vmatpush.msra.mxu0 0.0
    %2487 = vmatpush.msra.mxu0 0.0
    %2488 = vmatpush.msra.mxu0 0.0
    %2489 = vmatpush.msra.mxu0 0.0
    %2490 = vmatpush.msra.mxu0 0.0
    %2491 = vmatpush.msra.mxu0 0.0
    %2492 = vmatpush.msra.mxu0 0.0
    %2493 = vmatpush.msra.mxu0 0.0
    %2494 = vmatpush.msra.mxu0 0.0
    %2495 = vmatpush.msra.mxu0 %v2449
    %2496 = vmatmul.f32.gmra.mxu0 %v2436
    %v2497 = vpop.f32.mrf.mxu0
    %v2498 = vadd.f32 0.0, %v2497
    %2499 = vmatmul.f32.gmra.mxu0 %v2439
    %v2500 = vpop.f32.mrf.mxu0
    %v2501 = vadd.f32 0.0, %v2500
    %2502 = vmatmul.f32.gmra.mxu0 %v2442
    %v2503 = vpop.f32.mrf.mxu0
    %v2504 = vadd.f32 0.0, %v2503
    %2505 = vmatmul.f32.gmra.mxu0 %v2445
    %v2506 = vpop.f32.mrf.mxu0
    %v2507 = vadd.f32 0.0, %v2506
    %2508 = vdwg.mxu0
    %v2509 = vadd.f32 %v2419, %v2469
    %v2510 = vadd.f32 %v2420, %v2498
    %v2511 = vadd.f32 %v2421, %v2472
    %v2512 = vadd.f32 %v2422, %v2501
    %v2513 = vadd.f32 %v2423, %v2475
    %v2514 = vadd.f32 %v2424, %v2504
    %v2515 = vadd.f32 %v2425, %v2478
    %v2516 = vadd.f32 %v2426, %v2507
    %v2517 = vld [vmem:[#allocation2 + $0x2] sm:$0x3f]
    %v2518 = vmul.f32 %v2517, %v593
    %v2519 = vld [vmem:[%s596] sm:$0xff]
    %v2520 = vld [vmem:[%s596 + $0x8] sm:$0xff]
    %v2521 = vld [vmem:[%s596 + $0x10] sm:$0xff]
    %v2522 = vld [vmem:[%s596 + $0x18] sm:$0xff]
    %2524 = vst [vmem:[#allocation1] ss:$4 sm:$0xff] %v2518
    %v2525 = vld.sshfl [vmem:[#allocation1] sm:$0xff pattern:$0x73625140]
    %v2526 = vld.sshfl [vmem:[#allocation1 + $0x8] sm:$0xff pattern:$0x73625140]
    %v2527 = vld.sshfl [vmem:[#allocation1 + $0x10] sm:$0xff pattern:$0x73625140]
    %2528 = vrot.lane.b32.xlu0 %v2525, 127
    %v2529 = vpop.permute.xlu0 %2528
    %2530 = vrot.lane.b32.xlu0 %v2526, 127
    %v2531 = vpop.permute.xlu0 %2530
    %2532 = vrot.lane.b32.xlu0 %v2527, 127
    %v2533 = vpop.permute.xlu0 %2532
    %v2534 = vsel %vm393, %v2529, %v2531
    %v2535 = vsel %vm393, %v2531, %v2533
    %v2537 = vsel %vm113, %v2519, 0
    %v2540 = vsel %vm113, %v2520, 0
    %v2543 = vsel %vm113, %v2521, 0
    %v2546 = vsel %vm113, %v2522, 0
    %v2548 = vsel %vm81, %v2534, 0
    %v2550 = vsel %vm81, %v2535, 0
    %2552 = vmatpush.msra.mxu0 0.0
    %2553 = vmatpush.msra.mxu0 0.0
    %2554 = vmatpush.msra.mxu0 0.0
    %2555 = vmatpush.msra.mxu0 0.0
    %2556 = vmatpush.msra.mxu0 0.0
    %2557 = vmatpush.msra.mxu0 0.0
    %2558 = vmatpush.msra.mxu0 0.0
    %2559 = vmatpush.msra.mxu0 0.0
    %2560 = vmatpush.msra.mxu0 0.0
    %2561 = vmatpush.msra.mxu0 0.0
    %2562 = vmatpush.msra.mxu0 0.0
    %2563 = vmatpush.msra.mxu0 0.0
    %2564 = vmatpush.msra.mxu0 0.0
    %2565 = vmatpush.msra.mxu0 0.0
    %2566 = vmatpush.msra.mxu0 0.0
    %2567 = vmatpush.msra.mxu0 %v2548
    %2568 = vmatmul.f32.gmra.mxu0 %v2537
    %v2569 = vpop.f32.mrf.mxu0
    %v2570 = vadd.f32 0.0, %v2569
    %2571 = vmatmul.f32.gmra.mxu0 %v2540
    %v2572 = vpop.f32.mrf.mxu0
    %v2573 = vadd.f32 0.0, %v2572
    %2574 = vmatmul.f32.gmra.mxu0 %v2543
    %v2575 = vpop.f32.mrf.mxu0
    %v2576 = vadd.f32 0.0, %v2575
    %2577 = vmatmul.f32.gmra.mxu0 %v2546
    %v2578 = vpop.f32.mrf.mxu0
    %v2579 = vadd.f32 0.0, %v2578
    %2580 = vdwg.mxu0
    %2581 = vmatpush.msra.mxu0 0.0
    %2582 = vmatpush.msra.mxu0 0.0
    %2583 = vmatpush.msra.mxu0 0.0
    %2584 = vmatpush.msra.mxu0 0.0
    %2585 = vmatpush.msra.mxu0 0.0
    %2586 = vmatpush.msra.mxu0 0.0
    %2587 = vmatpush.msra.mxu0 0.0
    %2588 = vmatpush.msra.mxu0 0.0
    %2589 = vmatpush.msra.mxu0 0.0
    %2590 = vmatpush.msra.mxu0 0.0
    %2591 = vmatpush.msra.mxu0 0.0
    %2592 = vmatpush.msra.mxu0 0.0
    %2593 = vmatpush.msra.mxu0 0.0
    %2594 = vmatpush.msra.mxu0 0.0
    %2595 = vmatpush.msra.mxu0 0.0
    %2596 = vmatpush.msra.mxu0 %v2550
    %2597 = vmatmul.f32.gmra.mxu0 %v2537
    %v2598 = vpop.f32.mrf.mxu0
    %v2599 = vadd.f32 0.0, %v2598
    %2600 = vmatmul.f32.gmra.mxu0 %v2540
    %v2601 = vpop.f32.mrf.mxu0
    %v2602 = vadd.f32 0.0, %v2601
    %2603 = vmatmul.f32.gmra.mxu0 %v2543
    %v2604 = vpop.f32.mrf.mxu0
    %v2605 = vadd.f32 0.0, %v2604
    %2606 = vmatmul.f32.gmra.mxu0 %v2546
    %v2607 = vpop.f32.mrf.mxu0
    %v2608 = vadd.f32 0.0, %v2607
    %2609 = vdwg.mxu0
    %v2610 = vadd.f32 %v2509, %v2570
    %v2611 = vadd.f32 %v2510, %v2599
    %v2612 = vadd.f32 %v2511, %v2573
    %v2613 = vadd.f32 %v2512, %v2602
    %v2614 = vadd.f32 %v2513, %v2576
    %v2615 = vadd.f32 %v2514, %v2605
    %v2616 = vadd.f32 %v2515, %v2579
    %v2617 = vadd.f32 %v2516, %v2608
    %v2618 = vld [vmem:[#allocation2 + $0x2] sm:$0x3f]
    %v2619 = vmul.f32 %v2618, %v700
    %v2620 = vld [vmem:[%s703] sm:$0xff]
    %v2621 = vld [vmem:[%s703 + $0x8] sm:$0xff]
    %v2622 = vld [vmem:[%s703 + $0x10] sm:$0xff]
    %v2623 = vld [vmem:[%s703 + $0x18] sm:$0xff]
    %2625 = vst [vmem:[#allocation1] ss:$4 sm:$0xff] %v2619
    %v2626 = vld.sshfl [vmem:[#allocation1] sm:$0xff pattern:$0x73625140]
    %v2627 = vld.sshfl [vmem:[#allocation1 + $0x8] sm:$0xff pattern:$0x73625140]
    %v2628 = vld.sshfl [vmem:[#allocation1 + $0x10] sm:$0xff pattern:$0x73625140]
    %2629 = vrot.lane.b32.xlu0 %v2626, 113
    %v2630 = vpop.permute.xlu0 %2629
    %2631 = vrot.lane.b32.xlu0 %v2627, 113
    %v2632 = vpop.permute.xlu0 %2631
    %2633 = vrot.lane.b32.xlu0 %v2628, 113
    %v2634 = vpop.permute.xlu0 %2633
    %v2635 = vsel %vm284, %v2630, %v2632
    %v2636 = vsel %vm284, %v2632, %v2634
    %v2638 = vsel %vm113, %v2620, 0
    %v2641 = vsel %vm113, %v2621, 0
    %v2644 = vsel %vm113, %v2622, 0
    %v2647 = vsel %vm113, %v2623, 0
    %v2649 = vsel %vm81, %v2635, 0
    %v2651 = vsel %vm81, %v2636, 0
    %2653 = vmatpush.msra.mxu0 0.0
    %2654 = vmatpush.msra.mxu0 0.0
    %2655 = vmatpush.msra.mxu0 0.0
    %2656 = vmatpush.msra.mxu0 0.0
    %2657 = vmatpush.msra.mxu0 0.0
    %2658 = vmatpush.msra.mxu0 0.0
    %2659 = vmatpush.msra.mxu0 0.0
    %2660 = vmatpush.msra.mxu0 0.0
    %2661 = vmatpush.msra.mxu0 0.0
    %2662 = vmatpush.msra.mxu0 0.0
    %2663 = vmatpush.msra.mxu0 0.0
    %2664 = vmatpush.msra.mxu0 0.0
    %2665 = vmatpush.msra.mxu0 0.0
    %2666 = vmatpush.msra.mxu0 0.0
    %2667 = vmatpush.msra.mxu0 0.0
    %2668 = vmatpush.msra.mxu0 %v2649
    %2669 = vmatmul.f32.gmra.mxu0 %v2638
    %v2670 = vpop.f32.mrf.mxu0
    %v2671 = vadd.f32 0.0, %v2670
    %2672 = vmatmul.f32.gmra.mxu0 %v2641
    %v2673 = vpop.f32.mrf.mxu0
    %v2674 = vadd.f32 0.0, %v2673
    %2675 = vmatmul.f32.gmra.mxu0 %v2644
    %v2676 = vpop.f32.mrf.mxu0
    %v2677 = vadd.f32 0.0, %v2676
    %2678 = vmatmul.f32.gmra.mxu0 %v2647
    %v2679 = vpop.f32.mrf.mxu0
    %v2680 = vadd.f32 0.0, %v2679
    %2681 = vdwg.mxu0
    %2682 = vmatpush.msra.mxu0 0.0
    %2683 = vmatpush.msra.mxu0 0.0
    %2684 = vmatpush.msra.mxu0 0.0
    %2685 = vmatpush.msra.mxu0 0.0
    %2686 = vmatpush.msra.mxu0 0.0
    %2687 = vmatpush.msra.mxu0 0.0
    %2688 = vmatpush.msra.mxu0 0.0
    %2689 = vmatpush.msra.mxu0 0.0
    %2690 = vmatpush.msra.mxu0 0.0
    %2691 = vmatpush.msra.mxu0 0.0
    %2692 = vmatpush.msra.mxu0 0.0
    %2693 = vmatpush.msra.mxu0 0.0
    %2694 = vmatpush.msra.mxu0 0.0
    %2695 = vmatpush.msra.mxu0 0.0
    %2696 = vmatpush.msra.mxu0 0.0
    %2697 = vmatpush.msra.mxu0 %v2651
    %2698 = vmatmul.f32.gmra.mxu0 %v2638
    %v2699 = vpop.f32.mrf.mxu0
    %v2700 = vadd.f32 0.0, %v2699
    %2701 = vmatmul.f32.gmra.mxu0 %v2641
    %v2702 = vpop.f32.mrf.mxu0
    %v2703 = vadd.f32 0.0, %v2702
    %2704 = vmatmul.f32.gmra.mxu0 %v2644
    %v2705 = vpop.f32.mrf.mxu0
    %v2706 = vadd.f32 0.0, %v2705
    %2707 = vmatmul.f32.gmra.mxu0 %v2647
    %v2708 = vpop.f32.mrf.mxu0
    %v2709 = vadd.f32 0.0, %v2708
    %2710 = vdwg.mxu0
    %v2711 = vadd.f32 %v2610, %v2671
    %v2712 = vadd.f32 %v2611, %v2700
    %v2713 = vadd.f32 %v2612, %v2674
    %v2714 = vadd.f32 %v2613, %v2703
    %v2715 = vadd.f32 %v2614, %v2677
    %v2716 = vadd.f32 %v2615, %v2706
    %v2717 = vadd.f32 %v2616, %v2680
    %v2718 = vadd.f32 %v2617, %v2709
    %v2719 = vld [vmem:[#allocation2 + $0x2] sm:$0x3f]
    %v2720 = vld [vmem:[%s804] sm:$0xff]
    %v2721 = vld [vmem:[%s804 + $0x8] sm:$0xff]
    %v2722 = vld [vmem:[%s804 + $0x10] sm:$0xff]
    %v2723 = vld [vmem:[%s804 + $0x18] sm:$0xff]
    %2725 = vst [vmem:[#allocation1] ss:$4 sm:$0xff] %v2719
    %v2726 = vld.sshfl [vmem:[#allocation1] sm:$0xff pattern:$0x73625140]
    %v2727 = vld.sshfl [vmem:[#allocation1 + $0x8] sm:$0xff pattern:$0x73625140]
    %v2728 = vld.sshfl [vmem:[#allocation1 + $0x10] sm:$0xff pattern:$0x73625140]
    %2729 = vrot.lane.b32.xlu0 %v2726, 112
    %v2730 = vpop.permute.xlu0 %2729
    %2731 = vrot.lane.b32.xlu0 %v2727, 112
    %v2732 = vpop.permute.xlu0 %2731
    %2733 = vrot.lane.b32.xlu0 %v2728, 112
    %v2734 = vpop.permute.xlu0 %2733
    %v2735 = vsel %vm820, %v2730, %v2732
    %v2736 = vsel %vm820, %v2732, %v2734
    %v2738 = vsel %vm113, %v2720, 0
    %v2741 = vsel %vm113, %v2721, 0
    %v2744 = vsel %vm113, %v2722, 0
    %v2747 = vsel %vm113, %v2723, 0
    %v2749 = vsel %vm81, %v2735, 0
    %v2751 = vsel %vm81, %v2736, 0
    %2753 = vmatpush.msra.mxu0 0.0
    %2754 = vmatpush.msra.mxu0 0.0
    %2755 = vmatpush.msra.mxu0 0.0
    %2756 = vmatpush.msra.mxu0 0.0
    %2757 = vmatpush.msra.mxu0 0.0
    %2758 = vmatpush.msra.mxu0 0.0
    %2759 = vmatpush.msra.mxu0 0.0
    %2760 = vmatpush.msra.mxu0 0.0
    %2761 = vmatpush.msra.mxu0 0.0
    %2762 = vmatpush.msra.mxu0 0.0
    %2763 = vmatpush.msra.mxu0 0.0
    %2764 = vmatpush.msra.mxu0 0.0
    %2765 = vmatpush.msra.mxu0 0.0
    %2766 = vmatpush.msra.mxu0 0.0
    %2767 = vmatpush.msra.mxu0 0.0
    %2768 = vmatpush.msra.mxu0 %v2749
    %2769 = vmatmul.f32.gmra.mxu0 %v2738
    %v2770 = vpop.f32.mrf.mxu0
    %v2771 = vadd.f32 0.0, %v2770
    %2772 = vmatmul.f32.gmra.mxu0 %v2741
    %v2773 = vpop.f32.mrf.mxu0
    %v2774 = vadd.f32 0.0, %v2773
    %2775 = vmatmul.f32.gmra.mxu0 %v2744
    %v2776 = vpop.f32.mrf.mxu0
    %v2777 = vadd.f32 0.0, %v2776
    %2778 = vmatmul.f32.gmra.mxu0 %v2747
    %v2779 = vpop.f32.mrf.mxu0
    %v2780 = vadd.f32 0.0, %v2779
    %2781 = vdwg.mxu0
    %2782 = vmatpush.msra.mxu0 0.0
    %2783 = vmatpush.msra.mxu0 0.0
    %2784 = vmatpush.msra.mxu0 0.0
    %2785 = vmatpush.msra.mxu0 0.0
    %2786 = vmatpush.msra.mxu0 0.0
    %2787 = vmatpush.msra.mxu0 0.0
    %2788 = vmatpush.msra.mxu0 0.0
    %2789 = vmatpush.msra.mxu0 0.0
    %2790 = vmatpush.msra.mxu0 0.0
    %2791 = vmatpush.msra.mxu0 0.0
    %2792 = vmatpush.msra.mxu0 0.0
    %2793 = vmatpush.msra.mxu0 0.0
    %2794 = vmatpush.msra.mxu0 0.0
    %2795 = vmatpush.msra.mxu0 0.0
    %2796 = vmatpush.msra.mxu0 0.0
    %2797 = vmatpush.msra.mxu0 %v2751
    %2798 = vmatmul.f32.gmra.mxu0 %v2738
    %v2799 = vpop.f32.mrf.mxu0
    %v2800 = vadd.f32 0.0, %v2799
    %2801 = vmatmul.f32.gmra.mxu0 %v2741
    %v2802 = vpop.f32.mrf.mxu0
    %v2803 = vadd.f32 0.0, %v2802
    %2804 = vmatmul.f32.gmra.mxu0 %v2744
    %v2805 = vpop.f32.mrf.mxu0
    %v2806 = vadd.f32 0.0, %v2805
    %2807 = vmatmul.f32.gmra.mxu0 %v2747
    %v2808 = vpop.f32.mrf.mxu0
    %v2809 = vadd.f32 0.0, %v2808
    %2810 = vdwg.mxu0
    %v2811 = vadd.f32 %v2711, %v2771
    %v2812 = vadd.f32 %v2712, %v2800
    %v2813 = vadd.f32 %v2713, %v2774
    %v2814 = vadd.f32 %v2714, %v2803
    %v2815 = vadd.f32 %v2715, %v2777
    %v2816 = vadd.f32 %v2716, %v2806
    %v2817 = vadd.f32 %v2717, %v2780
    %v2818 = vadd.f32 %v2718, %v2809
    %v2819 = vld [vmem:[#allocation2 + $0x2] sm:$0x3f]
    %v2820 = vmul.f32 %v2819, %v909
    %v2821 = vld [vmem:[%s912] sm:$0xff]
    %v2822 = vld [vmem:[%s912 + $0x8] sm:$0xff]
    %v2823 = vld [vmem:[%s912 + $0x10] sm:$0xff]
    %v2824 = vld [vmem:[%s912 + $0x18] sm:$0xff]
    %2826 = vst [vmem:[#allocation1] ss:$4 sm:$0xff] %v2820
    %v2827 = vld.sshfl [vmem:[#allocation1] sm:$0xff pattern:$0x73625140]
    %v2828 = vld.sshfl [vmem:[#allocation1 + $0x8] sm:$0xff pattern:$0x73625140]
    %v2829 = vld.sshfl [vmem:[#allocation1 + $0x10] sm:$0xff pattern:$0x73625140]
    %2830 = vrot.lane.b32.xlu0 %v2827, 111
    %v2831 = vpop.permute.xlu0 %2830
    %2832 = vrot.lane.b32.xlu0 %v2828, 111
    %v2833 = vpop.permute.xlu0 %2832
    %2834 = vrot.lane.b32.xlu0 %v2829, 111
    %v2835 = vpop.permute.xlu0 %2834
    %v2836 = vsel %vm86, %v2831, %v2833
    %v2837 = vsel %vm86, %v2833, %v2835
    %v2839 = vsel %vm113, %v2821, 0
    %v2842 = vsel %vm113, %v2822, 0
    %v2845 = vsel %vm113, %v2823, 0
    %v2848 = vsel %vm113, %v2824, 0
    %v2850 = vsel %vm81, %v2836, 0
    %v2852 = vsel %vm81, %v2837, 0
    %2854 = vmatpush.msra.mxu0 0.0
    %2855 = vmatpush.msra.mxu0 0.0
    %2856 = vmatpush.msra.mxu0 0.0
    %2857 = vmatpush.msra.mxu0 0.0
    %2858 = vmatpush.msra.mxu0 0.0
    %2859 = vmatpush.msra.mxu0 0.0
    %2860 = vmatpush.msra.mxu0 0.0
    %2861 = vmatpush.msra.mxu0 0.0
    %2862 = vmatpush.msra.mxu0 0.0
    %2863 = vmatpush.msra.mxu0 0.0
    %2864 = vmatpush.msra.mxu0 0.0
    %2865 = vmatpush.msra.mxu0 0.0
    %2866 = vmatpush.msra.mxu0 0.0
    %2867 = vmatpush.msra.mxu0 0.0
    %2868 = vmatpush.msra.mxu0 0.0
    %2869 = vmatpush.msra.mxu0 %v2850
    %2870 = vmatmul.f32.gmra.mxu0 %v2839
    %v2871 = vpop.f32.mrf.mxu0
    %v2872 = vadd.f32 0.0, %v2871
    %2873 = vmatmul.f32.gmra.mxu0 %v2842
    %v2874 = vpop.f32.mrf.mxu0
    %v2875 = vadd.f32 0.0, %v2874
    %2876 = vmatmul.f32.gmra.mxu0 %v2845
    %v2877 = vpop.f32.mrf.mxu0
    %v2878 = vadd.f32 0.0, %v2877
    %2879 = vmatmul.f32.gmra.mxu0 %v2848
    %v2880 = vpop.f32.mrf.mxu0
    %v2881 = vadd.f32 0.0, %v2880
    %2882 = vdwg.mxu0
    %2883 = vmatpush.msra.mxu0 0.0
    %2884 = vmatpush.msra.mxu0 0.0
    %2885 = vmatpush.msra.mxu0 0.0
    %2886 = vmatpush.msra.mxu0 0.0
    %2887 = vmatpush.msra.mxu0 0.0
    %2888 = vmatpush.msra.mxu0 0.0
    %2889 = vmatpush.msra.mxu0 0.0
    %2890 = vmatpush.msra.mxu0 0.0
    %2891 = vmatpush.msra.mxu0 0.0
    %2892 = vmatpush.msra.mxu0 0.0
    %2893 = vmatpush.msra.mxu0 0.0
    %2894 = vmatpush.msra.mxu0 0.0
    %2895 = vmatpush.msra.mxu0 0.0
    %2896 = vmatpush.msra.mxu0 0.0
    %2897 = vmatpush.msra.mxu0 0.0
    %2898 = vmatpush.msra.mxu0 %v2852
    %2899 = vmatmul.f32.gmra.mxu0 %v2839
    %v2900 = vpop.f32.mrf.mxu0
    %v2901 = vadd.f32 0.0, %v2900
    %2902 = vmatmul.f32.gmra.mxu0 %v2842
    %v2903 = vpop.f32.mrf.mxu0
    %v2904 = vadd.f32 0.0, %v2903
    %2905 = vmatmul.f32.gmra.mxu0 %v2845
    %v2906 = vpop.f32.mrf.mxu0
    %v2907 = vadd.f32 0.0, %v2906
    %2908 = vmatmul.f32.gmra.mxu0 %v2848
    %v2909 = vpop.f32.mrf.mxu0
    %v2910 = vadd.f32 0.0, %v2909
    %2911 = vdwg.mxu0
    %v2912 = vadd.f32 %v2811, %v2872
    %v2913 = vadd.f32 %v2812, %v2901
    %v2914 = vadd.f32 %v2813, %v2875
    %v2915 = vadd.f32 %v2814, %v2904
    %v2916 = vadd.f32 %v2815, %v2878
    %v2917 = vadd.f32 %v2816, %v2907
    %v2918 = vadd.f32 %v2817, %v2881
    %v2919 = vadd.f32 %v2818, %v2910
    %v2920 = vld [vmem:[%s2] sm:$0xff]
    %v2921 = vld [vmem:[%s2 + $0x8] sm:$0xff]
    %v2922 = vld [vmem:[%s2 + $0x10] sm:$0xff]
    %v2923 = vld [vmem:[%s2 + $0x18] sm:$0xff]
    %2925 = vset.pattern.permute.xlu0 0
    %2926 = vperm.xlu0 %2925, %v2920
    %v2927 = vpop.permute.xlu0 %2926
    %2930 = vset.pattern.permute.xlu0 0
    %2931 = vperm.xlu0 %2930, %v2921
    %v2932 = vpop.permute.xlu0 %2931
    %2935 = vset.pattern.permute.xlu0 0
    %2936 = vperm.xlu0 %2935, %v2922
    %v2937 = vpop.permute.xlu0 %2936
    %2940 = vset.pattern.permute.xlu0 0
    %2941 = vperm.xlu0 %2940, %v2923
    %v2942 = vpop.permute.xlu0 %2941
    %v2944 = vadd.f32 %v2912, %v2927
    %v2945 = vadd.f32 %v2913, %v2927
    %v2946 = vadd.f32 %v2914, %v2932
    %v2947 = vadd.f32 %v2915, %v2932
    %v2948 = vadd.f32 %v2916, %v2937
    %v2949 = vadd.f32 %v2917, %v2937
    %v2950 = vadd.f32 %v2918, %v2942
    %v2951 = vadd.f32 %v2919, %v2942
    %v2952 = vmax.f32 %v2944, 0.0
    %v2953 = vmax.f32 %v2945, 0.0
    %v2954 = vmax.f32 %v2946, 0.0
    %v2955 = vmax.f32 %v2947, 0.0
    %v2956 = vmax.f32 %v2948, 0.0
    %v2957 = vmax.f32 %v2949, 0.0
    %v2958 = vmax.f32 %v2950, 0.0
    %v2959 = vmax.f32 %v2951, 0.0
    %v2960 = vld [vmem:[%s3] sm:$0xff]
    %v2961 = vld [vmem:[%s3 + $0x8] sm:$0xff]
    %v2962 = vld [vmem:[%s3 + $0x10] sm:$0xff]
    %v2963 = vld [vmem:[%s3 + $0x18] sm:$0xff]
    %v2964 = vld [vmem:[%s4] sm:$0xff]
    %v2965 = vld [vmem:[%s4 + $0x8] sm:$0xff]
    %v2966 = vld [vmem:[%s4 + $0x10] sm:$0xff]
    %v2967 = vld [vmem:[%s4 + $0x18] sm:$0xff]
    %2969 = vset.pattern.permute.xlu0 0
    %2970 = vperm.xlu0 %2969, %v2964
    %v2971 = vpop.permute.xlu0 %2970
    %2974 = vset.pattern.permute.xlu0 0
    %2975 = vperm.xlu0 %2974, %v2965
    %v2976 = vpop.permute.xlu0 %2975
    %2979 = vset.pattern.permute.xlu0 0
    %2980 = vperm.xlu0 %2979, %v2966
    %v2981 = vpop.permute.xlu0 %2980
    %2984 = vset.pattern.permute.xlu0 0
    %2985 = vperm.xlu0 %2984, %v2967
    %v2986 = vpop.permute.xlu0 %2985
    %v2989 = vsel %vm1080, %v2960, 0
    %v2992 = vsel %vm1080, %v2961, 0
    %v2995 = vsel %vm1080, %v2962, 0
    %v2998 = vsel %vm1080, %v2963, 0
    %3000 = vmatpush.msra.mxu0 0.0
    %3001 = vmatpush.msra.mxu0 0.0
    %3002 = vmatpush.msra.mxu0 0.0
    %3003 = vmatpush.msra.mxu0 0.0
    %3004 = vmatpush.msra.mxu0 0.0
    %3005 = vmatpush.msra.mxu0 0.0
    %3006 = vmatpush.msra.mxu0 0.0
    %3007 = vmatpush.msra.mxu0 0.0
    %3008 = vmatpush.msra.mxu0 0.0
    %3009 = vmatpush.msra.mxu0 0.0
    %3010 = vmatpush.msra.mxu0 0.0
    %3011 = vmatpush.msra.mxu0 0.0
    %3012 = vmatpush.msra.mxu0 %v2958
    %3013 = vmatpush.msra.mxu0 %v2956
    %3014 = vmatpush.msra.mxu0 %v2954
    %3015 = vmatpush.msra.mxu0 %v2952
    %3016 = vmatmul.f32.gmra.mxu0 %v2989
    %v3017 = vpop.f32.mrf.mxu0
    %v3018 = vadd.f32 %v2971, %v3017
    %3019 = vmatmul.f32.gmra.mxu0 %v2992
    %v3020 = vpop.f32.mrf.mxu0
    %v3021 = vadd.f32 %v2976, %v3020
    %3022 = vmatmul.f32.gmra.mxu0 %v2995
    %v3023 = vpop.f32.mrf.mxu0
    %v3024 = vadd.f32 %v2981, %v3023
    %3025 = vmatmul.f32.gmra.mxu0 %v2998
    %v3026 = vpop.f32.mrf.mxu0
    %v3027 = vadd.f32 %v2986, %v3026
    %3028 = vdwg.mxu0
    %3029 = vmatpush.msra.mxu0 0.0
    %3030 = vmatpush.msra.mxu0 0.0
    %3031 = vmatpush.msra.mxu0 0.0
    %3032 = vmatpush.msra.mxu0 0.0
    %3033 = vmatpush.msra.mxu0 0.0
    %3034 = vmatpush.msra.mxu0 0.0
    %3035 = vmatpush.msra.mxu0 0.0
    %3036 = vmatpush.msra.mxu0 0.0
    %3037 = vmatpush.msra.mxu0 0.0
    %3038 = vmatpush.msra.mxu0 0.0
    %3039 = vmatpush.msra.mxu0 0.0
    %3040 = vmatpush.msra.mxu0 0.0
    %3041 = vmatpush.msra.mxu0 %v2959
    %3042 = vmatpush.msra.mxu0 %v2957
    %3043 = vmatpush.msra.mxu0 %v2955
    %3044 = vmatpush.msra.mxu0 %v2953
    %3045 = vmatmul.f32.gmra.mxu0 %v2989
    %v3046 = vpop.f32.mrf.mxu0
    %v3047 = vadd.f32 %v2971, %v3046
    %3048 = vmatmul.f32.gmra.mxu0 %v2992
    %v3049 = vpop.f32.mrf.mxu0
    %v3050 = vadd.f32 %v2976, %v3049
    %3051 = vmatmul.f32.gmra.mxu0 %v2995
    %v3052 = vpop.f32.mrf.mxu0
    %v3053 = vadd.f32 %v2981, %v3052
    %3054 = vmatmul.f32.gmra.mxu0 %v2998
    %v3055 = vpop.f32.mrf.mxu0
    %v3056 = vadd.f32 %v2986, %v3055
    %3057 = vdwg.mxu0
    %v3058 = vmax.f32 %v3018, 0.0
    %v3059 = vmax.f32 %v3047, 0.0
    %v3060 = vmax.f32 %v3021, 0.0
    %v3061 = vmax.f32 %v3050, 0.0
    %v3062 = vmax.f32 %v3024, 0.0
    %v3063 = vmax.f32 %v3053, 0.0
    %v3064 = vmax.f32 %v3027, 0.0
    %v3065 = vmax.f32 %v3056, 0.0
    %3066 = vst [vmem:[#allocation3 + $0x8] sm:$0xff] %v3058
    %3067 = vst [vmem:[#allocation3 + $0x10] sm:$0xff] %v3059
    %3068 = vst [vmem:[#allocation3 + $0x28] sm:$0xff] %v3060
    %3069 = vst [vmem:[#allocation3 + $0x30] sm:$0xff] %v3061
    %3070 = vst [vmem:[#allocation3 + $0x48] sm:$0xff] %v3062
    %3071 = vst [vmem:[#allocation3 + $0x50] sm:$0xff] %v3063
    %3072 = vst [vmem:[#allocation3 + $0x68] sm:$0xff] %v3064
    %3073 = vst [vmem:[#allocation3 + $0x70] sm:$0xff] %v3065
    %v3074 = vld [vmem:[#allocation3] sm:$0xff]
    %v3075 = vld [vmem:[#allocation3 + $0x8] sm:$0xff]
    %v3076 = vld [vmem:[#allocation3 + $0x10] sm:$0xff]
    %v3077 = vld [vmem:[#allocation3 + $0x20] sm:$0xff]
    %v3078 = vld [vmem:[#allocation3 + $0x28] sm:$0xff]
    %v3079 = vld [vmem:[#allocation3 + $0x30] sm:$0xff]
    %v3080 = vld [vmem:[#allocation3 + $0x40] sm:$0xff]
    %v3081 = vld [vmem:[#allocation3 + $0x48] sm:$0xff]
    %v3082 = vld [vmem:[#allocation3 + $0x50] sm:$0xff]
    %v3083 = vld [vmem:[#allocation3 + $0x60] sm:$0xff]
    %v3084 = vld [vmem:[#allocation3 + $0x68] sm:$0xff]
    %v3085 = vld [vmem:[#allocation3 + $0x70] sm:$0xff]
    %v3086 = vld [vmem:[%s5] sm:$0xf]
    %v3087 = vld [vmem:[%s1180] sm:$0xf]
    %v3088 = vld [vmem:[%s1182] sm:$0xf]
    %v3089 = vld [vmem:[%s1184] sm:$0xf]
    %3102 = vrot.lane.b32.xlu0 %v3074, 1
    %v3103 = vpop.permute.xlu0 %3102
    %3104 = vrot.lane.b32.xlu0 %v3075, 1
    %v3105 = vpop.permute.xlu0 %3104
    %3106 = vrot.lane.b32.xlu0 %v3076, 1
    %v3107 = vpop.permute.xlu0 %3106
    %3108 = vrot.lane.b32.xlu0 %v3077, 1
    %v3109 = vpop.permute.xlu0 %3108
    %3110 = vrot.lane.b32.xlu0 %v3078, 1
    %v3111 = vpop.permute.xlu0 %3110
    %3112 = vrot.lane.b32.xlu0 %v3079, 1
    %v3113 = vpop.permute.xlu0 %3112
    %3114 = vrot.lane.b32.xlu0 %v3080, 1
    %v3115 = vpop.permute.xlu0 %3114
    %3116 = vrot.lane.b32.xlu0 %v3081, 1
    %v3117 = vpop.permute.xlu0 %3116
    %3118 = vrot.lane.b32.xlu0 %v3082, 1
    %v3119 = vpop.permute.xlu0 %3118
    %3120 = vrot.lane.b32.xlu0 %v3083, 1
    %v3121 = vpop.permute.xlu0 %3120
    %3122 = vrot.lane.b32.xlu0 %v3084, 1
    %v3123 = vpop.permute.xlu0 %3122
    %3124 = vrot.lane.b32.xlu0 %v3085, 1
    %v3125 = vpop.permute.xlu0 %3124
    %v3126 = vsel %vm413, %v3103, %v3105
    %v3127 = vsel %vm413, %v3105, %v3107
    %v3128 = vsel %vm413, %v3109, %v3111
    %v3129 = vsel %vm413, %v3111, %v3113
    %v3130 = vsel %vm413, %v3115, %v3117
    %v3131 = vsel %vm413, %v3117, %v3119
    %v3132 = vsel %vm413, %v3121, %v3123
    %v3133 = vsel %vm413, %v3123, %v3125
    %v3143 = vsel %vm1080, %v3089, 0
    %3145 = vmatpush.msra.mxu0 0.0
    %3146 = vmatpush.msra.mxu0 0.0
    %3147 = vmatpush.msra.mxu0 0.0
    %3148 = vmatpush.msra.mxu0 0.0
    %3149 = vmatpush.msra.mxu0 0.0
    %3150 = vmatpush.msra.mxu0 0.0
    %3151 = vmatpush.msra.mxu0 0.0
    %3152 = vmatpush.msra.mxu0 0.0
    %3153 = vmatpush.msra.mxu0 0.0
    %3154 = vmatpush.msra.mxu0 0.0
    %3155 = vmatpush.msra.mxu0 0.0
    %3156 = vmatpush.msra.mxu0 0.0
    %3157 = vmatpush.msra.mxu0 %v3132
    %3158 = vmatpush.msra.mxu0 %v3130
    %3159 = vmatpush.msra.mxu0 %v3128
    %3160 = vmatpush.msra.mxu0 %v3126
    %3161 = vmatmul.f32.gmra.mxu0 %v3143
    %v3162 = vpop.f32.mrf.mxu0
    %v3163 = vadd.f32 0.0, %v3162
    %3164 = vdwg.mxu0
    %3165 = vmatpush.msra.mxu0 0.0
    %3166 = vmatpush.msra.mxu0 0.0
    %3167 = vmatpush.msra.mxu0 0.0
    %3168 = vmatpush.msra.mxu0 0.0
    %3169 = vmatpush.msra.mxu0 0.0
    %3170 = vmatpush.msra.mxu0 0.0
    %3171 = vmatpush.msra.mxu0 0.0
    %3172 = vmatpush.msra.mxu0 0.0
    %3173 = vmatpush.msra.mxu0 0.0
    %3174 = vmatpush.msra.mxu0 0.0
    %3175 = vmatpush.msra.mxu0 0.0
    %3176 = vmatpush.msra.mxu0 0.0
    %3177 = vmatpush.msra.mxu0 %v3133
    %3178 = vmatpush.msra.mxu0 %v3131
    %3179 = vmatpush.msra.mxu0 %v3129
    %3180 = vmatpush.msra.mxu0 %v3127
    %3181 = vmatmul.f32.gmra.mxu0 %v3143
    %v3182 = vpop.f32.mrf.mxu0
    %v3183 = vadd.f32 0.0, %v3182
    %3184 = vdwg.mxu0
    %3185 = vrot.lane.b32.xlu0 %v3074, 17
    %v3186 = vpop.permute.xlu0 %3185
    %3187 = vrot.lane.b32.xlu0 %v3075, 17
    %v3188 = vpop.permute.xlu0 %3187
    %3189 = vrot.lane.b32.xlu0 %v3076, 17
    %v3190 = vpop.permute.xlu0 %3189
    %3191 = vrot.lane.b32.xlu0 %v3077, 17
    %v3192 = vpop.permute.xlu0 %3191
    %3193 = vrot.lane.b32.xlu0 %v3078, 17
    %v3194 = vpop.permute.xlu0 %3193
    %3195 = vrot.lane.b32.xlu0 %v3079, 17
    %v3196 = vpop.permute.xlu0 %3195
    %3197 = vrot.lane.b32.xlu0 %v3080, 17
    %v3198 = vpop.permute.xlu0 %3197
    %3199 = vrot.lane.b32.xlu0 %v3081, 17
    %v3200 = vpop.permute.xlu0 %3199
    %3201 = vrot.lane.b32.xlu0 %v3082, 17
    %v3202 = vpop.permute.xlu0 %3201
    %3203 = vrot.lane.b32.xlu0 %v3083, 17
    %v3204 = vpop.permute.xlu0 %3203
    %3205 = vrot.lane.b32.xlu0 %v3084, 17
    %v3206 = vpop.permute.xlu0 %3205
    %3207 = vrot.lane.b32.xlu0 %v3085, 17
    %v3208 = vpop.permute.xlu0 %3207
    %v3209 = vsel %vm199, %v3186, %v3188
    %v3210 = vsel %vm199, %v3188, %v3190
    %v3211 = vsel %vm199, %v3192, %v3194
    %v3212 = vsel %vm199, %v3194, %v3196
    %v3213 = vsel %vm199, %v3198, %v3200
    %v3214 = vsel %vm199, %v3200, %v3202
    %v3215 = vsel %vm199, %v3204, %v3206
    %v3216 = vsel %vm199, %v3206, %v3208
    %v3226 = vsel %vm1080, %v3086, 0
    %3228 = vmatpush.msra.mxu0 0.0
    %3229 = vmatpush.msra.mxu0 0.0
    %3230 = vmatpush.msra.mxu0 0.0
    %3231 = vmatpush.msra.mxu0 0.0
    %3232 = vmatpush.msra.mxu0 0.0
    %3233 = vmatpush.msra.mxu0 0.0
    %3234 = vmatpush.msra.mxu0 0.0
    %3235 = vmatpush.msra.mxu0 0.0
    %3236 = vmatpush.msra.mxu0 0.0
    %3237 = vmatpush.msra.mxu0 0.0
    %3238 = vmatpush.msra.mxu0 0.0
    %3239 = vmatpush.msra.mxu0 0.0
    %3240 = vmatpush.msra.mxu0 %v3215
    %3241 = vmatpush.msra.mxu0 %v3213
    %3242 = vmatpush.msra.mxu0 %v3211
    %3243 = vmatpush.msra.mxu0 %v3209
    %3244 = vmatmul.f32.gmra.mxu0 %v3226
    %v3245 = vpop.f32.mrf.mxu0
    %v3246 = vadd.f32 %v3163, %v3245
    %3247 = vdwg.mxu0
    %3248 = vmatpush.msra.mxu0 0.0
    %3249 = vmatpush.msra.mxu0 0.0
    %3250 = vmatpush.msra.mxu0 0.0
    %3251 = vmatpush.msra.mxu0 0.0
    %3252 = vmatpush.msra.mxu0 0.0
    %3253 = vmatpush.msra.mxu0 0.0
    %3254 = vmatpush.msra.mxu0 0.0
    %3255 = vmatpush.msra.mxu0 0.0
    %3256 = vmatpush.msra.mxu0 0.0
    %3257 = vmatpush.msra.mxu0 0.0
    %3258 = vmatpush.msra.mxu0 0.0
    %3259 = vmatpush.msra.mxu0 0.0
    %3260 = vmatpush.msra.mxu0 %v3216
    %3261 = vmatpush.msra.mxu0 %v3214
    %3262 = vmatpush.msra.mxu0 %v3212
    %3263 = vmatpush.msra.mxu0 %v3210
    %3264 = vmatmul.f32.gmra.mxu0 %v3226
    %v3265 = vpop.f32.mrf.mxu0
    %v3266 = vadd.f32 %v3183, %v3265
    %3267 = vdwg.mxu0
    %v3268 = vld [vmem:[%s1364] sm:$0xf]
    %v3270 = vsel %vm1080, %v3268, 0
    %3272 = vmatpush.msra.mxu0 0.0
    %3273 = vmatpush.msra.mxu0 0.0
    %3274 = vmatpush.msra.mxu0 0.0
    %3275 = vmatpush.msra.mxu0 0.0
    %3276 = vmatpush.msra.mxu0 0.0
    %3277 = vmatpush.msra.mxu0 0.0
    %3278 = vmatpush.msra.mxu0 0.0
    %3279 = vmatpush.msra.mxu0 0.0
    %3280 = vmatpush.msra.mxu0 0.0
    %3281 = vmatpush.msra.mxu0 0.0
    %3282 = vmatpush.msra.mxu0 0.0
    %3283 = vmatpush.msra.mxu0 0.0
    %3284 = vmatpush.msra.mxu0 %v3064
    %3285 = vmatpush.msra.mxu0 %v3062
    %3286 = vmatpush.msra.mxu0 %v3060
    %3287 = vmatpush.msra.mxu0 %v3058
    %3288 = vmatmul.f32.gmra.mxu0 %v3270
    %v3289 = vpop.f32.mrf.mxu0
    %v3290 = vadd.f32 0.0, %v3289
    %3291 = vdwg.mxu0
    %3292 = vmatpush.msra.mxu0 0.0
    %3293 = vmatpush.msra.mxu0 0.0
    %3294 = vmatpush.msra.mxu0 0.0
    %3295 = vmatpush.msra.mxu0 0.0
    %3296 = vmatpush.msra.mxu0 0.0
    %3297 = vmatpush.msra.mxu0 0.0
    %3298 = vmatpush.msra.mxu0 0.0
    %3299 = vmatpush.msra.mxu0 0.0
    %3300 = vmatpush.msra.mxu0 0.0
    %3301 = vmatpush.msra.mxu0 0.0
    %3302 = vmatpush.msra.mxu0 0.0
    %3303 = vmatpush.msra.mxu0 0.0
    %3304 = vmatpush.msra.mxu0 %v3065
    %3305 = vmatpush.msra.mxu0 %v3063
    %3306 = vmatpush.msra.mxu0 %v3061
    %3307 = vmatpush.msra.mxu0 %v3059
    %3308 = vmatmul.f32.gmra.mxu0 %v3270
    %v3309 = vpop.f32.mrf.mxu0
    %v3310 = vadd.f32 0.0, %v3309
    %3311 = vdwg.mxu0
    %3312 = vrot.lane.b32.xlu0 %v3074, 16
    %v3313 = vpop.permute.xlu0 %3312
    %3314 = vrot.lane.b32.xlu0 %v3075, 16
    %v3315 = vpop.permute.xlu0 %3314
    %3316 = vrot.lane.b32.xlu0 %v3076, 16
    %v3317 = vpop.permute.xlu0 %3316
    %3318 = vrot.lane.b32.xlu0 %v3077, 16
    %v3319 = vpop.permute.xlu0 %3318
    %3320 = vrot.lane.b32.xlu0 %v3078, 16
    %v3321 = vpop.permute.xlu0 %3320
    %3322 = vrot.lane.b32.xlu0 %v3079, 16
    %v3323 = vpop.permute.xlu0 %3322
    %3324 = vrot.lane.b32.xlu0 %v3080, 16
    %v3325 = vpop.permute.xlu0 %3324
    %3326 = vrot.lane.b32.xlu0 %v3081, 16
    %v3327 = vpop.permute.xlu0 %3326
    %3328 = vrot.lane.b32.xlu0 %v3082, 16
    %v3329 = vpop.permute.xlu0 %3328
    %3330 = vrot.lane.b32.xlu0 %v3083, 16
    %v3331 = vpop.permute.xlu0 %3330
    %3332 = vrot.lane.b32.xlu0 %v3084, 16
    %v3333 = vpop.permute.xlu0 %3332
    %3334 = vrot.lane.b32.xlu0 %v3085, 16
    %v3335 = vpop.permute.xlu0 %3334
    %v3336 = vsel %vm110, %v3313, %v3315
    %v3337 = vsel %vm110, %v3315, %v3317
    %v3338 = vsel %vm110, %v3319, %v3321
    %v3339 = vsel %vm110, %v3321, %v3323
    %v3340 = vsel %vm110, %v3325, %v3327
    %v3341 = vsel %vm110, %v3327, %v3329
    %v3342 = vsel %vm110, %v3331, %v3333
    %v3343 = vsel %vm110, %v3333, %v3335
    %v3353 = vsel %vm1080, %v3087, 0
    %3355 = vmatpush.msra.mxu0 0.0
    %3356 = vmatpush.msra.mxu0 0.0
    %3357 = vmatpush.msra.mxu0 0.0
    %3358 = vmatpush.msra.mxu0 0.0
    %3359 = vmatpush.msra.mxu0 0.0
    %3360 = vmatpush.msra.mxu0 0.0
    %3361 = vmatpush.msra.mxu0 0.0
    %3362 = vmatpush.msra.mxu0 0.0
    %3363 = vmatpush.msra.mxu0 0.0
    %3364 = vmatpush.msra.mxu0 0.0
    %3365 = vmatpush.msra.mxu0 0.0
    %3366 = vmatpush.msra.mxu0 0.0
    %3367 = vmatpush.msra.mxu0 %v3342
    %3368 = vmatpush.msra.mxu0 %v3340
    %3369 = vmatpush.msra.mxu0 %v3338
    %3370 = vmatpush.msra.mxu0 %v3336
    %3371 = vmatmul.f32.gmra.mxu0 %v3353
    %v3372 = vpop.f32.mrf.mxu0
    %v3373 = vadd.f32 %v3290, %v3372
    %3374 = vdwg.mxu0
    %3375 = vmatpush.msra.mxu0 0.0
    %3376 = vmatpush.msra.mxu0 0.0
    %3377 = vmatpush.msra.mxu0 0.0
    %3378 = vmatpush.msra.mxu0 0.0
    %3379 = vmatpush.msra.mxu0 0.0
    %3380 = vmatpush.msra.mxu0 0.0
    %3381 = vmatpush.msra.mxu0 0.0
    %3382 = vmatpush.msra.mxu0 0.0
    %3383 = vmatpush.msra.mxu0 0.0
    %3384 = vmatpush.msra.mxu0 0.0
    %3385 = vmatpush.msra.mxu0 0.0
    %3386 = vmatpush.msra.mxu0 0.0
    %3387 = vmatpush.msra.mxu0 %v3343
    %3388 = vmatpush.msra.mxu0 %v3341
    %3389 = vmatpush.msra.mxu0 %v3339
    %3390 = vmatpush.msra.mxu0 %v3337
    %3391 = vmatmul.f32.gmra.mxu0 %v3353
    %v3392 = vpop.f32.mrf.mxu0
    %v3393 = vadd.f32 %v3310, %v3392
    %3394 = vdwg.mxu0
    %v3395 = vld [vmem:[#allocation3 + $0x8] sm:$0xff]
    %v3396 = vld [vmem:[#allocation3 + $0x10] sm:$0xff]
    %v3397 = vld [vmem:[#allocation3 + $0x18] sm:$0xff]
    %v3398 = vld [vmem:[#allocation3 + $0x28] sm:$0xff]
    %v3399 = vld [vmem:[#allocation3 + $0x30] sm:$0xff]
    %v3400 = vld [vmem:[#allocation3 + $0x38] sm:$0xff]
    %v3401 = vld [vmem:[#allocation3 + $0x48] sm:$0xff]
    %v3402 = vld [vmem:[#allocation3 + $0x50] sm:$0xff]
    %v3403 = vld [vmem:[#allocation3 + $0x58] sm:$0xff]
    %v3404 = vld [vmem:[#allocation3 + $0x68] sm:$0xff]
    %v3405 = vld [vmem:[#allocation3 + $0x70] sm:$0xff]
    %v3406 = vld [vmem:[#allocation3 + $0x78] sm:$0xff]
    %v3407 = vld [vmem:[%s1504] sm:$0xf]
    %3420 = vrot.lane.b32.xlu0 %v3395, 127
    %v3421 = vpop.permute.xlu0 %3420
    %3422 = vrot.lane.b32.xlu0 %v3396, 127
    %v3423 = vpop.permute.xlu0 %3422
    %3424 = vrot.lane.b32.xlu0 %v3397, 127
    %v3425 = vpop.permute.xlu0 %3424
    %3426 = vrot.lane.b32.xlu0 %v3398, 127
    %v3427 = vpop.permute.xlu0 %3426
    %3428 = vrot.lane.b32.xlu0 %v3399, 127
    %v3429 = vpop.permute.xlu0 %3428
    %3430 = vrot.lane.b32.xlu0 %v3400, 127
    %v3431 = vpop.permute.xlu0 %3430
    %3432 = vrot.lane.b32.xlu0 %v3401, 127
    %v3433 = vpop.permute.xlu0 %3432
    %3434 = vrot.lane.b32.xlu0 %v3402, 127
    %v3435 = vpop.permute.xlu0 %3434
    %3436 = vrot.lane.b32.xlu0 %v3403, 127
    %v3437 = vpop.permute.xlu0 %3436
    %3438 = vrot.lane.b32.xlu0 %v3404, 127
    %v3439 = vpop.permute.xlu0 %3438
    %3440 = vrot.lane.b32.xlu0 %v3405, 127
    %v3441 = vpop.permute.xlu0 %3440
    %3442 = vrot.lane.b32.xlu0 %v3406, 127
    %v3443 = vpop.permute.xlu0 %3442
    %v3444 = vsel %vm393, %v3421, %v3423
    %v3445 = vsel %vm393, %v3423, %v3425
    %v3446 = vsel %vm393, %v3427, %v3429
    %v3447 = vsel %vm393, %v3429, %v3431
    %v3448 = vsel %vm393, %v3433, %v3435
    %v3449 = vsel %vm393, %v3435, %v3437
    %v3450 = vsel %vm393, %v3439, %v3441
    %v3451 = vsel %vm393, %v3441, %v3443
    %v3461 = vsel %vm1080, %v3407, 0
    %3463 = vmatpush.msra.mxu0 0.0
    %3464 = vmatpush.msra.mxu0 0.0
    %3465 = vmatpush.msra.mxu0 0.0
    %3466 = vmatpush.msra.mxu0 0.0
    %3467 = vmatpush.msra.mxu0 0.0
    %3468 = vmatpush.msra.mxu0 0.0
    %3469 = vmatpush.msra.mxu0 0.0
    %3470 = vmatpush.msra.mxu0 0.0
    %3471 = vmatpush.msra.mxu0 0.0
    %3472 = vmatpush.msra.mxu0 0.0
    %3473 = vmatpush.msra.mxu0 0.0
    %3474 = vmatpush.msra.mxu0 0.0
    %3475 = vmatpush.msra.mxu0 %v3450
    %3476 = vmatpush.msra.mxu0 %v3448
    %3477 = vmatpush.msra.mxu0 %v3446
    %3478 = vmatpush.msra.mxu0 %v3444
    %3479 = vmatmul.f32.gmra.mxu0 %v3461
    %v3480 = vpop.f32.mrf.mxu0
    %v3481 = vadd.f32 0.0, %v3480
    %3482 = vdwg.mxu0
    %3483 = vmatpush.msra.mxu0 0.0
    %3484 = vmatpush.msra.mxu0 0.0
    %3485 = vmatpush.msra.mxu0 0.0
    %3486 = vmatpush.msra.mxu0 0.0
    %3487 = vmatpush.msra.mxu0 0.0
    %3488 = vmatpush.msra.mxu0 0.0
    %3489 = vmatpush.msra.mxu0 0.0
    %3490 = vmatpush.msra.mxu0 0.0
    %3491 = vmatpush.msra.mxu0 0.0
    %3492 = vmatpush.msra.mxu0 0.0
    %3493 = vmatpush.msra.mxu0 0.0
    %3494 = vmatpush.msra.mxu0 0.0
    %3495 = vmatpush.msra.mxu0 %v3451
    %3496 = vmatpush.msra.mxu0 %v3449
    %3497 = vmatpush.msra.mxu0 %v3447
    %3498 = vmatpush.msra.mxu0 %v3445
    %3499 = vmatmul.f32.gmra.mxu0 %v3461
    %v3500 = vpop.f32.mrf.mxu0
    %v3501 = vadd.f32 0.0, %v3500
    %3502 = vdwg.mxu0
    %3503 = vrot.lane.b32.xlu0 %v3074, 15
    %v3504 = vpop.permute.xlu0 %3503
    %3505 = vrot.lane.b32.xlu0 %v3075, 15
    %v3506 = vpop.permute.xlu0 %3505
    %3507 = vrot.lane.b32.xlu0 %v3076, 15
    %v3508 = vpop.permute.xlu0 %3507
    %3509 = vrot.lane.b32.xlu0 %v3077, 15
    %v3510 = vpop.permute.xlu0 %3509
    %3511 = vrot.lane.b32.xlu0 %v3078, 15
    %v3512 = vpop.permute.xlu0 %3511
    %3513 = vrot.lane.b32.xlu0 %v3079, 15
    %v3514 = vpop.permute.xlu0 %3513
    %3515 = vrot.lane.b32.xlu0 %v3080, 15
    %v3516 = vpop.permute.xlu0 %3515
    %3517 = vrot.lane.b32.xlu0 %v3081, 15
    %v3518 = vpop.permute.xlu0 %3517
    %3519 = vrot.lane.b32.xlu0 %v3082, 15
    %v3520 = vpop.permute.xlu0 %3519
    %3521 = vrot.lane.b32.xlu0 %v3083, 15
    %v3522 = vpop.permute.xlu0 %3521
    %3523 = vrot.lane.b32.xlu0 %v3084, 15
    %v3524 = vpop.permute.xlu0 %3523
    %3525 = vrot.lane.b32.xlu0 %v3085, 15
    %v3526 = vpop.permute.xlu0 %3525
    %v3527 = vsel %vm304, %v3504, %v3506
    %v3528 = vsel %vm304, %v3506, %v3508
    %v3529 = vsel %vm304, %v3510, %v3512
    %v3530 = vsel %vm304, %v3512, %v3514
    %v3531 = vsel %vm304, %v3516, %v3518
    %v3532 = vsel %vm304, %v3518, %v3520
    %v3533 = vsel %vm304, %v3522, %v3524
    %v3534 = vsel %vm304, %v3524, %v3526
    %v3544 = vsel %vm1080, %v3088, 0
    %3546 = vmatpush.msra.mxu0 0.0
    %3547 = vmatpush.msra.mxu0 0.0
    %3548 = vmatpush.msra.mxu0 0.0
    %3549 = vmatpush.msra.mxu0 0.0
    %3550 = vmatpush.msra.mxu0 0.0
    %3551 = vmatpush.msra.mxu0 0.0
    %3552 = vmatpush.msra.mxu0 0.0
    %3553 = vmatpush.msra.mxu0 0.0
    %3554 = vmatpush.msra.mxu0 0.0
    %3555 = vmatpush.msra.mxu0 0.0
    %3556 = vmatpush.msra.mxu0 0.0
    %3557 = vmatpush.msra.mxu0 0.0
    %3558 = vmatpush.msra.mxu0 %v3533
    %3559 = vmatpush.msra.mxu0 %v3531
    %3560 = vmatpush.msra.mxu0 %v3529
    %3561 = vmatpush.msra.mxu0 %v3527
    %3562 = vmatmul.f32.gmra.mxu0 %v3544
    %v3563 = vpop.f32.mrf.mxu0
    %v3564 = vadd.f32 %v3481, %v3563
    %3565 = vdwg.mxu0
    %3566 = vmatpush.msra.mxu0 0.0
    %3567 = vmatpush.msra.mxu0 0.0
    %3568 = vmatpush.msra.mxu0 0.0
    %3569 = vmatpush.msra.mxu0 0.0
    %3570 = vmatpush.msra.mxu0 0.0
    %3571 = vmatpush.msra.mxu0 0.0
    %3572 = vmatpush.msra.mxu0 0.0
    %3573 = vmatpush.msra.mxu0 0.0
    %3574 = vmatpush.msra.mxu0 0.0
    %3575 = vmatpush.msra.mxu0 0.0
    %3576 = vmatpush.msra.mxu0 0.0
    %3577 = vmatpush.msra.mxu0 0.0
    %3578 = vmatpush.msra.mxu0 %v3534
    %3579 = vmatpush.msra.mxu0 %v3532
    %3580 = vmatpush.msra.mxu0 %v3530
    %3581 = vmatpush.msra.mxu0 %v3528
    %3582 = vmatmul.f32.gmra.mxu0 %v3544
    %v3583 = vpop.f32.mrf.mxu0
    %v3584 = vadd.f32 %v3501, %v3583
    %3585 = vdwg.mxu0
    %v3586 = vld [vmem:[%s1684] sm:$0xf]
    %3587 = vrot.lane.b32.xlu0 %v3395, 113
    %v3588 = vpop.permute.xlu0 %3587
    %3589 = vrot.lane.b32.xlu0 %v3396, 113
    %v3590 = vpop.permute.xlu0 %3589
    %3591 = vrot.lane.b32.xlu0 %v3397, 113
    %v3592 = vpop.permute.xlu0 %3591
    %3593 = vrot.lane.b32.xlu0 %v3398, 113
    %v3594 = vpop.permute.xlu0 %3593
    %3595 = vrot.lane.b32.xlu0 %v3399, 113
    %v3596 = vpop.permute.xlu0 %3595
    %3597 = vrot.lane.b32.xlu0 %v3400, 113
    %v3598 = vpop.permute.xlu0 %3597
    %3599 = vrot.lane.b32.xlu0 %v3401, 113
    %v3600 = vpop.permute.xlu0 %3599
    %3601 = vrot.lane.b32.xlu0 %v3402, 113
    %v3602 = vpop.permute.xlu0 %3601
    %3603 = vrot.lane.b32.xlu0 %v3403, 113
    %v3604 = vpop.permute.xlu0 %3603
    %3605 = vrot.lane.b32.xlu0 %v3404, 113
    %v3606 = vpop.permute.xlu0 %3605
    %3607 = vrot.lane.b32.xlu0 %v3405, 113
    %v3608 = vpop.permute.xlu0 %3607
    %3609 = vrot.lane.b32.xlu0 %v3406, 113
    %v3610 = vpop.permute.xlu0 %3609
    %v3611 = vsel %vm284, %v3588, %v3590
    %v3612 = vsel %vm284, %v3590, %v3592
    %v3613 = vsel %vm284, %v3594, %v3596
    %v3614 = vsel %vm284, %v3596, %v3598
    %v3615 = vsel %vm284, %v3600, %v3602
    %v3616 = vsel %vm284, %v3602, %v3604
    %v3617 = vsel %vm284, %v3606, %v3608
    %v3618 = vsel %vm284, %v3608, %v3610
    %v3628 = vsel %vm1080, %v3586, 0
    %3630 = vmatpush.msra.mxu0 0.0
    %3631 = vmatpush.msra.mxu0 0.0
    %3632 = vmatpush.msra.mxu0 0.0
    %3633 = vmatpush.msra.mxu0 0.0
    %3634 = vmatpush.msra.mxu0 0.0
    %3635 = vmatpush.msra.mxu0 0.0
    %3636 = vmatpush.msra.mxu0 0.0
    %3637 = vmatpush.msra.mxu0 0.0
    %3638 = vmatpush.msra.mxu0 0.0
    %3639 = vmatpush.msra.mxu0 0.0
    %3640 = vmatpush.msra.mxu0 0.0
    %3641 = vmatpush.msra.mxu0 0.0
    %3642 = vmatpush.msra.mxu0 %v3617
    %3643 = vmatpush.msra.mxu0 %v3615
    %3644 = vmatpush.msra.mxu0 %v3613
    %3645 = vmatpush.msra.mxu0 %v3611
    %3646 = vmatmul.f32.gmra.mxu0 %v3628
    %v3647 = vpop.f32.mrf.mxu0
    %v3648 = vadd.f32 0.0, %v3647
    %3649 = vdwg.mxu0
    %3650 = vmatpush.msra.mxu0 0.0
    %3651 = vmatpush.msra.mxu0 0.0
    %3652 = vmatpush.msra.mxu0 0.0
    %3653 = vmatpush.msra.mxu0 0.0
    %3654 = vmatpush.msra.mxu0 0.0
    %3655 = vmatpush.msra.mxu0 0.0
    %3656 = vmatpush.msra.mxu0 0.0
    %3657 = vmatpush.msra.mxu0 0.0
    %3658 = vmatpush.msra.mxu0 0.0
    %3659 = vmatpush.msra.mxu0 0.0
    %3660 = vmatpush.msra.mxu0 0.0
    %3661 = vmatpush.msra.mxu0 0.0
    %3662 = vmatpush.msra.mxu0 %v3618
    %3663 = vmatpush.msra.mxu0 %v3616
    %3664 = vmatpush.msra.mxu0 %v3614
    %3665 = vmatpush.msra.mxu0 %v3612
    %3666 = vmatmul.f32.gmra.mxu0 %v3628
    %v3667 = vpop.f32.mrf.mxu0
    %v3668 = vadd.f32 0.0, %v3667
    %3669 = vdwg.mxu0
    %v3670 = vadd.f32 %v3246, %v3648
    %v3671 = vadd.f32 %v3266, %v3668
    %v3672 = vld [vmem:[%s1771] sm:$0xf]
    %3673 = vrot.lane.b32.xlu0 %v3395, 112
    %v3674 = vpop.permute.xlu0 %3673
    %3675 = vrot.lane.b32.xlu0 %v3396, 112
    %v3676 = vpop.permute.xlu0 %3675
    %3677 = vrot.lane.b32.xlu0 %v3397, 112
    %v3678 = vpop.permute.xlu0 %3677
    %3679 = vrot.lane.b32.xlu0 %v3398, 112
    %v3680 = vpop.permute.xlu0 %3679
    %3681 = vrot.lane.b32.xlu0 %v3399, 112
    %v3682 = vpop.permute.xlu0 %3681
    %3683 = vrot.lane.b32.xlu0 %v3400, 112
    %v3684 = vpop.permute.xlu0 %3683
    %3685 = vrot.lane.b32.xlu0 %v3401, 112
    %v3686 = vpop.permute.xlu0 %3685
    %3687 = vrot.lane.b32.xlu0 %v3402, 112
    %v3688 = vpop.permute.xlu0 %3687
    %3689 = vrot.lane.b32.xlu0 %v3403, 112
    %v3690 = vpop.permute.xlu0 %3689
    %3691 = vrot.lane.b32.xlu0 %v3404, 112
    %v3692 = vpop.permute.xlu0 %3691
    %3693 = vrot.lane.b32.xlu0 %v3405, 112
    %v3694 = vpop.permute.xlu0 %3693
    %3695 = vrot.lane.b32.xlu0 %v3406, 112
    %v3696 = vpop.permute.xlu0 %3695
    %v3697 = vsel %vm820, %v3674, %v3676
    %v3698 = vsel %vm820, %v3676, %v3678
    %v3699 = vsel %vm820, %v3680, %v3682
    %v3700 = vsel %vm820, %v3682, %v3684
    %v3701 = vsel %vm820, %v3686, %v3688
    %v3702 = vsel %vm820, %v3688, %v3690
    %v3703 = vsel %vm820, %v3692, %v3694
    %v3704 = vsel %vm820, %v3694, %v3696
    %v3714 = vsel %vm1080, %v3672, 0
    %3716 = vmatpush.msra.mxu0 0.0
    %3717 = vmatpush.msra.mxu0 0.0
    %3718 = vmatpush.msra.mxu0 0.0
    %3719 = vmatpush.msra.mxu0 0.0
    %3720 = vmatpush.msra.mxu0 0.0
    %3721 = vmatpush.msra.mxu0 0.0
    %3722 = vmatpush.msra.mxu0 0.0
    %3723 = vmatpush.msra.mxu0 0.0
    %3724 = vmatpush.msra.mxu0 0.0
    %3725 = vmatpush.msra.mxu0 0.0
    %3726 = vmatpush.msra.mxu0 0.0
    %3727 = vmatpush.msra.mxu0 0.0
    %3728 = vmatpush.msra.mxu0 %v3703
    %3729 = vmatpush.msra.mxu0 %v3701
    %3730 = vmatpush.msra.mxu0 %v3699
    %3731 = vmatpush.msra.mxu0 %v3697
    %3732 = vmatmul.f32.gmra.mxu0 %v3714
    %v3733 = vpop.f32.mrf.mxu0
    %v3734 = vadd.f32 0.0, %v3733
    %3735 = vdwg.mxu0
    %3736 = vmatpush.msra.mxu0 0.0
    %3737 = vmatpush.msra.mxu0 0.0
    %3738 = vmatpush.msra.mxu0 0.0
    %3739 = vmatpush.msra.mxu0 0.0
    %3740 = vmatpush.msra.mxu0 0.0
    %3741 = vmatpush.msra.mxu0 0.0
    %3742 = vmatpush.msra.mxu0 0.0
    %3743 = vmatpush.msra.mxu0 0.0
    %3744 = vmatpush.msra.mxu0 0.0
    %3745 = vmatpush.msra.mxu0 0.0
    %3746 = vmatpush.msra.mxu0 0.0
    %3747 = vmatpush.msra.mxu0 0.0
    %3748 = vmatpush.msra.mxu0 %v3704
    %3749 = vmatpush.msra.mxu0 %v3702
    %3750 = vmatpush.msra.mxu0 %v3700
    %3751 = vmatpush.msra.mxu0 %v3698
    %3752 = vmatmul.f32.gmra.mxu0 %v3714
    %v3753 = vpop.f32.mrf.mxu0
    %v3754 = vadd.f32 0.0, %v3753
    %3755 = vdwg.mxu0
    %v3756 = vadd.f32 %v3373, %v3734
    %v3757 = vadd.f32 %v3393, %v3754
    %v3758 = vld [vmem:[%s1858] sm:$0xf]
    %3759 = vrot.lane.b32.xlu0 %v3395, 111
    %v3760 = vpop.permute.xlu0 %3759
    %3761 = vrot.lane.b32.xlu0 %v3396, 111
    %v3762 = vpop.permute.xlu0 %3761
    %3763 = vrot.lane.b32.xlu0 %v3397, 111
    %v3764 = vpop.permute.xlu0 %3763
    %3765 = vrot.lane.b32.xlu0 %v3398, 111
    %v3766 = vpop.permute.xlu0 %3765
    %3767 = vrot.lane.b32.xlu0 %v3399, 111
    %v3768 = vpop.permute.xlu0 %3767
    %3769 = vrot.lane.b32.xlu0 %v3400, 111
    %v3770 = vpop.permute.xlu0 %3769
    %3771 = vrot.lane.b32.xlu0 %v3401, 111
    %v3772 = vpop.permute.xlu0 %3771
    %3773 = vrot.lane.b32.xlu0 %v3402, 111
    %v3774 = vpop.permute.xlu0 %3773
    %3775 = vrot.lane.b32.xlu0 %v3403, 111
    %v3776 = vpop.permute.xlu0 %3775
    %3777 = vrot.lane.b32.xlu0 %v3404, 111
    %v3778 = vpop.permute.xlu0 %3777
    %3779 = vrot.lane.b32.xlu0 %v3405, 111
    %v3780 = vpop.permute.xlu0 %3779
    %3781 = vrot.lane.b32.xlu0 %v3406, 111
    %v3782 = vpop.permute.xlu0 %3781
    %v3783 = vsel %vm86, %v3760, %v3762
    %v3784 = vsel %vm86, %v3762, %v3764
    %v3785 = vsel %vm86, %v3766, %v3768
    %v3786 = vsel %vm86, %v3768, %v3770
    %v3787 = vsel %vm86, %v3772, %v3774
    %v3788 = vsel %vm86, %v3774, %v3776
    %v3789 = vsel %vm86, %v3778, %v3780
    %v3790 = vsel %vm86, %v3780, %v3782
    %v3800 = vsel %vm1080, %v3758, 0
    %3802 = vmatpush.msra.mxu0 0.0
    %3803 = vmatpush.msra.mxu0 0.0
    %3804 = vmatpush.msra.mxu0 0.0
    %3805 = vmatpush.msra.mxu0 0.0
    %3806 = vmatpush.msra.mxu0 0.0
    %3807 = vmatpush.msra.mxu0 0.0
    %3808 = vmatpush.msra.mxu0 0.0
    %3809 = vmatpush.msra.mxu0 0.0
    %3810 = vmatpush.msra.mxu0 0.0
    %3811 = vmatpush.msra.mxu0 0.0
    %3812 = vmatpush.msra.mxu0 0.0
    %3813 = vmatpush.msra.mxu0 0.0
    %3814 = vmatpush.msra.mxu0 %v3789
    %3815 = vmatpush.msra.mxu0 %v3787
    %3816 = vmatpush.msra.mxu0 %v3785
    %3817 = vmatpush.msra.mxu0 %v3783
    %3818 = vmatmul.f32.gmra.mxu0 %v3800
    %v3819 = vpop.f32.mrf.mxu0
    %v3820 = vadd.f32 0.0, %v3819
    %3821 = vdwg.mxu0
    %3822 = vmatpush.msra.mxu0 0.0
    %3823 = vmatpush.msra.mxu0 0.0
    %3824 = vmatpush.msra.mxu0 0.0
    %3825 = vmatpush.msra.mxu0 0.0
    %3826 = vmatpush.msra.mxu0 0.0
    %3827 = vmatpush.msra.mxu0 0.0
    %3828 = vmatpush.msra.mxu0 0.0
    %3829 = vmatpush.msra.mxu0 0.0
    %3830 = vmatpush.msra.mxu0 0.0
    %3831 = vmatpush.msra.mxu0 0.0
    %3832 = vmatpush.msra.mxu0 0.0
    %3833 = vmatpush.msra.mxu0 0.0
    %3834 = vmatpush.msra.mxu0 %v3790
    %3835 = vmatpush.msra.mxu0 %v3788
    %3836 = vmatpush.msra.mxu0 %v3786
    %3837 = vmatpush.msra.mxu0 %v3784
    %3838 = vmatmul.f32.gmra.mxu0 %v3800
    %v3839 = vpop.f32.mrf.mxu0
    %v3840 = vadd.f32 0.0, %v3839
    %3841 = vdwg.mxu0
    %v3842 = vadd.f32 %v3564, %v3820
    %v3843 = vadd.f32 %v3584, %v3840
    %v3844 = vmul.f32 %v3670, %v67
    %v3845 = vmul.f32 %v3671, %v68
    %v3846 = vadd.f32 %v3756, %v3844
    %v3847 = vadd.f32 %v3757, %v3845
    %v3848 = vmul.f32 %v3842, %v71
    %v3849 = vmul.f32 %v3843, %v72
    %v3850 = vadd.f32 %v3846, %v3848
    %v3851 = vadd.f32 %v3847, %v3849
    %v3852 = vld [vmem:[%s6] sm:$0xf]
    %3854 = vset.pattern.permute.xlu0 0
    %3855 = vperm.xlu0 %3854, %v3852
    %v3856 = vpop.permute.xlu0 %3855
    %v3858 = vadd.f32 %v3850, %v3856
    %v3859 = vadd.f32 %v3851, %v3856
    %v3860 = vsub.f32 0.0, %v3858
    %v3861 = vsub.f32 0.0, %v3859
    %v3862 = vmul.f32 %v3860, 1.442695
    %v3863 = vpow.pop %v3862
    %v3864 = vmul.f32 %v3861, 1.442695
    %v3865 = vpow.pop %v3864
    %v3866 = vadd.f32 %v3863, 1.0
    %v3867 = vadd.f32 %v3865, 1.0
    %v3868 = vrcp.pop %v3866
    %v3869 = vmul.f32 %v3866, %v3868
    %v3870 = vsub.f32 1.0, %v3869
    %v3871 = vmul.f32 %v3868, %v3870
    %v3872 = vadd.f32 %v3868, %v3871
    %vm3873 = vweird.f32 %v3866
    %vm3874 = vweird.f32 %v3868
    %vm3875 = vmor %vm3873, %vm3874
    %v3876 = vsel %vm3875, %v3868, %v3872
    %v3877 = vand.u32 2147483647, %v3866
    %vm3878 = vcmp.eq.f32.partialorder %v3877, 8.507059e+37
    %v3879 = vand.u32 %v3866, 2147483648
    %v3880 = vor.u32 1.1754944e-38, %v3879
    %v3881 = vsel %vm3878, %v3880, %v3876
    %v3882 = vmul.f32 1.0, %v3881
    %v3883 = vrcp.pop %v3867
    %v3884 = vmul.f32 %v3867, %v3883
    %v3885 = vsub.f32 1.0, %v3884
    %v3886 = vmul.f32 %v3883, %v3885
    %v3887 = vadd.f32 %v3883, %v3886
    %vm3888 = vweird.f32 %v3867
    %vm3889 = vweird.f32 %v3883
    %vm3890 = vmor %vm3888, %vm3889
    %v3891 = vsel %vm3890, %v3883, %v3887
    %v3892 = vand.u32 2147483647, %v3867
    %vm3893 = vcmp.eq.f32.partialorder %v3892, 8.507059e+37
    %v3894 = vand.u32 %v3867, 2147483648
    %v3895 = vor.u32 1.1754944e-38, %v3894
    %v3896 = vsel %vm3893, %v3895, %v3891
    %v3897 = vmul.f32 1.0, %v3896
    %v3900 = vrot.slane %v3859, 6
    %v3901 = vsel %vm81, %v3858, %v3900
    %v3903 = vadd.f32 %v2037, %v3901
    %3906 = vst.sshfl [vmem:[#allocation1] sm:$0xff pattern:$0x73625140] %v3882
    %3907 = vst.sshfl [vmem:[#allocation1 + $0x8] sm:$0xff pattern:$0x73625140] %v3897
    %s3908 = scalar_lea.vmem [#allocation1], 1
    %v3909 = vld [vmem:[%s3908] ss:$4 sm:$0xff]
    %v3911 = vmul.f32 %v3903, %v3909
    %s3912 = scalar_lea.vmem [#allocation4], 4
    %3913 = vst [vmem:[%s3912] sm:$0xf] %v3911
    %v3914 = vlog2.pop %v3866
    %v3915 = vmul.f32 %v3914, 0.6931472
    %v3916 = vlog2.pop %v3867
    %v3917 = vmul.f32 %v3916, 0.6931472
    %v3918 = vsel %vm2018, %v3915, 0.0
    %v3919 = vsel %vm2018, %v3917, 0.0
    %v3920 = vadd.f32 %v3918, %v3919
    %3921 = vadd.xlane.f32.xlu0 %v3920
    %v3922 = vpop.xlane.xlu0 %3921
    %v3924 = vrot.slane %v3922, 2
    %v3926 = vsel %vm81, %v3924, 0.0
    %v3927 = vrot.slane %v3926, 4
    %v3928 = vadd.f32 %v3926, %v3927
    %v3929 = vrot.slane %v3928, 2
    %v3930 = vadd.f32 %v3928, %v3929
    %v3931 = vrot.slane %v3930, 1
    %v3932 = vadd.f32 %v3930, %v3931
    %v3933 = vsub.f32 0.0, %v3932
    %s3934 = scalar_lea.vmem %s8, 1
    %3935 = vst [vmem:[%s3934] sm:$0x1] %v3933
    // Predicated region
    $region30: #{coupling_forward.1} parent=1 // pred_check
      _
    $region31: #{coupling_forward.1} parent=1 // pred_check_branch
      %3937 = sbr.rel (0) target = $region33
    $region32: #{coupling_forward.1} parent=1 // pred_region
      // Predicated region
      $region34: #{coupling_forward.1} parent=32 // pred_check
        _
      $region35: #{coupling_forward.1} parent=32 // pred_check_branch
        %3939 = sbr.rel (0) target = $region37
      $region36: #{coupling_forward.1} parent=32 // pred_region
        // Predicated region
        $region38: #{coupling_forward.1} parent=36 // pred_check
          _
        $region39: #{coupling_forward.1} parent=36 // pred_check_branch
          %3941 = sbr.rel target = $region41
        $region40: #{coupling_forward.1} parent=36 // pred_region
          // Predicated region
          $region53: #{coupling_forward.1} parent=40 // pred_check
            _
          $region54: #{coupling_forward.1} parent=40 // pred_check_branch
            %3959 = sbr.rel (0) target = $region56
          $region55: #{coupling_forward.1} parent=40 // pred_region
            loop: start=0, step=1, limit=1
            $region57: #{coupling_forward.1} parent=55 // loop_pre_header
              _
            $region58: #{coupling_forward.1} parent=55 // loop_header
              %s3961 = sphi 0, %s3965
              %p3962 = scmp.ge.s32.totalorder %s3961, 1
              %s3966 = sphi [#allocation4], [#allocation4]
              %s3967 = sphi %s7, %s7
            $region59: #{coupling_forward.1} parent=55 // loop_header_branch
              %3964 = sbr.rel (%p3962) target = $region63
            $region60: #{coupling_forward.1} parent=55 // loop_body
              _
            $region61: #{coupling_forward.1} parent=55 // loop_footer
              %s3965 = sadd.s32 1, %s3961
            $region62: #{coupling_forward.1} parent=55 // loop_footer_branch
              %3960 = sbr.rel target = $region58
            $region63: #{coupling_forward.1} parent=55 // loop_exit
              _
            %s3969 = ssub.s32 16, 1
            loop: start=0, step=1, limit=1
            $region64: #{coupling_forward.1} parent=55 // loop_pre_header
              _
            $region65: #{coupling_forward.1} parent=55 // loop_header
              %s3971 = sphi 0, %s3975
              %p3972 = scmp.ge.s32.totalorder %s3971, 1
              %s3976 = sphi [#allocation4], [#allocation4]
              %s3977 = sphi %s7, %s7
            $region66: #{coupling_forward.1} parent=55 // loop_header_branch
              %3974 = sbr.rel (%p3972) target = $region70
            $region67: #{coupling_forward.1} parent=55 // loop_body
              %v3978 = vld [vmem:[%s3976] sm:%s3969]
              %3979 = vst [vmem:[%s3977] sm:%s3969] %v3978
              %v3980 = vld [vmem:[%s3976 + $0x4] sm:%s3969]
              %3981 = vst [vmem:[%s3977 + $0x8] sm:%s3969] %v3980
            $region68: #{coupling_forward.1} parent=55 // loop_footer
              %s3975 = sadd.s32 1, %s3971
            $region69: #{coupling_forward.1} parent=55 // loop_footer_branch
              %3970 = sbr.rel target = $region65
            $region70: #{coupling_forward.1} parent=55 // loop_exit
              _
          $region56: #{coupling_forward.1} parent=40 // pred_fallthru
            _
        $region41: #{coupling_forward.1} parent=36 // pred_fallthru
          _
        // Predicated region
        $region42: #{coupling_forward.1} parent=36 // pred_check
          _
        $region43: #{coupling_forward.1} parent=36 // pred_check_branch
          %3943 = sbr.rel (0) target = $region45
        $region44: #{coupling_forward.1} parent=36 // pred_region
          %s3945 = ssub.s32 16, 1
          loop: start=0, step=1, limit=1
          $region46: #{coupling_forward.1} parent=44 // loop_pre_header
            _
          $region47: #{coupling_forward.1} parent=44 // loop_header
            %s3947 = sphi 0, %s3951
            %p3948 = scmp.ge.s32.totalorder %s3947, 1
            %s3952 = sphi [#allocation4], [#allocation4]
            %s3953 = sphi %s7, %s7
          $region48: #{coupling_forward.1} parent=44 // loop_header_branch
            %3950 = sbr.rel (%p3948) target = $region52
          $region49: #{coupling_forward.1} parent=44 // loop_body
            %v3954 = vld [vmem:[%s3952] sm:%s3945]
            %3955 = vst [vmem:[%s3953] sm:%s3945] %v3954
            %v3956 = vld [vmem:[%s3952 + $0x4] sm:%s3945]
            %3957 = vst [vmem:[%s3953 + $0x8] sm:%s3945] %v3956
          $region50: #{coupling_forward.1} parent=44 // loop_footer
            %s3951 = sadd.s32 1, %s3947
          $region51: #{coupling_forward.1} parent=44 // loop_footer_branch
            %3946 = sbr.rel target = $region47
          $region52: #{coupling_forward.1} parent=44 // loop_exit
            _
        $region45: #{coupling_forward.1} parent=36 // pred_fallthru
          _
      $region37: #{coupling_forward.1} parent=32 // pred_fallthru
        _
      %3982 = vnop
    $region33: #{coupling_forward.1} parent=1 // pred_fallthru
      _
    // Predicated region
    $region71: #{coupling_forward.1} parent=1 // pred_check
      _
    $region72: #{coupling_forward.1} parent=1 // pred_check_branch
      %3984 = sbr.rel (0) target = $region74
    $region73: #{coupling_forward.1} parent=1 // pred_region
      _
    $region74: #{coupling_forward.1} parent=1 // pred_fallthru
      _
    // Predicated region
    $region75: #{coupling_forward.1} parent=1 // pred_check
      _
    $region76: #{coupling_forward.1} parent=1 // pred_check_branch
      %3986 = sbr.rel (0) target = $region78
    $region77: #{coupling_forward.1} parent=1 // pred_region
      _
    $region78: #{coupling_forward.1} parent=1 // pred_fallthru
      _
    // Predicated region
    $region79: #{coupling_forward.1} parent=1 // pred_check
      _
    $region80: #{coupling_forward.1} parent=1 // pred_check_branch
      %3988 = sbr.rel (0) target = $region82
    $region81: #{coupling_forward.1} parent=1 // pred_region
      _
    $region82: #{coupling_forward.1} parent=1 // pred_fallthru
      _

</llo_original>
